<compile_context>
chip_gen: v5e
topology: v5e:2x2
jax: 0.10.0
libtpu: 0.0.40
codegen_flags: <defaults>
</compile_context>

<pallas_src>
import jax
import jax.numpy as jnp
from jax import lax
from jax.experimental import pallas as pl
from jax.experimental.pallas import tpu as pltpu

EPS = 1e-5

F_IN = 784                     # layer-1 K kept un-padded (full-array block)
F_HID, F_HID_PAD = 500, 512    # 512 = 4 * 128
F_OUT, F_OUT_PAD = 10, 128     # lane-dense output slab


def _nnet_kernel(x_ref, w1_ref, bn_ref, b3_ref, w2_hbm_ref, w3_hbm_ref,
                 out_ref, w2_vmem, w3_vmem, dma_sems):
    """Whole MLP forward in one invocation; w2/w3 DMA overlapped with layer-1 compute."""
    # Kick off w2 / w3 HBM -> VMEM copies immediately; they run while layer 1 computes.
    cp_w2 = pltpu.make_async_copy(w2_hbm_ref, w2_vmem, dma_sems.at[0])
    cp_w3 = pltpu.make_async_copy(w3_hbm_ref, w3_vmem, dma_sems.at[1])
    cp_w2.start()
    cp_w3.start()

    inv_b = 1.0 / x_ref.shape[0]                       # static (trace-time) constant

    def bn_relu(h, g, be):
        # One-pass batch stats (sum / sum-of-squares), folded BN affine.
        mu = jnp.sum(h, axis=0, keepdims=True) * inv_b
        ex2 = jnp.sum(h * h, axis=0, keepdims=True) * inv_b
        var = jnp.maximum(ex2 - mu * mu, 0.0)          # clamp: rounding can go negative
        scale = g * lax.rsqrt(var + EPS)               # EUP rsqrt (free slot)
        shift = be - mu * scale
        return jnp.maximum(h * scale + shift, 0.0)

    bn = bn_ref[...]                                   # (4, 512) f32 packed BN params
    g1, be1, g2, be2 = bn[0:1], bn[1:2], bn[2:3], bn[3:4]

    # ---- Layer 1: Linear(784->500, bias cancelled by BN) + BN + ReLU ----
    x = x_ref[...].astype(jnp.bfloat16)                # in-kernel cast, hidden under DMA
    h = jnp.dot(x, w1_ref[...], preferred_element_type=jnp.float32)
    h = bn_relu(h, g1, be1)                            # (B, 512) f32, padded lanes stay 0

    # ---- Layer 2: Linear(500->500, bias cancelled by BN) + BN + ReLU ----
    cp_w2.wait()
    h = jnp.dot(h.astype(jnp.bfloat16), w2_vmem[...], preferred_element_type=jnp.float32)
    h = bn_relu(h, g2, be2)

    # ---- Layer 3: Linear(500->10), lane-dense 128-wide store ----
    cp_w3.wait()
    out = jnp.dot(h.astype(jnp.bfloat16), w3_vmem[...], preferred_element_type=jnp.float32)
    out_ref[...] = (out + b3_ref[...]).astype(out_ref.dtype)


def prepare_params(p):
    """Pad to lane-dense shapes, cast weights to bf16, pack BN vectors (done once)."""
    def pad_cols(a, cols):
        return jnp.pad(a, ((0, 0), (0, cols - a.shape[1])))

    def pad2(a, rows, cols):
        return jnp.pad(a, ((0, rows - a.shape[0]), (0, cols - a.shape[1])))

    w1 = pad_cols(p["w1"], F_HID_PAD).astype(jnp.bfloat16)          # (784, 512), K un-padded
    w2 = pad2(p["w2"], F_HID_PAD, F_HID_PAD).astype(jnp.bfloat16)   # (512, 512)
    w3 = pad2(p["w3"], F_HID_PAD, F_OUT_PAD).astype(jnp.bfloat16)   # (512, 128)
    # Padded gamma entries are 0 -> padded hidden lanes stay exactly 0 after BN+ReLU.
    bn_pack = jnp.concatenate([pad_cols(p["g1"], F_HID_PAD),
                               pad_cols(p["be1"], F_HID_PAD),
                               pad_cols(p["g2"], F_HID_PAD),
                               pad_cols(p["be2"], F_HID_PAD)], axis=0)  # (4, 512) f32
    b3 = pad_cols(p["b3"], F_OUT_PAD)                                    # (1, 128) f32
    # b1 / b2 intentionally dropped: cancelled exactly by training-mode BatchNorm.
    return dict(w1=w1, w2=w2, w3=w3, bn=bn_pack, b3=b3)


def nnet_forward(x, pp):
    """x: (B, 784) float32 (raw, unpadded). pp: output of prepare_params()."""
    B = x.shape[0]
    vmem = pl.BlockSpec(memory_space=pltpu.MemorySpace.VMEM)
    hbm = pl.BlockSpec(memory_space=pl.ANY)            # raw HBM ref, DMA'd manually

    out_pad = pl.pallas_call(
        _nnet_kernel,
        out_shape=jax.ShapeDtypeStruct((B, F_OUT_PAD), jnp.float32),
        in_specs=[vmem, vmem, vmem, vmem, hbm, hbm],
        out_specs=vmem,
        scratch_shapes=[
            pltpu.VMEM((F_HID_PAD, F_HID_PAD), jnp.bfloat16),   # w2 landing buffer
            pltpu.VMEM((F_HID_PAD, F_OUT_PAD), jnp.bfloat16),   # w3 landing buffer
            pltpu.SemaphoreType.DMA((2,)),
        ],
        compiler_params=pltpu.CompilerParams(vmem_limit_bytes=16 * 1024 * 1024),
    )(x, pp["w1"], pp["bn"], pp["b3"], pp["w2"], pp["w3"])
    return out_pad[:, :F_OUT]


def init_params(key):
    """PyTorch-like uniform(-1/sqrt(fan_in), +1/sqrt(fan_in)) init."""
    ks = jax.random.split(key, 8)

    def lin(kw, kb, fan_in, fan_out):
        bound = 1.0 / jnp.sqrt(fan_in)
        w = jax.random.uniform(kw, (fan_in, fan_out), jnp.float32, -bound, bound)
        b = jax.random.uniform(kb, (1, fan_out), jnp.float32, -bound, bound)
        return w, b

    w1, b1 = lin(ks[0], ks[1], 784, 500)
    w2, b2 = lin(ks[2], ks[3], 500, 500)
    w3, b3 = lin(ks[4], ks[5], 500, 10)

    # BN affine params (perturbed slightly so the affine transform is exercised).
    g1 = 1.0 + 0.1 * jax.random.normal(ks[6], (1, 500), jnp.float32)
    be1 = 0.1 * jax.random.normal(ks[7], (1, 500), jnp.float32)
    g2 = jnp.ones((1, 500), jnp.float32)
    be2 = jnp.zeros((1, 500), jnp.float32)

    return dict(w1=w1, b1=b1, g1=g1, be1=be1,
                w2=w2, b2=b2, g2=g2, be2=be2,
                w3=w3, b3=b3)


def _reference_f32(x, p):
    """Exact PyTorch-semantics forward in f32 (includes pre-BN biases, which cancel)."""
    def bn(h, g, be):
        mu = h.mean(0, keepdims=True)
        var = ((h - mu) ** 2).mean(0, keepdims=True)
        return (h - mu) / jnp.sqrt(var + EPS) * g + be

    h = jnp.maximum(bn(x @ p["w1"] + p["b1"], p["g1"], p["be1"]), 0.0)
    h = jnp.maximum(bn(h @ p["w2"] + p["b2"], p["g2"], p["be2"]), 0.0)
    return h @ p["w3"] + p["b3"]


def _reference_mixed(x, pp):
    """Same arithmetic as the kernel (bf16 matmul inputs, f32 accumulation)."""
    def bn_relu(h, g, be):
        mu = h.mean(0, keepdims=True)
        var = jnp.maximum((h * h).mean(0, keepdims=True) - mu * mu, 0.0)
        scale = g * lax.rsqrt(var + EPS)
        return jnp.maximum(h * scale + (be - mu * scale), 0.0)

    bn = pp["bn"]
    h = bn_relu(jnp.dot(x.astype(jnp.bfloat16), pp["w1"],
                        preferred_element_type=jnp.float32), bn[0:1], bn[1:2])
    h = bn_relu(jnp.dot(h.astype(jnp.bfloat16), pp["w2"],
                        preferred_element_type=jnp.float32), bn[2:3], bn[3:4])
    out = jnp.dot(h.astype(jnp.bfloat16), pp["w3"],
                  preferred_element_type=jnp.float32) + pp["b3"]
    return out[:, :F_OUT]


if __name__ == "__main__":
    key = jax.random.PRNGKey(0)
    kx, kp = jax.random.split(key)

    B = 32  # small batch; multiple of 16 (bf16 sublane tile), BN stats need B > 1
    x = jax.random.normal(kx, (B, F_IN), jnp.float32)
    params = init_params(kp)
    pp = prepare_params(params)

    out = nnet_forward(x, pp)
    out = jax.block_until_ready(out)
    assert out.shape == (B, F_OUT)

    # Tight check: kernel vs. identical mixed-precision math (validates the kernel).
    ref_mixed = _reference_mixed(x, pp)
    assert jnp.allclose(out, ref_mixed, atol=1e-3, rtol=1e-3), "mismatch vs mixed-precision reference"

    # Loose check: kernel vs. full-f32 PyTorch-semantics forward (validates semantics;
    # slack accounts only for bf16 weight/activation rounding).
    ref_f32 = _reference_f32(x, params)
    assert jnp.allclose(out, ref_f32, atol=1e-1, rtol=1e-1), "mismatch vs f32 reference"

    print("KERNEL_OK")
</pallas_src>

<mosaic_0001>
module attributes {stable_mosaic.version = 11 : i64} {
  func.func @_nnet_kernel(%arg0: memref<32x784xf32, #tpu.memory_space<vmem>>, %arg1: memref<784x512xbf16, #tpu.memory_space<vmem>>, %arg2: memref<4x512xf32, #tpu.memory_space<vmem>>, %arg3: memref<1x128xf32, #tpu.memory_space<vmem>>, %arg4: memref<512x512xbf16, #tpu.memory_space<any>>, %arg5: memref<512x128xbf16, #tpu.memory_space<any>>, %arg6: memref<32x128xf32, #tpu.memory_space<vmem>>, %arg7: memref<512x512xbf16, #tpu.memory_space<vmem>>, %arg8: memref<512x128xbf16, #tpu.memory_space<vmem>>, %arg9: memref<2x!tpu.dma_semaphore, #tpu.memory_space<semaphore_mem>>) attributes {dimension_semantics = [], scalar_prefetch = 0 : i64, scratch_operands = 3 : i64, tpu.core_type = #tpu.core_type<tc>} {
    %c0_i32 = arith.constant 0 : i32
    %0 = tpu.memref_slice %arg9[%c0_i32] : memref<2x!tpu.dma_semaphore, #tpu.memory_space<semaphore_mem>> -> memref<1x!tpu.dma_semaphore, #tpu.memory_space<semaphore_mem>>
    %1 = tpu.memref_squeeze %0 : memref<1x!tpu.dma_semaphore, #tpu.memory_space<semaphore_mem>> -> memref<!tpu.dma_semaphore, #tpu.memory_space<semaphore_mem>>
    tpu.enqueue_dma source(%arg4 : memref<512x512xbf16, #tpu.memory_space<any>>) target(%arg7 : memref<512x512xbf16, #tpu.memory_space<vmem>>) target_semaphore(%1 : memref<!tpu.dma_semaphore, #tpu.memory_space<semaphore_mem>>)
    %c1_i32 = arith.constant 1 : i32
    %2 = tpu.memref_slice %arg9[%c1_i32] : memref<2x!tpu.dma_semaphore, #tpu.memory_space<semaphore_mem>> -> memref<1x!tpu.dma_semaphore, #tpu.memory_space<semaphore_mem>>
    %3 = tpu.memref_squeeze %2 : memref<1x!tpu.dma_semaphore, #tpu.memory_space<semaphore_mem>> -> memref<!tpu.dma_semaphore, #tpu.memory_space<semaphore_mem>>
    tpu.enqueue_dma source(%arg5 : memref<512x128xbf16, #tpu.memory_space<any>>) target(%arg8 : memref<512x128xbf16, #tpu.memory_space<vmem>>) target_semaphore(%3 : memref<!tpu.dma_semaphore, #tpu.memory_space<semaphore_mem>>)
    %c0 = arith.constant 0 : index
    %c0_0 = arith.constant 0 : index
    %4 = vector.load %arg2[%c0, %c0_0] : memref<4x512xf32, #tpu.memory_space<vmem>>, vector<4x512xf32>
    %5 = vector.extract_strided_slice %4 {offsets = [0, 0], sizes = [1, 512], strides = [1, 1]} : vector<4x512xf32> to vector<1x512xf32>
    %6 = vector.extract_strided_slice %4 {offsets = [1, 0], sizes = [1, 512], strides = [1, 1]} : vector<4x512xf32> to vector<1x512xf32>
    %7 = vector.extract_strided_slice %4 {offsets = [2, 0], sizes = [1, 512], strides = [1, 1]} : vector<4x512xf32> to vector<1x512xf32>
    %8 = vector.extract_strided_slice %4 {offsets = [3, 0], sizes = [1, 512], strides = [1, 1]} : vector<4x512xf32> to vector<1x512xf32>
    %c0_1 = arith.constant 0 : index
    %c0_2 = arith.constant 0 : index
    %9 = vector.load %arg0[%c0_1, %c0_2] : memref<32x784xf32, #tpu.memory_space<vmem>>, vector<32x784xf32>
    %10 = arith.truncf %9 : vector<32x784xf32> to vector<32x784xbf16>
    %c0_3 = arith.constant 0 : index
    %c0_4 = arith.constant 0 : index
    %11 = vector.load %arg1[%c0_3, %c0_4] : memref<784x512xbf16, #tpu.memory_space<vmem>>, vector<784x512xbf16>
    %cst = arith.constant dense<0.000000e+00> : vector<32x512xf32>
    %12 = tpu.matmul %10, %11, %cst {dimension_numbers = #tpu.dot_dimension_numbers<[1], [0], [0], [1], [0, 0, 1, 1], [], []>} : vector<32x784xbf16>, vector<784x512xbf16>, vector<32x512xf32> -> vector<32x512xf32>
    %cst_5 = arith.constant dense<0.000000e+00> : vector<512xf32>
    %13 = vector.multi_reduction <add>, %12, %cst_5 [0] : vector<32x512xf32> to vector<512xf32>
    %14 = vector.shape_cast %13 : vector<512xf32> to vector<1x512xf32>
    %cst_6 = arith.constant 3.125000e-02 : f32
    %15 = vector.broadcast %cst_6 : f32 to vector<1x512xf32>
    %16 = arith.mulf %14, %15 : vector<1x512xf32>
    %17 = arith.mulf %12, %12 : vector<32x512xf32>
    %cst_7 = arith.constant dense<0.000000e+00> : vector<512xf32>
    %18 = vector.multi_reduction <add>, %17, %cst_7 [0] : vector<32x512xf32> to vector<512xf32>
    %19 = vector.shape_cast %18 : vector<512xf32> to vector<1x512xf32>
    %cst_8 = arith.constant 3.125000e-02 : f32
    %20 = vector.broadcast %cst_8 : f32 to vector<1x512xf32>
    %21 = arith.mulf %19, %20 : vector<1x512xf32>
    %22 = arith.mulf %16, %16 : vector<1x512xf32>
    %23 = arith.subf %21, %22 : vector<1x512xf32>
    %cst_9 = arith.constant 0.000000e+00 : f32
    %24 = vector.broadcast %cst_9 : f32 to vector<1x512xf32>
    %25 = arith.maximumf %23, %24 : vector<1x512xf32>
    %cst_10 = arith.constant 9.99999974E-6 : f32
    %26 = vector.broadcast %cst_10 : f32 to vector<1x512xf32>
    %27 = arith.addf %25, %26 : vector<1x512xf32>
    %28 = math.rsqrt %27 : vector<1x512xf32>
    %29 = arith.mulf %5, %28 : vector<1x512xf32>
    %30 = arith.mulf %16, %29 : vector<1x512xf32>
    %31 = arith.subf %6, %30 : vector<1x512xf32>
    %32 = vector.broadcast %29 : vector<1x512xf32> to vector<32x512xf32>
    %33 = arith.mulf %12, %32 : vector<32x512xf32>
    %34 = vector.broadcast %31 : vector<1x512xf32> to vector<32x512xf32>
    %35 = arith.addf %33, %34 : vector<32x512xf32>
    %cst_11 = arith.constant 0.000000e+00 : f32
    %36 = vector.broadcast %cst_11 : f32 to vector<32x512xf32>
    %37 = arith.maximumf %35, %36 : vector<32x512xf32>
    %c0_i32_12 = arith.constant 0 : i32
    %38 = tpu.memref_slice %arg9[%c0_i32_12] : memref<2x!tpu.dma_semaphore, #tpu.memory_space<semaphore_mem>> -> memref<1x!tpu.dma_semaphore, #tpu.memory_space<semaphore_mem>>
    %39 = tpu.memref_squeeze %38 : memref<1x!tpu.dma_semaphore, #tpu.memory_space<semaphore_mem>> -> memref<!tpu.dma_semaphore, #tpu.memory_space<semaphore_mem>>
    tpu.wait_dma2 semaphore(%39 : memref<!tpu.dma_semaphore, #tpu.memory_space<semaphore_mem>>) src(%arg4 : memref<512x512xbf16, #tpu.memory_space<any>>) dst(%arg7 : memref<512x512xbf16, #tpu.memory_space<vmem>>)
    %40 = arith.truncf %37 : vector<32x512xf32> to vector<32x512xbf16>
    %c0_13 = arith.constant 0 : index
    %c0_14 = arith.constant 0 : index
    %41 = vector.load %arg7[%c0_13, %c0_14] : memref<512x512xbf16, #tpu.memory_space<vmem>>, vector<512x512xbf16>
    %cst_15 = arith.constant dense<0.000000e+00> : vector<32x512xf32>
    %42 = tpu.matmul %40, %41, %cst_15 {dimension_numbers = #tpu.dot_dimension_numbers<[1], [0], [0], [1], [0, 0, 1, 1], [], []>} : vector<32x512xbf16>, vector<512x512xbf16>, vector<32x512xf32> -> vector<32x512xf32>
    %cst_16 = arith.constant dense<0.000000e+00> : vector<512xf32>
    %43 = vector.multi_reduction <add>, %42, %cst_16 [0] : vector<32x512xf32> to vector<512xf32>
    %44 = vector.shape_cast %43 : vector<512xf32> to vector<1x512xf32>
    %cst_17 = arith.constant 3.125000e-02 : f32
    %45 = vector.broadcast %cst_17 : f32 to vector<1x512xf32>
    %46 = arith.mulf %44, %45 : vector<1x512xf32>
    %47 = arith.mulf %42, %42 : vector<32x512xf32>
    %cst_18 = arith.constant dense<0.000000e+00> : vector<512xf32>
    %48 = vector.multi_reduction <add>, %47, %cst_18 [0] : vector<32x512xf32> to vector<512xf32>
    %49 = vector.shape_cast %48 : vector<512xf32> to vector<1x512xf32>
    %cst_19 = arith.constant 3.125000e-02 : f32
    %50 = vector.broadcast %cst_19 : f32 to vector<1x512xf32>
    %51 = arith.mulf %49, %50 : vector<1x512xf32>
    %52 = arith.mulf %46, %46 : vector<1x512xf32>
    %53 = arith.subf %51, %52 : vector<1x512xf32>
    %cst_20 = arith.constant 0.000000e+00 : f32
    %54 = vector.broadcast %cst_20 : f32 to vector<1x512xf32>
    %55 = arith.maximumf %53, %54 : vector<1x512xf32>
    %cst_21 = arith.constant 9.99999974E-6 : f32
    %56 = vector.broadcast %cst_21 : f32 to vector<1x512xf32>
    %57 = arith.addf %55, %56 : vector<1x512xf32>
    %58 = math.rsqrt %57 : vector<1x512xf32>
    %59 = arith.mulf %7, %58 : vector<1x512xf32>
    %60 = arith.mulf %46, %59 : vector<1x512xf32>
    %61 = arith.subf %8, %60 : vector<1x512xf32>
    %62 = vector.broadcast %59 : vector<1x512xf32> to vector<32x512xf32>
    %63 = arith.mulf %42, %62 : vector<32x512xf32>
    %64 = vector.broadcast %61 : vector<1x512xf32> to vector<32x512xf32>
    %65 = arith.addf %63, %64 : vector<32x512xf32>
    %cst_22 = arith.constant 0.000000e+00 : f32
    %66 = vector.broadcast %cst_22 : f32 to vector<32x512xf32>
    %67 = arith.maximumf %65, %66 : vector<32x512xf32>
    %c1_i32_23 = arith.constant 1 : i32
    %68 = tpu.memref_slice %arg9[%c1_i32_23] : memref<2x!tpu.dma_semaphore, #tpu.memory_space<semaphore_mem>> -> memref<1x!tpu.dma_semaphore, #tpu.memory_space<semaphore_mem>>
    %69 = tpu.memref_squeeze %68 : memref<1x!tpu.dma_semaphore, #tpu.memory_space<semaphore_mem>> -> memref<!tpu.dma_semaphore, #tpu.memory_space<semaphore_mem>>
    tpu.wait_dma2 semaphore(%69 : memref<!tpu.dma_semaphore, #tpu.memory_space<semaphore_mem>>) src(%arg5 : memref<512x128xbf16, #tpu.memory_space<any>>) dst(%arg8 : memref<512x128xbf16, #tpu.memory_space<vmem>>)
    %70 = arith.truncf %67 : vector<32x512xf32> to vector<32x512xbf16>
    %c0_24 = arith.constant 0 : index
    %c0_25 = arith.constant 0 : index
    %71 = vector.load %arg8[%c0_24, %c0_25] : memref<512x128xbf16, #tpu.memory_space<vmem>>, vector<512x128xbf16>
    %cst_26 = arith.constant dense<0.000000e+00> : vector<32x128xf32>
    %72 = tpu.matmul %70, %71, %cst_26 {dimension_numbers = #tpu.dot_dimension_numbers<[1], [0], [0], [1], [0, 0, 1, 1], [], []>} : vector<32x512xbf16>, vector<512x128xbf16>, vector<32x128xf32> -> vector<32x128xf32>
    %c0_27 = arith.constant 0 : index
    %c0_28 = arith.constant 0 : index
    %73 = vector.load %arg3[%c0_27, %c0_28] : memref<1x128xf32, #tpu.memory_space<vmem>>, vector<1x128xf32>
    %74 = vector.broadcast %73 : vector<1x128xf32> to vector<32x128xf32>
    %75 = arith.addf %72, %74 : vector<32x128xf32>
    %c0_29 = arith.constant 0 : index
    %c0_30 = arith.constant 0 : index
    %76 = vector.load %arg6[%c0_29, %c0_30] : memref<32x128xf32, #tpu.memory_space<vmem>>, vector<32x128xf32>
    tpu.vector_store %arg6[%c0_29, %c0_30], %75 {strides = array<i32>} : memref<32x128xf32, #tpu.memory_space<vmem>>, vector<32x128xf32>,
    return
  }
}

</mosaic_0001>

<llo_original>
// kernel: tpu_custom_call.1
$region0: #{tpu_custom_call.1}
  #allocation0 [shape = 'u32[]', space=smem, size = 0x4, offset = 0x4, fixed_abs, tag = 'smem constant byte address 0x4 - core index']
  #allocation1 [shape = 'u32[72,128]{1,0:T(1,128)}', space=vmem, size = 0x9000, scoped, tag = 'internal scratch']
  #allocation2 [shape = 'bf16[512,512]{1,0:T(8,128)(2,1)}', space=vmem, size = 0x80000, scoped, tag = 'scratch operand']
  #allocation3 [shape = 'bf16[512,128]{1,0:T(8,128)(2,1)}', space=vmem, size = 0x20000, scoped, tag = 'scratch operand']
  #allocation4 [shape = 's32[2]{0}', space=sflag, size = 0x8, scoped, tag = 'scratch operand']
  #allocation12 [shape = 's32[]', space=sflag, size = 0x4, offset = 0, fixed_abs, tag = 'sflag constant byte address 0x0 - dummy sync flag']
  #allocation13 [shape = 's32[]', space=sflag, size = 0x4, offset = 0, fixed_abs, tag = 'sflag constant byte address 0x0 - dummy sync flag']
  #allocation14 [shape = 'u32[]', space=smem, size = 0x4, offset = 0x44, fixed_abs, tag = 'smem constant byte address 0x44 - assertion arg 0']
  #allocation15 [shape = 'u32[]', space=smem, size = 0x4, offset = 0x48, fixed_abs, tag = 'smem constant byte address 0x48 - assertion arg 1']
  #allocation16 [shape = 's32[]', space=sflag, size = 0x4, offset = 0, fixed_abs, tag = 'sflag constant byte address 0x0 - dummy sync flag']
  #allocation17 [shape = 's32[]', space=sflag, size = 0x4, offset = 0, fixed_abs, tag = 'sflag constant byte address 0x0 - dummy sync flag']
  %s0 = inlined_call_operand.hbm [shape: f32[32,784], index: 0, kind: input, shape index: {}]
  %s1 = inlined_call_operand.hbm [shape: bf16[784,512], index: 1, kind: input, shape index: {}]
  %s2 = inlined_call_operand.hbm [shape: f32[4,512], index: 2, kind: input, shape index: {}]
  %s3 = inlined_call_operand.vmem [shape: f32[1,128], index: 3, kind: input, shape index: {}]
  %s4 = inlined_call_operand.hbm [shape: bf16[512,512], index: 4, kind: input, shape index: {}]
  %s5 = inlined_call_operand.hbm [shape: bf16[512,128], index: 5, kind: input, shape index: {}]
  %s6 = inlined_call_operand.hbm [shape: f32[32,128], index: 6, kind: output, shape index: {}]
  %s7 = sld [smem:[#allocation0]]
  $region46: #{tpu_custom_call.1} parent=0
    _
  %s9 = ssub.s32 1, %s7
  %s10 = scalar_select 0, %s9, %s7
  $region1: #{tpu_custom_call.1} parent=0
    #allocation5 [shape = 'u8[114688]{0}', space=vmem, size = 0x1c000, scoped, tag = 'input window, operand 0, single buffered']
    #allocation6 [shape = 's32[1]{0}', space=sflag, size = 0x4, scoped, tag = 'scoped memory for tpu_custom_call.1']
    #allocation7 [shape = 's32[1]{0}', space=sflag, size = 0x4, scoped, tag = 'scoped memory for tpu_custom_call.1']
    #allocation8 [shape = 'u8[802816]{0}', space=vmem, size = 0xc4000, scoped, tag = 'input window, operand 1, single buffered']
    #allocation9 [shape = 's32[1]{0}', space=sflag, size = 0x4, scoped, tag = 'scoped memory for tpu_custom_call.1']
    #allocation10 [shape = 'u8[8192]{0}', space=vmem, size = 0x2000, scoped, tag = 'input window, operand 2, single buffered']
    #allocation11 [shape = 'u8[16384]{0}', space=vmem, size = 0x4000, scoped, tag = 'output window, operand 0, single buffered']
    %11 = vsyncpa [#allocation6], 0
    %12 = vsyncpa [#allocation9], 0
    %13 = vsyncpa [#allocation7], 0
    // Predicated region
    $region2: #{tpu_custom_call.1} parent=1 // pred_check
      _
    $region3: #{tpu_custom_call.1} parent=1 // pred_check_branch
      %15 = sbr.rel (0) target = $region5
    $region4: #{tpu_custom_call.1} parent=1 // pred_region
      %17 = vsyncadd [#allocation6], 0
      %s18 = sshll.u32 %s0, 4
      %s19 = int_to_ptr.hbm [resolvable:$true] %s18
      %s20 = sshll.u32 [#allocation5], 4
      %s21 = int_to_ptr.vmem [resolvable:$true] %s20
      %26 = dma.hbm_to_vmem [thread:$0]  %s19, 3584, %s21, [#allocation6], 896, 896, 56
    $region5: #{tpu_custom_call.1} parent=1 // pred_fallthru
      _
    // Predicated region
    $region6: #{tpu_custom_call.1} parent=1 // pred_check
      _
    $region7: #{tpu_custom_call.1} parent=1 // pred_check_branch
      %28 = sbr.rel (0) target = $region9
    $region8: #{tpu_custom_call.1} parent=1 // pred_region
      %30 = vsyncadd [#allocation9], 0
      %s31 = sshll.u32 %s1, 4
      %s32 = int_to_ptr.hbm [resolvable:$true] %s31
      %s33 = sshll.u32 [#allocation8], 4
      %s34 = int_to_ptr.vmem [resolvable:$true] %s33
      %39 = dma.hbm_to_vmem [thread:$0]  %s32, 25088, %s34, [#allocation9], 256, 256, 16
    $region9: #{tpu_custom_call.1} parent=1 // pred_fallthru
      _
    // Predicated region
    $region10: #{tpu_custom_call.1} parent=1 // pred_check
      _
    $region11: #{tpu_custom_call.1} parent=1 // pred_check_branch
      %41 = sbr.rel (0) target = $region13
    $region12: #{tpu_custom_call.1} parent=1 // pred_region
      %43 = vsyncadd [#allocation9], 0
      %s45 = sshll.u32 %s2, 4
      %s46 = int_to_ptr.hbm [resolvable:$true] %s45
      %s47 = sshll.u32 [#allocation10], 4
      %s48 = int_to_ptr.vmem [resolvable:$true] %s47
      %50 = dma.hbm_to_vmem [thread:$0]  %s46, 256, %s48, [#allocation9]
    $region13: #{tpu_custom_call.1} parent=1 // pred_fallthru
      _
    // Predicated region
    $region14: #{tpu_custom_call.1} parent=1 // pred_check
      _
    $region15: #{tpu_custom_call.1} parent=1 // pred_check_branch
      %52 = sbr.rel (0) target = $region17
    $region16: #{tpu_custom_call.1} parent=1 // pred_region
      _
    $region17: #{tpu_custom_call.1} parent=1 // pred_fallthru
      _
    // Predicated region
    $region18: #{tpu_custom_call.1} parent=1 // pred_check
      _
    $region19: #{tpu_custom_call.1} parent=1 // pred_check_branch
      %54 = sbr.rel (0) target = $region21
    $region20: #{tpu_custom_call.1} parent=1 // pred_region
      %56 = dma.done [#allocation6], 3584
    $region21: #{tpu_custom_call.1} parent=1 // pred_fallthru
      _
    // Predicated region
    $region22: #{tpu_custom_call.1} parent=1 // pred_check
      _
    $region23: #{tpu_custom_call.1} parent=1 // pred_check_branch
      %58 = sbr.rel (0) target = $region25
    $region24: #{tpu_custom_call.1} parent=1 // pred_region
      %60 = dma.done [#allocation9], 25088
    $region25: #{tpu_custom_call.1} parent=1 // pred_fallthru
      _
    // Predicated region
    $region26: #{tpu_custom_call.1} parent=1 // pred_check
      _
    $region27: #{tpu_custom_call.1} parent=1 // pred_check_branch
      %62 = sbr.rel (0) target = $region29
    $region28: #{tpu_custom_call.1} parent=1 // pred_region
      %64 = dma.done [#allocation9], 256
    $region29: #{tpu_custom_call.1} parent=1 // pred_fallthru
      _
    // Predicated region
    $region30: #{tpu_custom_call.1} parent=1 // pred_check
      _
    $region31: #{tpu_custom_call.1} parent=1 // pred_check_branch
      %67 = sbr.rel target = $region33
    $region32: #{tpu_custom_call.1} parent=1 // pred_region
      %68 = sst [smem:[#allocation14]] [#allocation13]
      %69 = sst [smem:[#allocation15]] [#allocation12]
    $region33: #{tpu_custom_call.1} parent=1 // pred_fallthru
      _
    %71 = shalt.err (0)
    %s73 = sshll.u32 %s4, 4
    %s74 = int_to_ptr.hbm [resolvable:$true] %s73
    %s75 = sshll.u32 [#allocation2], 4
    %s76 = int_to_ptr.vmem [resolvable:$true] %s75
    %78 = dma.hbm_to_vmem [thread:$0]  %s74, 16384, %s76, [#allocation4]
    %s79 = scalar_lea.sflag [#allocation4], 1
    // Predicated region
    $region34: #{tpu_custom_call.1} parent=1 // pred_check
      _
    $region35: #{tpu_custom_call.1} parent=1 // pred_check_branch
      %81 = sbr.rel target = $region37
    $region36: #{tpu_custom_call.1} parent=1 // pred_region
      %82 = sst [smem:[#allocation14]] [#allocation17]
      %83 = sst [smem:[#allocation15]] [#allocation16]
    $region37: #{tpu_custom_call.1} parent=1 // pred_fallthru
      _
    %85 = shalt.err (0)
    %s87 = sshll.u32 %s5, 4
    %s88 = int_to_ptr.hbm [resolvable:$true] %s87
    %s89 = sshll.u32 [#allocation3], 4
    %s90 = int_to_ptr.vmem [resolvable:$true] %s89
    %92 = dma.hbm_to_vmem [thread:$0]  %s88, 4096, %s90, %s79
    %v93 = vld [vmem:[#allocation10] sm:$0xff]
    %v94 = vld [vmem:[#allocation10 + $0x8] sm:$0xff]
    %v95 = vld [vmem:[#allocation5] sm:$0xff]
    %v96 = vld [vmem:[#allocation5 + $0x8] sm:$0xff]
    %v97 = vld [vmem:[#allocation5 + $0x10] sm:$0xff]
    %v98 = vld [vmem:[#allocation5 + $0x18] sm:$0xff]
    %v99 = vld [vmem:[#allocation5 + $0x20] sm:$0xff]
    %v100 = vld [vmem:[#allocation5 + $0x28] sm:$0xff]
    %v101 = vld [vmem:[#allocation5 + $0x30] sm:$0xff]
    %v102 = vld [vmem:[#allocation5 + $0x38] sm:$0xff]
    %v103 = vld [vmem:[#allocation5 + $0x40] sm:$0xff]
    %v104 = vld [vmem:[#allocation5 + $0x48] sm:$0xff]
    %v105 = vld [vmem:[#allocation5 + $0x50] sm:$0xff]
    %v106 = vld [vmem:[#allocation5 + $0x58] sm:$0xff]
    %v107 = vld [vmem:[#allocation5 + $0x60] sm:$0xff]
    %v108 = vld [vmem:[#allocation5 + $0x68] sm:$0xff]
    %v109 = vld [vmem:[#allocation5 + $0x70] sm:$0xff]
    %v110 = vld [vmem:[#allocation5 + $0x78] sm:$0xff]
    %v111 = vld [vmem:[#allocation5 + $0x80] sm:$0xff]
    %v112 = vld [vmem:[#allocation5 + $0x88] sm:$0xff]
    %v113 = vld [vmem:[#allocation5 + $0x90] sm:$0xff]
    %v114 = vld [vmem:[#allocation5 + $0x98] sm:$0xff]
    %v115 = vld [vmem:[#allocation5 + $0xa0] sm:$0xff]
    %v116 = vld [vmem:[#allocation5 + $0xa8] sm:$0xff]
    %v117 = vld [vmem:[#allocation5 + $0xb0] sm:$0xff]
    %v118 = vld [vmem:[#allocation5 + $0xb8] sm:$0xff]
    %v119 = vld [vmem:[#allocation5 + $0xc0] sm:$0xff]
    %v120 = vld [vmem:[#allocation5 + $0xc8] sm:$0xff]
    %v121 = vld [vmem:[#allocation5 + $0xd0] sm:$0xff]
    %v122 = vld [vmem:[#allocation5 + $0xd8] sm:$0xff]
    %v123 = vpack.c.bf16 %v102, %v95
    %v124 = vpack.c.bf16 %v103, %v96
    %v125 = vpack.c.bf16 %v104, %v97
    %v126 = vpack.c.bf16 %v105, %v98
    %v127 = vpack.c.bf16 %v106, %v99
    %v128 = vpack.c.bf16 %v107, %v100
    %v129 = vpack.c.bf16 %v108, %v101
    %v130 = vpack.c.bf16 %v116, %v109
    %v131 = vpack.c.bf16 %v117, %v110
    %v132 = vpack.c.bf16 %v118, %v111
    %v133 = vpack.c.bf16 %v119, %v112
    %v134 = vpack.c.bf16 %v120, %v113
    %v135 = vpack.c.bf16 %v121, %v114
    %v136 = vpack.c.bf16 %v122, %v115
    %v137 = vld [vmem:[#allocation8] sm:$0xff]
    %v138 = vld [vmem:[#allocation8 + $0x8] sm:$0xff]
    %v139 = vld [vmem:[#allocation8 + $0x10] sm:$0xff]
    %v140 = vld [vmem:[#allocation8 + $0x18] sm:$0xff]
    %v141 = vld [vmem:[#allocation8 + $0x20] sm:$0xff]
    %v142 = vld [vmem:[#allocation8 + $0x28] sm:$0xff]
    %v143 = vld [vmem:[#allocation8 + $0x30] sm:$0xff]
    %v144 = vld [vmem:[#allocation8 + $0x38] sm:$0xff]
    %v145 = vld [vmem:[#allocation8 + $0x40] sm:$0xff]
    %v146 = vld [vmem:[#allocation8 + $0x48] sm:$0xff]
    %v147 = vld [vmem:[#allocation8 + $0x50] sm:$0xff]
    %v148 = vld [vmem:[#allocation8 + $0x58] sm:$0xff]
    %v149 = vld [vmem:[#allocation8 + $0x60] sm:$0xff]
    %v150 = vld [vmem:[#allocation8 + $0x68] sm:$0xff]
    %v151 = vld [vmem:[#allocation8 + $0x70] sm:$0xff]
    %v152 = vld [vmem:[#allocation8 + $0x78] sm:$0xff]
    %v153 = vld [vmem:[#allocation8 + $0x80] sm:$0xff]
    %v154 = vld [vmem:[#allocation8 + $0x88] sm:$0xff]
    %v155 = vld [vmem:[#allocation8 + $0x90] sm:$0xff]
    %v156 = vld [vmem:[#allocation8 + $0x98] sm:$0xff]
    %v157 = vld [vmem:[#allocation8 + $0xa0] sm:$0xff]
    %v158 = vld [vmem:[#allocation8 + $0xa8] sm:$0xff]
    %v159 = vld [vmem:[#allocation8 + $0xb0] sm:$0xff]
    %v160 = vld [vmem:[#allocation8 + $0xb8] sm:$0xff]
    %v161 = vld [vmem:[#allocation8 + $0xc0] sm:$0xff]
    %v162 = vld [vmem:[#allocation8 + $0xc8] sm:$0xff]
    %v163 = vld [vmem:[#allocation8 + $0xd0] sm:$0xff]
    %v164 = vld [vmem:[#allocation8 + $0xd8] sm:$0xff]
    %v165 = vld [vmem:[#allocation8 + $0xe0] sm:$0xff]
    %v166 = vld [vmem:[#allocation8 + $0xe8] sm:$0xff]
    %v167 = vld [vmem:[#allocation8 + $0xf0] sm:$0xff]
    %v168 = vld [vmem:[#allocation8 + $0xf8] sm:$0xff]
    %v169 = vld [vmem:[#allocation8 + $0x100] sm:$0xff]
    %v170 = vld [vmem:[#allocation8 + $0x108] sm:$0xff]
    %v171 = vld [vmem:[#allocation8 + $0x110] sm:$0xff]
    %v172 = vld [vmem:[#allocation8 + $0x118] sm:$0xff]
    %v173 = vld [vmem:[#allocation8 + $0x120] sm:$0xff]
    %v174 = vld [vmem:[#allocation8 + $0x128] sm:$0xff]
    %v175 = vld [vmem:[#allocation8 + $0x130] sm:$0xff]
    %v176 = vld [vmem:[#allocation8 + $0x138] sm:$0xff]
    %v177 = vld [vmem:[#allocation8 + $0x140] sm:$0xff]
    %v178 = vld [vmem:[#allocation8 + $0x148] sm:$0xff]
    %v179 = vld [vmem:[#allocation8 + $0x150] sm:$0xff]
    %v180 = vld [vmem:[#allocation8 + $0x158] sm:$0xff]
    %v181 = vld [vmem:[#allocation8 + $0x160] sm:$0xff]
    %v182 = vld [vmem:[#allocation8 + $0x168] sm:$0xff]
    %v183 = vld [vmem:[#allocation8 + $0x170] sm:$0xff]
    %v184 = vld [vmem:[#allocation8 + $0x178] sm:$0xff]
    %v185 = vld [vmem:[#allocation8 + $0x180] sm:$0xff]
    %v186 = vld [vmem:[#allocation8 + $0x188] sm:$0xff]
    %v187 = vld [vmem:[#allocation8 + $0x190] sm:$0xff]
    %v188 = vld [vmem:[#allocation8 + $0x198] sm:$0xff]
    %v189 = vld [vmem:[#allocation8 + $0x1a0] sm:$0xff]
    %v190 = vld [vmem:[#allocation8 + $0x1a8] sm:$0xff]
    %v191 = vld [vmem:[#allocation8 + $0x1b0] sm:$0xff]
    %v192 = vld [vmem:[#allocation8 + $0x1b8] sm:$0xff]
    %v193 = vld [vmem:[#allocation8 + $0x1c0] sm:$0xff]
    %v194 = vld [vmem:[#allocation8 + $0x1c8] sm:$0xff]
    %v195 = vld [vmem:[#allocation8 + $0x1d0] sm:$0xff]
    %v196 = vld [vmem:[#allocation8 + $0x1d8] sm:$0xff]
    %v197 = vld [vmem:[#allocation8 + $0x1e0] sm:$0xff]
    %v198 = vld [vmem:[#allocation8 + $0x1e8] sm:$0xff]
    %v199 = vld [vmem:[#allocation8 + $0x1f0] sm:$0xff]
    %v200 = vld [vmem:[#allocation8 + $0x1f8] sm:$0xff]
    %v201 = vld [vmem:[#allocation8 + $0x200] sm:$0xff]
    %v202 = vld [vmem:[#allocation8 + $0x208] sm:$0xff]
    %v203 = vld [vmem:[#allocation8 + $0x210] sm:$0xff]
    %v204 = vld [vmem:[#allocation8 + $0x218] sm:$0xff]
    %v205 = vld [vmem:[#allocation8 + $0x220] sm:$0xff]
    %v206 = vld [vmem:[#allocation8 + $0x228] sm:$0xff]
    %v207 = vld [vmem:[#allocation8 + $0x230] sm:$0xff]
    %v208 = vld [vmem:[#allocation8 + $0x238] sm:$0xff]
    %v209 = vld [vmem:[#allocation8 + $0x240] sm:$0xff]
    %v210 = vld [vmem:[#allocation8 + $0x248] sm:$0xff]
    %v211 = vld [vmem:[#allocation8 + $0x250] sm:$0xff]
    %v212 = vld [vmem:[#allocation8 + $0x258] sm:$0xff]
    %v213 = vld [vmem:[#allocation8 + $0x260] sm:$0xff]
    %v214 = vld [vmem:[#allocation8 + $0x268] sm:$0xff]
    %v215 = vld [vmem:[#allocation8 + $0x270] sm:$0xff]
    %v216 = vld [vmem:[#allocation8 + $0x278] sm:$0xff]
    %v217 = vld [vmem:[#allocation8 + $0x280] sm:$0xff]
    %v218 = vld [vmem:[#allocation8 + $0x288] sm:$0xff]
    %v219 = vld [vmem:[#allocation8 + $0x290] sm:$0xff]
    %v220 = vld [vmem:[#allocation8 + $0x298] sm:$0xff]
    %v221 = vld [vmem:[#allocation8 + $0x2a0] sm:$0xff]
    %v222 = vld [vmem:[#allocation8 + $0x2a8] sm:$0xff]
    %v223 = vld [vmem:[#allocation8 + $0x2b0] sm:$0xff]
    %v224 = vld [vmem:[#allocation8 + $0x2b8] sm:$0xff]
    %v225 = vld [vmem:[#allocation8 + $0x2c0] sm:$0xff]
    %v226 = vld [vmem:[#allocation8 + $0x2c8] sm:$0xff]
    %v227 = vld [vmem:[#allocation8 + $0x2d0] sm:$0xff]
    %v228 = vld [vmem:[#allocation8 + $0x2d8] sm:$0xff]
    %v229 = vld [vmem:[#allocation8 + $0x2e0] sm:$0xff]
    %v230 = vld [vmem:[#allocation8 + $0x2e8] sm:$0xff]
    %v231 = vld [vmem:[#allocation8 + $0x2f0] sm:$0xff]
    %v232 = vld [vmem:[#allocation8 + $0x2f8] sm:$0xff]
    %v233 = vld [vmem:[#allocation8 + $0x300] sm:$0xff]
    %v234 = vld [vmem:[#allocation8 + $0x308] sm:$0xff]
    %v235 = vld [vmem:[#allocation8 + $0x310] sm:$0xff]
    %v236 = vld [vmem:[#allocation8 + $0x318] sm:$0xff]
    %v237 = vld [vmem:[#allocation8 + $0x320] sm:$0xff]
    %v238 = vld [vmem:[#allocation8 + $0x328] sm:$0xff]
    %v239 = vld [vmem:[#allocation8 + $0x330] sm:$0xff]
    %v240 = vld [vmem:[#allocation8 + $0x338] sm:$0xff]
    %v241 = vld [vmem:[#allocation8 + $0x340] sm:$0xff]
    %v242 = vld [vmem:[#allocation8 + $0x348] sm:$0xff]
    %v243 = vld [vmem:[#allocation8 + $0x350] sm:$0xff]
    %v244 = vld [vmem:[#allocation8 + $0x358] sm:$0xff]
    %v245 = vld [vmem:[#allocation8 + $0x360] sm:$0xff]
    %v246 = vld [vmem:[#allocation8 + $0x368] sm:$0xff]
    %v247 = vld [vmem:[#allocation8 + $0x370] sm:$0xff]
    %v248 = vld [vmem:[#allocation8 + $0x378] sm:$0xff]
    %v249 = vld [vmem:[#allocation8 + $0x380] sm:$0xff]
    %v250 = vld [vmem:[#allocation8 + $0x388] sm:$0xff]
    %v251 = vld [vmem:[#allocation8 + $0x390] sm:$0xff]
    %v252 = vld [vmem:[#allocation8 + $0x398] sm:$0xff]
    %v253 = vld [vmem:[#allocation8 + $0x3a0] sm:$0xff]
    %v254 = vld [vmem:[#allocation8 + $0x3a8] sm:$0xff]
    %v255 = vld [vmem:[#allocation8 + $0x3b0] sm:$0xff]
    %v256 = vld [vmem:[#allocation8 + $0x3b8] sm:$0xff]
    %v257 = vld [vmem:[#allocation8 + $0x3c0] sm:$0xff]
    %v258 = vld [vmem:[#allocation8 + $0x3c8] sm:$0xff]
    %v259 = vld [vmem:[#allocation8 + $0x3d0] sm:$0xff]
    %v260 = vld [vmem:[#allocation8 + $0x3d8] sm:$0xff]
    %v261 = vld [vmem:[#allocation8 + $0x3e0] sm:$0xff]
    %v262 = vld [vmem:[#allocation8 + $0x3e8] sm:$0xff]
    %v263 = vld [vmem:[#allocation8 + $0x3f0] sm:$0xff]
    %v264 = vld [vmem:[#allocation8 + $0x3f8] sm:$0xff]
    %v265 = vld [vmem:[#allocation8 + $0x400] sm:$0xff]
    %v266 = vld [vmem:[#allocation8 + $0x408] sm:$0xff]
    %v267 = vld [vmem:[#allocation8 + $0x410] sm:$0xff]
    %v268 = vld [vmem:[#allocation8 + $0x418] sm:$0xff]
    %v269 = vld [vmem:[#allocation8 + $0x420] sm:$0xff]
    %v270 = vld [vmem:[#allocation8 + $0x428] sm:$0xff]
    %v271 = vld [vmem:[#allocation8 + $0x430] sm:$0xff]
    %v272 = vld [vmem:[#allocation8 + $0x438] sm:$0xff]
    %v273 = vld [vmem:[#allocation8 + $0x440] sm:$0xff]
    %v274 = vld [vmem:[#allocation8 + $0x448] sm:$0xff]
    %v275 = vld [vmem:[#allocation8 + $0x450] sm:$0xff]
    %v276 = vld [vmem:[#allocation8 + $0x458] sm:$0xff]
    %v277 = vld [vmem:[#allocation8 + $0x460] sm:$0xff]
    %v278 = vld [vmem:[#allocation8 + $0x468] sm:$0xff]
    %v279 = vld [vmem:[#allocation8 + $0x470] sm:$0xff]
    %v280 = vld [vmem:[#allocation8 + $0x478] sm:$0xff]
    %v281 = vld [vmem:[#allocation8 + $0x480] sm:$0xff]
    %v282 = vld [vmem:[#allocation8 + $0x488] sm:$0xff]
    %v283 = vld [vmem:[#allocation8 + $0x490] sm:$0xff]
    %v284 = vld [vmem:[#allocation8 + $0x498] sm:$0xff]
    %v285 = vld [vmem:[#allocation8 + $0x4a0] sm:$0xff]
    %v286 = vld [vmem:[#allocation8 + $0x4a8] sm:$0xff]
    %v287 = vld [vmem:[#allocation8 + $0x4b0] sm:$0xff]
    %v288 = vld [vmem:[#allocation8 + $0x4b8] sm:$0xff]
    %v289 = vld [vmem:[#allocation8 + $0x4c0] sm:$0xff]
    %v290 = vld [vmem:[#allocation8 + $0x4c8] sm:$0xff]
    %v291 = vld [vmem:[#allocation8 + $0x4d0] sm:$0xff]
    %v292 = vld [vmem:[#allocation8 + $0x4d8] sm:$0xff]
    %v293 = vld [vmem:[#allocation8 + $0x4e0] sm:$0xff]
    %v294 = vld [vmem:[#allocation8 + $0x4e8] sm:$0xff]
    %v295 = vld [vmem:[#allocation8 + $0x4f0] sm:$0xff]
    %v296 = vld [vmem:[#allocation8 + $0x4f8] sm:$0xff]
    %v297 = vld [vmem:[#allocation8 + $0x500] sm:$0xff]
    %v298 = vld [vmem:[#allocation8 + $0x508] sm:$0xff]
    %v299 = vld [vmem:[#allocation8 + $0x510] sm:$0xff]
    %v300 = vld [vmem:[#allocation8 + $0x518] sm:$0xff]
    %v301 = vld [vmem:[#allocation8 + $0x520] sm:$0xff]
    %v302 = vld [vmem:[#allocation8 + $0x528] sm:$0xff]
    %v303 = vld [vmem:[#allocation8 + $0x530] sm:$0xff]
    %v304 = vld [vmem:[#allocation8 + $0x538] sm:$0xff]
    %v305 = vld [vmem:[#allocation8 + $0x540] sm:$0xff]
    %v306 = vld [vmem:[#allocation8 + $0x548] sm:$0xff]
    %v307 = vld [vmem:[#allocation8 + $0x550] sm:$0xff]
    %v308 = vld [vmem:[#allocation8 + $0x558] sm:$0xff]
    %v309 = vld [vmem:[#allocation8 + $0x560] sm:$0xff]
    %v310 = vld [vmem:[#allocation8 + $0x568] sm:$0xff]
    %v311 = vld [vmem:[#allocation8 + $0x570] sm:$0xff]
    %v312 = vld [vmem:[#allocation8 + $0x578] sm:$0xff]
    %v313 = vld [vmem:[#allocation8 + $0x580] sm:$0xff]
    %v314 = vld [vmem:[#allocation8 + $0x588] sm:$0xff]
    %v315 = vld [vmem:[#allocation8 + $0x590] sm:$0xff]
    %v316 = vld [vmem:[#allocation8 + $0x598] sm:$0xff]
    %v317 = vld [vmem:[#allocation8 + $0x5a0] sm:$0xff]
    %v318 = vld [vmem:[#allocation8 + $0x5a8] sm:$0xff]
    %v319 = vld [vmem:[#allocation8 + $0x5b0] sm:$0xff]
    %v320 = vld [vmem:[#allocation8 + $0x5b8] sm:$0xff]
    %v321 = vld [vmem:[#allocation8 + $0x5c0] sm:$0xff]
    %v322 = vld [vmem:[#allocation8 + $0x5c8] sm:$0xff]
    %v323 = vld [vmem:[#allocation8 + $0x5d0] sm:$0xff]
    %v324 = vld [vmem:[#allocation8 + $0x5d8] sm:$0xff]
    %v325 = vld [vmem:[#allocation8 + $0x5e0] sm:$0xff]
    %v326 = vld [vmem:[#allocation8 + $0x5e8] sm:$0xff]
    %v327 = vld [vmem:[#allocation8 + $0x5f0] sm:$0xff]
    %v328 = vld [vmem:[#allocation8 + $0x5f8] sm:$0xff]
    %v329 = vld [vmem:[#allocation8 + $0x600] sm:$0xff]
    %v330 = vld [vmem:[#allocation8 + $0x608] sm:$0xff]
    %v331 = vld [vmem:[#allocation8 + $0x610] sm:$0xff]
    %v332 = vld [vmem:[#allocation8 + $0x618] sm:$0xff]
    %v529 = vunpack.c.l.b16 %v137
    %v530 = vunpack.c.h.b16 %v137
    %v531 = vunpack.c.l.b16 %v138
    %v532 = vunpack.c.h.b16 %v138
    %v533 = vunpack.c.l.b16 %v139
    %v534 = vunpack.c.h.b16 %v139
    %v535 = vunpack.c.l.b16 %v140
    %v536 = vunpack.c.h.b16 %v140
    %v537 = vunpack.c.l.b16 %v141
    %v538 = vunpack.c.h.b16 %v141
    %v539 = vunpack.c.l.b16 %v142
    %v540 = vunpack.c.h.b16 %v142
    %v541 = vunpack.c.l.b16 %v143
    %v542 = vunpack.c.h.b16 %v143
    %v543 = vunpack.c.l.b16 %v144
    %v544 = vunpack.c.h.b16 %v144
    %v545 = vunpack.c.l.b16 %v145
    %v546 = vunpack.c.h.b16 %v145
    %v547 = vunpack.c.l.b16 %v146
    %v548 = vunpack.c.h.b16 %v146
    %v549 = vunpack.c.l.b16 %v147
    %v550 = vunpack.c.h.b16 %v147
    %v551 = vunpack.c.l.b16 %v148
    %v552 = vunpack.c.h.b16 %v148
    %v553 = vunpack.c.l.b16 %v149
    %v554 = vunpack.c.h.b16 %v149
    %v555 = vunpack.c.l.b16 %v150
    %v556 = vunpack.c.h.b16 %v150
    %v557 = vunpack.c.l.b16 %v151
    %v558 = vunpack.c.h.b16 %v151
    %v559 = vunpack.c.l.b16 %v152
    %v560 = vunpack.c.h.b16 %v152
    %v561 = vunpack.c.l.b16 %v153
    %v562 = vunpack.c.h.b16 %v153
    %v563 = vunpack.c.l.b16 %v154
    %v564 = vunpack.c.h.b16 %v154
    %v565 = vunpack.c.l.b16 %v155
    %v566 = vunpack.c.h.b16 %v155
    %v567 = vunpack.c.l.b16 %v156
    %v568 = vunpack.c.h.b16 %v156
    %v569 = vunpack.c.l.b16 %v157
    %v570 = vunpack.c.h.b16 %v157
    %v571 = vunpack.c.l.b16 %v158
    %v572 = vunpack.c.h.b16 %v158
    %v573 = vunpack.c.l.b16 %v159
    %v574 = vunpack.c.h.b16 %v159
    %v575 = vunpack.c.l.b16 %v160
    %v576 = vunpack.c.h.b16 %v160
    %v577 = vunpack.c.l.b16 %v161
    %v578 = vunpack.c.h.b16 %v161
    %v579 = vunpack.c.l.b16 %v162
    %v580 = vunpack.c.h.b16 %v162
    %v581 = vunpack.c.l.b16 %v163
    %v582 = vunpack.c.h.b16 %v163
    %v583 = vunpack.c.l.b16 %v164
    %v584 = vunpack.c.h.b16 %v164
    %v585 = vunpack.c.l.b16 %v165
    %v586 = vunpack.c.h.b16 %v165
    %v587 = vunpack.c.l.b16 %v166
    %v588 = vunpack.c.h.b16 %v166
    %v589 = vunpack.c.l.b16 %v167
    %v590 = vunpack.c.h.b16 %v167
    %v591 = vunpack.c.l.b16 %v168
    %v592 = vunpack.c.h.b16 %v168
    %v593 = vunpack.c.l.b16 %v169
    %v594 = vunpack.c.h.b16 %v169
    %v595 = vunpack.c.l.b16 %v170
    %v596 = vunpack.c.h.b16 %v170
    %v597 = vunpack.c.l.b16 %v171
    %v598 = vunpack.c.h.b16 %v171
    %v599 = vunpack.c.l.b16 %v172
    %v600 = vunpack.c.h.b16 %v172
    %v601 = vunpack.c.l.b16 %v173
    %v602 = vunpack.c.h.b16 %v173
    %v603 = vunpack.c.l.b16 %v174
    %v604 = vunpack.c.h.b16 %v174
    %v605 = vunpack.c.l.b16 %v175
    %v606 = vunpack.c.h.b16 %v175
    %v607 = vunpack.c.l.b16 %v176
    %v608 = vunpack.c.h.b16 %v176
    %v609 = vunpack.c.l.b16 %v177
    %v610 = vunpack.c.h.b16 %v177
    %v611 = vunpack.c.l.b16 %v178
    %v612 = vunpack.c.h.b16 %v178
    %v613 = vunpack.c.l.b16 %v179
    %v614 = vunpack.c.h.b16 %v179
    %v615 = vunpack.c.l.b16 %v180
    %v616 = vunpack.c.h.b16 %v180
    %v617 = vunpack.c.l.b16 %v181
    %v618 = vunpack.c.h.b16 %v181
    %v619 = vunpack.c.l.b16 %v182
    %v620 = vunpack.c.h.b16 %v182
    %v621 = vunpack.c.l.b16 %v183
    %v622 = vunpack.c.h.b16 %v183
    %v623 = vunpack.c.l.b16 %v184
    %v624 = vunpack.c.h.b16 %v184
    %v625 = vunpack.c.l.b16 %v185
    %v626 = vunpack.c.h.b16 %v185
    %v627 = vunpack.c.l.b16 %v186
    %v628 = vunpack.c.h.b16 %v186
    %v629 = vunpack.c.l.b16 %v187
    %v630 = vunpack.c.h.b16 %v187
    %v631 = vunpack.c.l.b16 %v188
    %v632 = vunpack.c.h.b16 %v188
    %v633 = vunpack.c.l.b16 %v189
    %v634 = vunpack.c.h.b16 %v189
    %v635 = vunpack.c.l.b16 %v190
    %v636 = vunpack.c.h.b16 %v190
    %v637 = vunpack.c.l.b16 %v191
    %v638 = vunpack.c.h.b16 %v191
    %v639 = vunpack.c.l.b16 %v192
    %v640 = vunpack.c.h.b16 %v192
    %v641 = vunpack.c.l.b16 %v193
    %v642 = vunpack.c.h.b16 %v193
    %v643 = vunpack.c.l.b16 %v194
    %v644 = vunpack.c.h.b16 %v194
    %v645 = vunpack.c.l.b16 %v195
    %v646 = vunpack.c.h.b16 %v195
    %v647 = vunpack.c.l.b16 %v196
    %v648 = vunpack.c.h.b16 %v196
    %v649 = vunpack.c.l.b16 %v197
    %v650 = vunpack.c.h.b16 %v197
    %v651 = vunpack.c.l.b16 %v198
    %v652 = vunpack.c.h.b16 %v198
    %v653 = vunpack.c.l.b16 %v199
    %v654 = vunpack.c.h.b16 %v199
    %v655 = vunpack.c.l.b16 %v200
    %v656 = vunpack.c.h.b16 %v200
    %v657 = vunpack.c.l.b16 %v201
    %v658 = vunpack.c.h.b16 %v201
    %v659 = vunpack.c.l.b16 %v202
    %v660 = vunpack.c.h.b16 %v202
    %v661 = vunpack.c.l.b16 %v203
    %v662 = vunpack.c.h.b16 %v203
    %v663 = vunpack.c.l.b16 %v204
    %v664 = vunpack.c.h.b16 %v204
    %v665 = vunpack.c.l.b16 %v205
    %v666 = vunpack.c.h.b16 %v205
    %v667 = vunpack.c.l.b16 %v206
    %v668 = vunpack.c.h.b16 %v206
    %v669 = vunpack.c.l.b16 %v207
    %v670 = vunpack.c.h.b16 %v207
    %v671 = vunpack.c.l.b16 %v208
    %v672 = vunpack.c.h.b16 %v208
    %v673 = vunpack.c.l.b16 %v209
    %v674 = vunpack.c.h.b16 %v209
    %v675 = vunpack.c.l.b16 %v210
    %v676 = vunpack.c.h.b16 %v210
    %v677 = vunpack.c.l.b16 %v211
    %v678 = vunpack.c.h.b16 %v211
    %v679 = vunpack.c.l.b16 %v212
    %v680 = vunpack.c.h.b16 %v212
    %v681 = vunpack.c.l.b16 %v213
    %v682 = vunpack.c.h.b16 %v213
    %v683 = vunpack.c.l.b16 %v214
    %v684 = vunpack.c.h.b16 %v214
    %v685 = vunpack.c.l.b16 %v215
    %v686 = vunpack.c.h.b16 %v215
    %v687 = vunpack.c.l.b16 %v216
    %v688 = vunpack.c.h.b16 %v216
    %v689 = vunpack.c.l.b16 %v217
    %v690 = vunpack.c.h.b16 %v217
    %v691 = vunpack.c.l.b16 %v218
    %v692 = vunpack.c.h.b16 %v218
    %v693 = vunpack.c.l.b16 %v219
    %v694 = vunpack.c.h.b16 %v219
    %v695 = vunpack.c.l.b16 %v220
    %v696 = vunpack.c.h.b16 %v220
    %v697 = vunpack.c.l.b16 %v221
    %v698 = vunpack.c.h.b16 %v221
    %v699 = vunpack.c.l.b16 %v222
    %v700 = vunpack.c.h.b16 %v222
    %v701 = vunpack.c.l.b16 %v223
    %v702 = vunpack.c.h.b16 %v223
    %v703 = vunpack.c.l.b16 %v224
    %v704 = vunpack.c.h.b16 %v224
    %v705 = vunpack.c.l.b16 %v225
    %v706 = vunpack.c.h.b16 %v225
    %v707 = vunpack.c.l.b16 %v226
    %v708 = vunpack.c.h.b16 %v226
    %v709 = vunpack.c.l.b16 %v227
    %v710 = vunpack.c.h.b16 %v227
    %v711 = vunpack.c.l.b16 %v228
    %v712 = vunpack.c.h.b16 %v228
    %v713 = vunpack.c.l.b16 %v229
    %v714 = vunpack.c.h.b16 %v229
    %v715 = vunpack.c.l.b16 %v230
    %v716 = vunpack.c.h.b16 %v230
    %v717 = vunpack.c.l.b16 %v231
    %v718 = vunpack.c.h.b16 %v231
    %v719 = vunpack.c.l.b16 %v232
    %v720 = vunpack.c.h.b16 %v232
    %v721 = vunpack.c.l.b16 %v233
    %v722 = vunpack.c.h.b16 %v233
    %v723 = vunpack.c.l.b16 %v234
    %v724 = vunpack.c.h.b16 %v234
    %v725 = vunpack.c.l.b16 %v235
    %v726 = vunpack.c.h.b16 %v235
    %v727 = vunpack.c.l.b16 %v236
    %v728 = vunpack.c.h.b16 %v236
    %v729 = vunpack.c.l.b16 %v237
    %v730 = vunpack.c.h.b16 %v237
    %v731 = vunpack.c.l.b16 %v238
    %v732 = vunpack.c.h.b16 %v238
    %v733 = vunpack.c.l.b16 %v239
    %v734 = vunpack.c.h.b16 %v239
    %v735 = vunpack.c.l.b16 %v240
    %v736 = vunpack.c.h.b16 %v240
    %v737 = vunpack.c.l.b16 %v241
    %v738 = vunpack.c.h.b16 %v241
    %v739 = vunpack.c.l.b16 %v242
    %v740 = vunpack.c.h.b16 %v242
    %v741 = vunpack.c.l.b16 %v243
    %v742 = vunpack.c.h.b16 %v243
    %v743 = vunpack.c.l.b16 %v244
    %v744 = vunpack.c.h.b16 %v244
    %v745 = vunpack.c.l.b16 %v245
    %v746 = vunpack.c.h.b16 %v245
    %v747 = vunpack.c.l.b16 %v246
    %v748 = vunpack.c.h.b16 %v246
    %v749 = vunpack.c.l.b16 %v247
    %v750 = vunpack.c.h.b16 %v247
    %v751 = vunpack.c.l.b16 %v248
    %v752 = vunpack.c.h.b16 %v248
    %v753 = vunpack.c.l.b16 %v249
    %v754 = vunpack.c.h.b16 %v249
    %v755 = vunpack.c.l.b16 %v250
    %v756 = vunpack.c.h.b16 %v250
    %v757 = vunpack.c.l.b16 %v251
    %v758 = vunpack.c.h.b16 %v251
    %v759 = vunpack.c.l.b16 %v252
    %v760 = vunpack.c.h.b16 %v252
    %v761 = vunpack.c.l.b16 %v253
    %v762 = vunpack.c.h.b16 %v253
    %v763 = vunpack.c.l.b16 %v254
    %v764 = vunpack.c.h.b16 %v254
    %v765 = vunpack.c.l.b16 %v255
    %v766 = vunpack.c.h.b16 %v255
    %v767 = vunpack.c.l.b16 %v256
    %v768 = vunpack.c.h.b16 %v256
    %v769 = vunpack.c.l.b16 %v257
    %v770 = vunpack.c.h.b16 %v257
    %v771 = vunpack.c.l.b16 %v258
    %v772 = vunpack.c.h.b16 %v258
    %v773 = vunpack.c.l.b16 %v259
    %v774 = vunpack.c.h.b16 %v259
    %v775 = vunpack.c.l.b16 %v260
    %v776 = vunpack.c.h.b16 %v260
    %v777 = vunpack.c.l.b16 %v261
    %v778 = vunpack.c.h.b16 %v261
    %v779 = vunpack.c.l.b16 %v262
    %v780 = vunpack.c.h.b16 %v262
    %v781 = vunpack.c.l.b16 %v263
    %v782 = vunpack.c.h.b16 %v263
    %v783 = vunpack.c.l.b16 %v264
    %v784 = vunpack.c.h.b16 %v264
    %v785 = vunpack.c.l.b16 %v265
    %v786 = vunpack.c.h.b16 %v265
    %v787 = vunpack.c.l.b16 %v266
    %v788 = vunpack.c.h.b16 %v266
    %v789 = vunpack.c.l.b16 %v267
    %v790 = vunpack.c.h.b16 %v267
    %v791 = vunpack.c.l.b16 %v268
    %v792 = vunpack.c.h.b16 %v268
    %v793 = vunpack.c.l.b16 %v269
    %v794 = vunpack.c.h.b16 %v269
    %v795 = vunpack.c.l.b16 %v270
    %v796 = vunpack.c.h.b16 %v270
    %v797 = vunpack.c.l.b16 %v271
    %v798 = vunpack.c.h.b16 %v271
    %v799 = vunpack.c.l.b16 %v272
    %v800 = vunpack.c.h.b16 %v272
    %v801 = vunpack.c.l.b16 %v273
    %v802 = vunpack.c.h.b16 %v273
    %v803 = vunpack.c.l.b16 %v274
    %v804 = vunpack.c.h.b16 %v274
    %v805 = vunpack.c.l.b16 %v275
    %v806 = vunpack.c.h.b16 %v275
    %v807 = vunpack.c.l.b16 %v276
    %v808 = vunpack.c.h.b16 %v276
    %v809 = vunpack.c.l.b16 %v277
    %v810 = vunpack.c.h.b16 %v277
    %v811 = vunpack.c.l.b16 %v278
    %v812 = vunpack.c.h.b16 %v278
    %v813 = vunpack.c.l.b16 %v279
    %v814 = vunpack.c.h.b16 %v279
    %v815 = vunpack.c.l.b16 %v280
    %v816 = vunpack.c.h.b16 %v280
    %v817 = vunpack.c.l.b16 %v281
    %v818 = vunpack.c.h.b16 %v281
    %v819 = vunpack.c.l.b16 %v282
    %v820 = vunpack.c.h.b16 %v282
    %v821 = vunpack.c.l.b16 %v283
    %v822 = vunpack.c.h.b16 %v283
    %v823 = vunpack.c.l.b16 %v284
    %v824 = vunpack.c.h.b16 %v284
    %v825 = vunpack.c.l.b16 %v285
    %v826 = vunpack.c.h.b16 %v285
    %v827 = vunpack.c.l.b16 %v286
    %v828 = vunpack.c.h.b16 %v286
    %v829 = vunpack.c.l.b16 %v287
    %v830 = vunpack.c.h.b16 %v287
    %v831 = vunpack.c.l.b16 %v288
    %v832 = vunpack.c.h.b16 %v288
    %v833 = vunpack.c.l.b16 %v289
    %v834 = vunpack.c.h.b16 %v289
    %v835 = vunpack.c.l.b16 %v290
    %v836 = vunpack.c.h.b16 %v290
    %v837 = vunpack.c.l.b16 %v291
    %v838 = vunpack.c.h.b16 %v291
    %v839 = vunpack.c.l.b16 %v292
    %v840 = vunpack.c.h.b16 %v292
    %v841 = vunpack.c.l.b16 %v293
    %v842 = vunpack.c.h.b16 %v293
    %v843 = vunpack.c.l.b16 %v294
    %v844 = vunpack.c.h.b16 %v294
    %v845 = vunpack.c.l.b16 %v295
    %v846 = vunpack.c.h.b16 %v295
    %v847 = vunpack.c.l.b16 %v296
    %v848 = vunpack.c.h.b16 %v296
    %v849 = vunpack.c.l.b16 %v297
    %v850 = vunpack.c.h.b16 %v297
    %v851 = vunpack.c.l.b16 %v298
    %v852 = vunpack.c.h.b16 %v298
    %v853 = vunpack.c.l.b16 %v299
    %v854 = vunpack.c.h.b16 %v299
    %v855 = vunpack.c.l.b16 %v300
    %v856 = vunpack.c.h.b16 %v300
    %v857 = vunpack.c.l.b16 %v301
    %v858 = vunpack.c.h.b16 %v301
    %v859 = vunpack.c.l.b16 %v302
    %v860 = vunpack.c.h.b16 %v302
    %v861 = vunpack.c.l.b16 %v303
    %v862 = vunpack.c.h.b16 %v303
    %v863 = vunpack.c.l.b16 %v304
    %v864 = vunpack.c.h.b16 %v304
    %v865 = vunpack.c.l.b16 %v305
    %v866 = vunpack.c.h.b16 %v305
    %v867 = vunpack.c.l.b16 %v306
    %v868 = vunpack.c.h.b16 %v306
    %v869 = vunpack.c.l.b16 %v307
    %v870 = vunpack.c.h.b16 %v307
    %v871 = vunpack.c.l.b16 %v308
    %v872 = vunpack.c.h.b16 %v308
    %v873 = vunpack.c.l.b16 %v309
    %v874 = vunpack.c.h.b16 %v309
    %v875 = vunpack.c.l.b16 %v310
    %v876 = vunpack.c.h.b16 %v310
    %v877 = vunpack.c.l.b16 %v311
    %v878 = vunpack.c.h.b16 %v311
    %v879 = vunpack.c.l.b16 %v312
    %v880 = vunpack.c.h.b16 %v312
    %v881 = vunpack.c.l.b16 %v313
    %v882 = vunpack.c.h.b16 %v313
    %v883 = vunpack.c.l.b16 %v314
    %v884 = vunpack.c.h.b16 %v314
    %v885 = vunpack.c.l.b16 %v315
    %v886 = vunpack.c.h.b16 %v315
    %v887 = vunpack.c.l.b16 %v316
    %v888 = vunpack.c.h.b16 %v316
    %v889 = vunpack.c.l.b16 %v317
    %v890 = vunpack.c.h.b16 %v317
    %v891 = vunpack.c.l.b16 %v318
    %v892 = vunpack.c.h.b16 %v318
    %v893 = vunpack.c.l.b16 %v319
    %v894 = vunpack.c.h.b16 %v319
    %v895 = vunpack.c.l.b16 %v320
    %v896 = vunpack.c.h.b16 %v320
    %v897 = vunpack.c.l.b16 %v321
    %v898 = vunpack.c.h.b16 %v321
    %v899 = vunpack.c.l.b16 %v322
    %v900 = vunpack.c.h.b16 %v322
    %v901 = vunpack.c.l.b16 %v323
    %v902 = vunpack.c.h.b16 %v323
    %v903 = vunpack.c.l.b16 %v324
    %v904 = vunpack.c.h.b16 %v324
    %v905 = vunpack.c.l.b16 %v325
    %v906 = vunpack.c.h.b16 %v325
    %v907 = vunpack.c.l.b16 %v326
    %v908 = vunpack.c.h.b16 %v326
    %v909 = vunpack.c.l.b16 %v327
    %v910 = vunpack.c.h.b16 %v327
    %v911 = vunpack.c.l.b16 %v328
    %v912 = vunpack.c.h.b16 %v328
    %v913 = vunpack.c.l.b16 %v329
    %v914 = vunpack.c.h.b16 %v329
    %v915 = vunpack.c.l.b16 %v330
    %v916 = vunpack.c.h.b16 %v330
    %v917 = vunpack.c.l.b16 %v331
    %v918 = vunpack.c.h.b16 %v331
    %v919 = vunpack.c.l.b16 %v332
    %v920 = vunpack.c.h.b16 %v332
    %v921 = vpack.c.b16 %v533, %v529
    %v922 = vpack.c.b16 %v534, %v530
    %v923 = vpack.c.b16 %v535, %v531
    %v924 = vpack.c.b16 %v536, %v532
    %v925 = vpack.c.b16 %v541, %v537
    %v926 = vpack.c.b16 %v542, %v538
    %v927 = vpack.c.b16 %v543, %v539
    %v928 = vpack.c.b16 %v544, %v540
    %v929 = vpack.c.b16 %v549, %v545
    %v930 = vpack.c.b16 %v550, %v546
    %v931 = vpack.c.b16 %v551, %v547
    %v932 = vpack.c.b16 %v552, %v548
    %v933 = vpack.c.b16 %v557, %v553
    %v934 = vpack.c.b16 %v558, %v554
    %v935 = vpack.c.b16 %v559, %v555
    %v936 = vpack.c.b16 %v560, %v556
    %v937 = vpack.c.b16 %v565, %v561
    %v938 = vpack.c.b16 %v566, %v562
    %v939 = vpack.c.b16 %v567, %v563
    %v940 = vpack.c.b16 %v568, %v564
    %v941 = vpack.c.b16 %v573, %v569
    %v942 = vpack.c.b16 %v574, %v570
    %v943 = vpack.c.b16 %v575, %v571
    %v944 = vpack.c.b16 %v576, %v572
    %v945 = vpack.c.b16 %v581, %v577
    %v946 = vpack.c.b16 %v582, %v578
    %v947 = vpack.c.b16 %v583, %v579
    %v948 = vpack.c.b16 %v584, %v580
    %v949 = vpack.c.b16 %v589, %v585
    %v950 = vpack.c.b16 %v590, %v586
    %v951 = vpack.c.b16 %v591, %v587
    %v952 = vpack.c.b16 %v592, %v588
    %v953 = vpack.c.b16 %v597, %v593
    %v954 = vpack.c.b16 %v598, %v594
    %v955 = vpack.c.b16 %v599, %v595
    %v956 = vpack.c.b16 %v600, %v596
    %v957 = vpack.c.b16 %v605, %v601
    %v958 = vpack.c.b16 %v606, %v602
    %v959 = vpack.c.b16 %v607, %v603
    %v960 = vpack.c.b16 %v608, %v604
    %v961 = vpack.c.b16 %v613, %v609
    %v962 = vpack.c.b16 %v614, %v610
    %v963 = vpack.c.b16 %v615, %v611
    %v964 = vpack.c.b16 %v616, %v612
    %v965 = vpack.c.b16 %v621, %v617
    %v966 = vpack.c.b16 %v622, %v618
    %v967 = vpack.c.b16 %v623, %v619
    %v968 = vpack.c.b16 %v624, %v620
    %v969 = vpack.c.b16 %v629, %v625
    %v970 = vpack.c.b16 %v630, %v626
    %v971 = vpack.c.b16 %v631, %v627
    %v972 = vpack.c.b16 %v632, %v628
    %v973 = vpack.c.b16 %v637, %v633
    %v974 = vpack.c.b16 %v638, %v634
    %v975 = vpack.c.b16 %v639, %v635
    %v976 = vpack.c.b16 %v640, %v636
    %v977 = vpack.c.b16 %v645, %v641
    %v978 = vpack.c.b16 %v646, %v642
    %v979 = vpack.c.b16 %v647, %v643
    %v980 = vpack.c.b16 %v648, %v644
    %v981 = vpack.c.b16 %v653, %v649
    %v982 = vpack.c.b16 %v654, %v650
    %v983 = vpack.c.b16 %v655, %v651
    %v984 = vpack.c.b16 %v656, %v652
    %v985 = vpack.c.b16 %v661, %v657
    %v986 = vpack.c.b16 %v662, %v658
    %v987 = vpack.c.b16 %v663, %v659
    %v988 = vpack.c.b16 %v664, %v660
    %v989 = vpack.c.b16 %v669, %v665
    %v990 = vpack.c.b16 %v670, %v666
    %v991 = vpack.c.b16 %v671, %v667
    %v992 = vpack.c.b16 %v672, %v668
    %v993 = vpack.c.b16 %v677, %v673
    %v994 = vpack.c.b16 %v678, %v674
    %v995 = vpack.c.b16 %v679, %v675
    %v996 = vpack.c.b16 %v680, %v676
    %v997 = vpack.c.b16 %v685, %v681
    %v998 = vpack.c.b16 %v686, %v682
    %v999 = vpack.c.b16 %v687, %v683
    %v1000 = vpack.c.b16 %v688, %v684
    %v1001 = vpack.c.b16 %v693, %v689
    %v1002 = vpack.c.b16 %v694, %v690
    %v1003 = vpack.c.b16 %v695, %v691
    %v1004 = vpack.c.b16 %v696, %v692
    %v1005 = vpack.c.b16 %v701, %v697
    %v1006 = vpack.c.b16 %v702, %v698
    %v1007 = vpack.c.b16 %v703, %v699
    %v1008 = vpack.c.b16 %v704, %v700
    %v1009 = vpack.c.b16 %v709, %v705
    %v1010 = vpack.c.b16 %v710, %v706
    %v1011 = vpack.c.b16 %v711, %v707
    %v1012 = vpack.c.b16 %v712, %v708
    %v1013 = vpack.c.b16 %v717, %v713
    %v1014 = vpack.c.b16 %v718, %v714
    %v1015 = vpack.c.b16 %v719, %v715
    %v1016 = vpack.c.b16 %v720, %v716
    %v1017 = vpack.c.b16 %v725, %v721
    %v1018 = vpack.c.b16 %v726, %v722
    %v1019 = vpack.c.b16 %v727, %v723
    %v1020 = vpack.c.b16 %v728, %v724
    %v1021 = vpack.c.b16 %v733, %v729
    %v1022 = vpack.c.b16 %v734, %v730
    %v1023 = vpack.c.b16 %v735, %v731
    %v1024 = vpack.c.b16 %v736, %v732
    %v1025 = vpack.c.b16 %v741, %v737
    %v1026 = vpack.c.b16 %v742, %v738
    %v1027 = vpack.c.b16 %v743, %v739
    %v1028 = vpack.c.b16 %v744, %v740
    %v1029 = vpack.c.b16 %v749, %v745
    %v1030 = vpack.c.b16 %v750, %v746
    %v1031 = vpack.c.b16 %v751, %v747
    %v1032 = vpack.c.b16 %v752, %v748
    %v1033 = vpack.c.b16 %v757, %v753
    %v1034 = vpack.c.b16 %v758, %v754
    %v1035 = vpack.c.b16 %v759, %v755
    %v1036 = vpack.c.b16 %v760, %v756
    %v1037 = vpack.c.b16 %v765, %v761
    %v1038 = vpack.c.b16 %v766, %v762
    %v1039 = vpack.c.b16 %v767, %v763
    %v1040 = vpack.c.b16 %v768, %v764
    %v1041 = vpack.c.b16 %v773, %v769
    %v1042 = vpack.c.b16 %v774, %v770
    %v1043 = vpack.c.b16 %v775, %v771
    %v1044 = vpack.c.b16 %v776, %v772
    %v1045 = vpack.c.b16 %v781, %v777
    %v1046 = vpack.c.b16 %v782, %v778
    %v1047 = vpack.c.b16 %v783, %v779
    %v1048 = vpack.c.b16 %v784, %v780
    %v1049 = vpack.c.b16 %v789, %v785
    %v1050 = vpack.c.b16 %v790, %v786
    %v1051 = vpack.c.b16 %v791, %v787
    %v1052 = vpack.c.b16 %v792, %v788
    %v1053 = vpack.c.b16 %v797, %v793
    %v1054 = vpack.c.b16 %v798, %v794
    %v1055 = vpack.c.b16 %v799, %v795
    %v1056 = vpack.c.b16 %v800, %v796
    %v1057 = vpack.c.b16 %v805, %v801
    %v1058 = vpack.c.b16 %v806, %v802
    %v1059 = vpack.c.b16 %v807, %v803
    %v1060 = vpack.c.b16 %v808, %v804
    %v1061 = vpack.c.b16 %v813, %v809
    %v1062 = vpack.c.b16 %v814, %v810
    %v1063 = vpack.c.b16 %v815, %v811
    %v1064 = vpack.c.b16 %v816, %v812
    %v1065 = vpack.c.b16 %v821, %v817
    %v1066 = vpack.c.b16 %v822, %v818
    %v1067 = vpack.c.b16 %v823, %v819
    %v1068 = vpack.c.b16 %v824, %v820
    %v1069 = vpack.c.b16 %v829, %v825
    %v1070 = vpack.c.b16 %v830, %v826
    %v1071 = vpack.c.b16 %v831, %v827
    %v1072 = vpack.c.b16 %v832, %v828
    %v1073 = vpack.c.b16 %v837, %v833
    %v1074 = vpack.c.b16 %v838, %v834
    %v1075 = vpack.c.b16 %v839, %v835
    %v1076 = vpack.c.b16 %v840, %v836
    %v1077 = vpack.c.b16 %v845, %v841
    %v1078 = vpack.c.b16 %v846, %v842
    %v1079 = vpack.c.b16 %v847, %v843
    %v1080 = vpack.c.b16 %v848, %v844
    %v1081 = vpack.c.b16 %v853, %v849
    %v1082 = vpack.c.b16 %v854, %v850
    %v1083 = vpack.c.b16 %v855, %v851
    %v1084 = vpack.c.b16 %v856, %v852
    %v1085 = vpack.c.b16 %v861, %v857
    %v1086 = vpack.c.b16 %v862, %v858
    %v1087 = vpack.c.b16 %v863, %v859
    %v1088 = vpack.c.b16 %v864, %v860
    %v1089 = vpack.c.b16 %v869, %v865
    %v1090 = vpack.c.b16 %v870, %v866
    %v1091 = vpack.c.b16 %v871, %v867
    %v1092 = vpack.c.b16 %v872, %v868
    %v1093 = vpack.c.b16 %v877, %v873
    %v1094 = vpack.c.b16 %v878, %v874
    %v1095 = vpack.c.b16 %v879, %v875
    %v1096 = vpack.c.b16 %v880, %v876
    %v1097 = vpack.c.b16 %v885, %v881
    %v1098 = vpack.c.b16 %v886, %v882
    %v1099 = vpack.c.b16 %v887, %v883
    %v1100 = vpack.c.b16 %v888, %v884
    %v1101 = vpack.c.b16 %v893, %v889
    %v1102 = vpack.c.b16 %v894, %v890
    %v1103 = vpack.c.b16 %v895, %v891
    %v1104 = vpack.c.b16 %v896, %v892
    %v1105 = vpack.c.b16 %v901, %v897
    %v1106 = vpack.c.b16 %v902, %v898
    %v1107 = vpack.c.b16 %v903, %v899
    %v1108 = vpack.c.b16 %v904, %v900
    %v1109 = vpack.c.b16 %v909, %v905
    %v1110 = vpack.c.b16 %v910, %v906
    %v1111 = vpack.c.b16 %v911, %v907
    %v1112 = vpack.c.b16 %v912, %v908
    %v1113 = vpack.c.b16 %v917, %v913
    %v1114 = vpack.c.b16 %v918, %v914
    %v1115 = vpack.c.b16 %v919, %v915
    %v1116 = vpack.c.b16 %v920, %v916
    %vm1313 = vcmask 130048
    %v1315 = vsel %vm1313, %v129, 0
    %v1318 = vsel %vm1313, %v136, 0
    %1320 = vmatpush.bf16.msra.mxu0 %v949
    %1321 = vmatpush.bf16.msra.mxu0 %v945
    %1322 = vmatpush.bf16.msra.mxu0 %v941
    %1323 = vmatpush.bf16.msra.mxu0 %v937
    %1324 = vmatpush.bf16.msra.mxu0 %v933
    %1325 = vmatpush.bf16.msra.mxu0 %v929
    %1326 = vmatpush.bf16.msra.mxu0 %v925
    %1327 = vmatpush.bf16.msra.mxu0 %v921
    %1328 = vmatmul.bf16.gmra.mxu0 %v123
    %v1329 = vpop.f32.mrf.mxu0
    %v1330 = vadd.f32 0.0, %v1329
    %v1331 = vpop.f32.mrf.mxu0
    %v1332 = vadd.f32 0.0, %v1331
    %1333 = vmatmul.bf16.gmra.mxu0 %v130
    %v1334 = vpop.f32.mrf.mxu0
    %v1335 = vadd.f32 0.0, %v1334
    %v1336 = vpop.f32.mrf.mxu0
    %v1337 = vadd.f32 0.0, %v1336
    %1338 = vdwg.mxu0
    %1339 = vmatpush.bf16.msra.mxu0 %v981
    %1340 = vmatpush.bf16.msra.mxu0 %v977
    %1341 = vmatpush.bf16.msra.mxu0 %v973
    %1342 = vmatpush.bf16.msra.mxu0 %v969
    %1343 = vmatpush.bf16.msra.mxu0 %v965
    %1344 = vmatpush.bf16.msra.mxu0 %v961
    %1345 = vmatpush.bf16.msra.mxu0 %v957
    %1346 = vmatpush.bf16.msra.mxu0 %v953
    %1347 = vmatmul.bf16.gmra.mxu0 %v124
    %v1348 = vpop.f32.mrf.mxu0
    %v1349 = vadd.f32 %v1330, %v1348
    %v1350 = vpop.f32.mrf.mxu0
    %v1351 = vadd.f32 %v1332, %v1350
    %1352 = vmatmul.bf16.gmra.mxu0 %v131
    %v1353 = vpop.f32.mrf.mxu0
    %v1354 = vadd.f32 %v1335, %v1353
    %v1355 = vpop.f32.mrf.mxu0
    %v1356 = vadd.f32 %v1337, %v1355
    %1357 = vdwg.mxu0
    %1358 = vmatpush.bf16.msra.mxu0 %v1013
    %1359 = vmatpush.bf16.msra.mxu0 %v1009
    %1360 = vmatpush.bf16.msra.mxu0 %v1005
    %1361 = vmatpush.bf16.msra.mxu0 %v1001
    %1362 = vmatpush.bf16.msra.mxu0 %v997
    %1363 = vmatpush.bf16.msra.mxu0 %v993
    %1364 = vmatpush.bf16.msra.mxu0 %v989
    %1365 = vmatpush.bf16.msra.mxu0 %v985
    %1366 = vmatmul.bf16.gmra.mxu0 %v125
    %v1367 = vpop.f32.mrf.mxu0
    %v1368 = vadd.f32 %v1349, %v1367
    %v1369 = vpop.f32.mrf.mxu0
    %v1370 = vadd.f32 %v1351, %v1369
    %1371 = vmatmul.bf16.gmra.mxu0 %v132
    %v1372 = vpop.f32.mrf.mxu0
    %v1373 = vadd.f32 %v1354, %v1372
    %v1374 = vpop.f32.mrf.mxu0
    %v1375 = vadd.f32 %v1356, %v1374
    %1376 = vdwg.mxu0
    %1377 = vmatpush.bf16.msra.mxu0 %v1045
    %1378 = vmatpush.bf16.msra.mxu0 %v1041
    %1379 = vmatpush.bf16.msra.mxu0 %v1037
    %1380 = vmatpush.bf16.msra.mxu0 %v1033
    %1381 = vmatpush.bf16.msra.mxu0 %v1029
    %1382 = vmatpush.bf16.msra.mxu0 %v1025
    %1383 = vmatpush.bf16.msra.mxu0 %v1021
    %1384 = vmatpush.bf16.msra.mxu0 %v1017
    %1385 = vmatmul.bf16.gmra.mxu0 %v126
    %v1386 = vpop.f32.mrf.mxu0
    %v1387 = vadd.f32 %v1368, %v1386
    %v1388 = vpop.f32.mrf.mxu0
    %v1389 = vadd.f32 %v1370, %v1388
    %1390 = vmatmul.bf16.gmra.mxu0 %v133
    %v1391 = vpop.f32.mrf.mxu0
    %v1392 = vadd.f32 %v1373, %v1391
    %v1393 = vpop.f32.mrf.mxu0
    %v1394 = vadd.f32 %v1375, %v1393
    %1395 = vdwg.mxu0
    %1396 = vmatpush.bf16.msra.mxu0 %v1077
    %1397 = vmatpush.bf16.msra.mxu0 %v1073
    %1398 = vmatpush.bf16.msra.mxu0 %v1069
    %1399 = vmatpush.bf16.msra.mxu0 %v1065
    %1400 = vmatpush.bf16.msra.mxu0 %v1061
    %1401 = vmatpush.bf16.msra.mxu0 %v1057
    %1402 = vmatpush.bf16.msra.mxu0 %v1053
    %1403 = vmatpush.bf16.msra.mxu0 %v1049
    %1404 = vmatmul.bf16.gmra.mxu0 %v127
    %v1405 = vpop.f32.mrf.mxu0
    %v1406 = vadd.f32 %v1387, %v1405
    %v1407 = vpop.f32.mrf.mxu0
    %v1408 = vadd.f32 %v1389, %v1407
    %1409 = vmatmul.bf16.gmra.mxu0 %v134
    %v1410 = vpop.f32.mrf.mxu0
    %v1411 = vadd.f32 %v1392, %v1410
    %v1412 = vpop.f32.mrf.mxu0
    %v1413 = vadd.f32 %v1394, %v1412
    %1414 = vdwg.mxu0
    %1415 = vmatpush.bf16.msra.mxu0 %v1109
    %1416 = vmatpush.bf16.msra.mxu0 %v1105
    %1417 = vmatpush.bf16.msra.mxu0 %v1101
    %1418 = vmatpush.bf16.msra.mxu0 %v1097
    %1419 = vmatpush.bf16.msra.mxu0 %v1093
    %1420 = vmatpush.bf16.msra.mxu0 %v1089
    %1421 = vmatpush.bf16.msra.mxu0 %v1085
    %1422 = vmatpush.bf16.msra.mxu0 %v1081
    %1423 = vmatmul.bf16.gmra.mxu0 %v128
    %v1424 = vpop.f32.mrf.mxu0
    %v1425 = vadd.f32 %v1406, %v1424
    %v1426 = vpop.f32.mrf.mxu0
    %v1427 = vadd.f32 %v1408, %v1426
    %1428 = vmatmul.bf16.gmra.mxu0 %v135
    %v1429 = vpop.f32.mrf.mxu0
    %v1430 = vadd.f32 %v1411, %v1429
    %v1431 = vpop.f32.mrf.mxu0
    %v1432 = vadd.f32 %v1413, %v1431
    %1433 = vdwg.mxu0
    %1434 = vmatpush.bf16.msra.mxu0 0
    %1435 = vmatpush.bf16.msra.mxu0 0
    %1436 = vmatpush.bf16.msra.mxu0 0
    %1437 = vmatpush.bf16.msra.mxu0 0
    %1438 = vmatpush.bf16.msra.mxu0 0
    %1439 = vmatpush.bf16.msra.mxu0 0
    %1440 = vmatpush.bf16.msra.mxu0 0
    %1441 = vmatpush.bf16.msra.mxu0 %v1113
    %1442 = vmatmul.bf16.gmra.mxu0 %v1315
    %v1443 = vpop.f32.mrf.mxu0
    %v1444 = vadd.f32 %v1425, %v1443
    %v1445 = vpop.f32.mrf.mxu0
    %v1446 = vadd.f32 %v1427, %v1445
    %1447 = vmatmul.bf16.gmra.mxu0 %v1318
    %v1448 = vpop.f32.mrf.mxu0
    %v1449 = vadd.f32 %v1430, %v1448
    %v1450 = vpop.f32.mrf.mxu0
    %v1451 = vadd.f32 %v1432, %v1450
    %1452 = vdwg.mxu0
    %1453 = vmatpush.bf16.msra.mxu0 %v950
    %1454 = vmatpush.bf16.msra.mxu0 %v946
    %1455 = vmatpush.bf16.msra.mxu0 %v942
    %1456 = vmatpush.bf16.msra.mxu0 %v938
    %1457 = vmatpush.bf16.msra.mxu0 %v934
    %1458 = vmatpush.bf16.msra.mxu0 %v930
    %1459 = vmatpush.bf16.msra.mxu0 %v926
    %1460 = vmatpush.bf16.msra.mxu0 %v922
    %1461 = vmatmul.bf16.gmra.mxu0 %v123
    %v1462 = vpop.f32.mrf.mxu0
    %v1463 = vadd.f32 0.0, %v1462
    %v1464 = vpop.f32.mrf.mxu0
    %v1465 = vadd.f32 0.0, %v1464
    %1466 = vmatmul.bf16.gmra.mxu0 %v130
    %v1467 = vpop.f32.mrf.mxu0
    %v1468 = vadd.f32 0.0, %v1467
    %v1469 = vpop.f32.mrf.mxu0
    %v1470 = vadd.f32 0.0, %v1469
    %1471 = vdwg.mxu0
    %1472 = vmatpush.bf16.msra.mxu0 %v982
    %1473 = vmatpush.bf16.msra.mxu0 %v978
    %1474 = vmatpush.bf16.msra.mxu0 %v974
    %1475 = vmatpush.bf16.msra.mxu0 %v970
    %1476 = vmatpush.bf16.msra.mxu0 %v966
    %1477 = vmatpush.bf16.msra.mxu0 %v962
    %1478 = vmatpush.bf16.msra.mxu0 %v958
    %1479 = vmatpush.bf16.msra.mxu0 %v954
    %1480 = vmatmul.bf16.gmra.mxu0 %v124
    %v1481 = vpop.f32.mrf.mxu0
    %v1482 = vadd.f32 %v1463, %v1481
    %v1483 = vpop.f32.mrf.mxu0
    %v1484 = vadd.f32 %v1465, %v1483
    %1485 = vmatmul.bf16.gmra.mxu0 %v131
    %v1486 = vpop.f32.mrf.mxu0
    %v1487 = vadd.f32 %v1468, %v1486
    %v1488 = vpop.f32.mrf.mxu0
    %v1489 = vadd.f32 %v1470, %v1488
    %1490 = vdwg.mxu0
    %1491 = vmatpush.bf16.msra.mxu0 %v1014
    %1492 = vmatpush.bf16.msra.mxu0 %v1010
    %1493 = vmatpush.bf16.msra.mxu0 %v1006
    %1494 = vmatpush.bf16.msra.mxu0 %v1002
    %1495 = vmatpush.bf16.msra.mxu0 %v998
    %1496 = vmatpush.bf16.msra.mxu0 %v994
    %1497 = vmatpush.bf16.msra.mxu0 %v990
    %1498 = vmatpush.bf16.msra.mxu0 %v986
    %1499 = vmatmul.bf16.gmra.mxu0 %v125
    %v1500 = vpop.f32.mrf.mxu0
    %v1501 = vadd.f32 %v1482, %v1500
    %v1502 = vpop.f32.mrf.mxu0
    %v1503 = vadd.f32 %v1484, %v1502
    %1504 = vmatmul.bf16.gmra.mxu0 %v132
    %v1505 = vpop.f32.mrf.mxu0
    %v1506 = vadd.f32 %v1487, %v1505
    %v1507 = vpop.f32.mrf.mxu0
    %v1508 = vadd.f32 %v1489, %v1507
    %1509 = vdwg.mxu0
    %1510 = vmatpush.bf16.msra.mxu0 %v1046
    %1511 = vmatpush.bf16.msra.mxu0 %v1042
    %1512 = vmatpush.bf16.msra.mxu0 %v1038
    %1513 = vmatpush.bf16.msra.mxu0 %v1034
    %1514 = vmatpush.bf16.msra.mxu0 %v1030
    %1515 = vmatpush.bf16.msra.mxu0 %v1026
    %1516 = vmatpush.bf16.msra.mxu0 %v1022
    %1517 = vmatpush.bf16.msra.mxu0 %v1018
    %1518 = vmatmul.bf16.gmra.mxu0 %v126
    %v1519 = vpop.f32.mrf.mxu0
    %v1520 = vadd.f32 %v1501, %v1519
    %v1521 = vpop.f32.mrf.mxu0
    %v1522 = vadd.f32 %v1503, %v1521
    %1523 = vmatmul.bf16.gmra.mxu0 %v133
    %v1524 = vpop.f32.mrf.mxu0
    %v1525 = vadd.f32 %v1506, %v1524
    %v1526 = vpop.f32.mrf.mxu0
    %v1527 = vadd.f32 %v1508, %v1526
    %1528 = vdwg.mxu0
    %1529 = vmatpush.bf16.msra.mxu0 %v1078
    %1530 = vmatpush.bf16.msra.mxu0 %v1074
    %1531 = vmatpush.bf16.msra.mxu0 %v1070
    %1532 = vmatpush.bf16.msra.mxu0 %v1066
    %1533 = vmatpush.bf16.msra.mxu0 %v1062
    %1534 = vmatpush.bf16.msra.mxu0 %v1058
    %1535 = vmatpush.bf16.msra.mxu0 %v1054
    %1536 = vmatpush.bf16.msra.mxu0 %v1050
    %1537 = vmatmul.bf16.gmra.mxu0 %v127
    %v1538 = vpop.f32.mrf.mxu0
    %v1539 = vadd.f32 %v1520, %v1538
    %v1540 = vpop.f32.mrf.mxu0
    %v1541 = vadd.f32 %v1522, %v1540
    %1542 = vmatmul.bf16.gmra.mxu0 %v134
    %v1543 = vpop.f32.mrf.mxu0
    %v1544 = vadd.f32 %v1525, %v1543
    %v1545 = vpop.f32.mrf.mxu0
    %v1546 = vadd.f32 %v1527, %v1545
    %1547 = vdwg.mxu0
    %1548 = vmatpush.bf16.msra.mxu0 %v1110
    %1549 = vmatpush.bf16.msra.mxu0 %v1106
    %1550 = vmatpush.bf16.msra.mxu0 %v1102
    %1551 = vmatpush.bf16.msra.mxu0 %v1098
    %1552 = vmatpush.bf16.msra.mxu0 %v1094
    %1553 = vmatpush.bf16.msra.mxu0 %v1090
    %1554 = vmatpush.bf16.msra.mxu0 %v1086
    %1555 = vmatpush.bf16.msra.mxu0 %v1082
    %1556 = vmatmul.bf16.gmra.mxu0 %v128
    %v1557 = vpop.f32.mrf.mxu0
    %v1558 = vadd.f32 %v1539, %v1557
    %v1559 = vpop.f32.mrf.mxu0
    %v1560 = vadd.f32 %v1541, %v1559
    %1561 = vmatmul.bf16.gmra.mxu0 %v135
    %v1562 = vpop.f32.mrf.mxu0
    %v1563 = vadd.f32 %v1544, %v1562
    %v1564 = vpop.f32.mrf.mxu0
    %v1565 = vadd.f32 %v1546, %v1564
    %1566 = vdwg.mxu0
    %1567 = vmatpush.bf16.msra.mxu0 0
    %1568 = vmatpush.bf16.msra.mxu0 0
    %1569 = vmatpush.bf16.msra.mxu0 0
    %1570 = vmatpush.bf16.msra.mxu0 0
    %1571 = vmatpush.bf16.msra.mxu0 0
    %1572 = vmatpush.bf16.msra.mxu0 0
    %1573 = vmatpush.bf16.msra.mxu0 0
    %1574 = vmatpush.bf16.msra.mxu0 %v1114
    %1575 = vmatmul.bf16.gmra.mxu0 %v1315
    %v1576 = vpop.f32.mrf.mxu0
    %v1577 = vadd.f32 %v1558, %v1576
    %v1578 = vpop.f32.mrf.mxu0
    %v1579 = vadd.f32 %v1560, %v1578
    %1580 = vmatmul.bf16.gmra.mxu0 %v1318
    %v1581 = vpop.f32.mrf.mxu0
    %v1582 = vadd.f32 %v1563, %v1581
    %v1583 = vpop.f32.mrf.mxu0
    %v1584 = vadd.f32 %v1565, %v1583
    %1585 = vdwg.mxu0
    %1586 = vmatpush.bf16.msra.mxu0 %v951
    %1587 = vmatpush.bf16.msra.mxu0 %v947
    %1588 = vmatpush.bf16.msra.mxu0 %v943
    %1589 = vmatpush.bf16.msra.mxu0 %v939
    %1590 = vmatpush.bf16.msra.mxu0 %v935
    %1591 = vmatpush.bf16.msra.mxu0 %v931
    %1592 = vmatpush.bf16.msra.mxu0 %v927
    %1593 = vmatpush.bf16.msra.mxu0 %v923
    %1594 = vmatmul.bf16.gmra.mxu0 %v123
    %v1595 = vpop.f32.mrf.mxu0
    %v1596 = vadd.f32 0.0, %v1595
    %v1597 = vpop.f32.mrf.mxu0
    %v1598 = vadd.f32 0.0, %v1597
    %1599 = vmatmul.bf16.gmra.mxu0 %v130
    %v1600 = vpop.f32.mrf.mxu0
    %v1601 = vadd.f32 0.0, %v1600
    %v1602 = vpop.f32.mrf.mxu0
    %v1603 = vadd.f32 0.0, %v1602
    %1604 = vdwg.mxu0
    %1605 = vmatpush.bf16.msra.mxu0 %v983
    %1606 = vmatpush.bf16.msra.mxu0 %v979
    %1607 = vmatpush.bf16.msra.mxu0 %v975
    %1608 = vmatpush.bf16.msra.mxu0 %v971
    %1609 = vmatpush.bf16.msra.mxu0 %v967
    %1610 = vmatpush.bf16.msra.mxu0 %v963
    %1611 = vmatpush.bf16.msra.mxu0 %v959
    %1612 = vmatpush.bf16.msra.mxu0 %v955
    %1613 = vmatmul.bf16.gmra.mxu0 %v124
    %v1614 = vpop.f32.mrf.mxu0
    %v1615 = vadd.f32 %v1596, %v1614
    %v1616 = vpop.f32.mrf.mxu0
    %v1617 = vadd.f32 %v1598, %v1616
    %1618 = vmatmul.bf16.gmra.mxu0 %v131
    %v1619 = vpop.f32.mrf.mxu0
    %v1620 = vadd.f32 %v1601, %v1619
    %v1621 = vpop.f32.mrf.mxu0
    %v1622 = vadd.f32 %v1603, %v1621
    %1623 = vdwg.mxu0
    %1624 = vmatpush.bf16.msra.mxu0 %v1015
    %1625 = vmatpush.bf16.msra.mxu0 %v1011
    %1626 = vmatpush.bf16.msra.mxu0 %v1007
    %1627 = vmatpush.bf16.msra.mxu0 %v1003
    %1628 = vmatpush.bf16.msra.mxu0 %v999
    %1629 = vmatpush.bf16.msra.mxu0 %v995
    %1630 = vmatpush.bf16.msra.mxu0 %v991
    %1631 = vmatpush.bf16.msra.mxu0 %v987
    %1632 = vmatmul.bf16.gmra.mxu0 %v125
    %v1633 = vpop.f32.mrf.mxu0
    %v1634 = vadd.f32 %v1615, %v1633
    %v1635 = vpop.f32.mrf.mxu0
    %v1636 = vadd.f32 %v1617, %v1635
    %1637 = vmatmul.bf16.gmra.mxu0 %v132
    %v1638 = vpop.f32.mrf.mxu0
    %v1639 = vadd.f32 %v1620, %v1638
    %v1640 = vpop.f32.mrf.mxu0
    %v1641 = vadd.f32 %v1622, %v1640
    %1642 = vdwg.mxu0
    %1643 = vmatpush.bf16.msra.mxu0 %v1047
    %1644 = vmatpush.bf16.msra.mxu0 %v1043
    %1645 = vmatpush.bf16.msra.mxu0 %v1039
    %1646 = vmatpush.bf16.msra.mxu0 %v1035
    %1647 = vmatpush.bf16.msra.mxu0 %v1031
    %1648 = vmatpush.bf16.msra.mxu0 %v1027
    %1649 = vmatpush.bf16.msra.mxu0 %v1023
    %1650 = vmatpush.bf16.msra.mxu0 %v1019
    %1651 = vmatmul.bf16.gmra.mxu0 %v126
    %v1652 = vpop.f32.mrf.mxu0
    %v1653 = vadd.f32 %v1634, %v1652
    %v1654 = vpop.f32.mrf.mxu0
    %v1655 = vadd.f32 %v1636, %v1654
    %1656 = vmatmul.bf16.gmra.mxu0 %v133
    %v1657 = vpop.f32.mrf.mxu0
    %v1658 = vadd.f32 %v1639, %v1657
    %v1659 = vpop.f32.mrf.mxu0
    %v1660 = vadd.f32 %v1641, %v1659
    %1661 = vdwg.mxu0
    %1662 = vmatpush.bf16.msra.mxu0 %v1079
    %1663 = vmatpush.bf16.msra.mxu0 %v1075
    %1664 = vmatpush.bf16.msra.mxu0 %v1071
    %1665 = vmatpush.bf16.msra.mxu0 %v1067
    %1666 = vmatpush.bf16.msra.mxu0 %v1063
    %1667 = vmatpush.bf16.msra.mxu0 %v1059
    %1668 = vmatpush.bf16.msra.mxu0 %v1055
    %1669 = vmatpush.bf16.msra.mxu0 %v1051
    %1670 = vmatmul.bf16.gmra.mxu0 %v127
    %v1671 = vpop.f32.mrf.mxu0
    %v1672 = vadd.f32 %v1653, %v1671
    %v1673 = vpop.f32.mrf.mxu0
    %v1674 = vadd.f32 %v1655, %v1673
    %1675 = vmatmul.bf16.gmra.mxu0 %v134
    %v1676 = vpop.f32.mrf.mxu0
    %v1677 = vadd.f32 %v1658, %v1676
    %v1678 = vpop.f32.mrf.mxu0
    %v1679 = vadd.f32 %v1660, %v1678
    %1680 = vdwg.mxu0
    %1681 = vmatpush.bf16.msra.mxu0 %v1111
    %1682 = vmatpush.bf16.msra.mxu0 %v1107
    %1683 = vmatpush.bf16.msra.mxu0 %v1103
    %1684 = vmatpush.bf16.msra.mxu0 %v1099
    %1685 = vmatpush.bf16.msra.mxu0 %v1095
    %1686 = vmatpush.bf16.msra.mxu0 %v1091
    %1687 = vmatpush.bf16.msra.mxu0 %v1087
    %1688 = vmatpush.bf16.msra.mxu0 %v1083
    %1689 = vmatmul.bf16.gmra.mxu0 %v128
    %v1690 = vpop.f32.mrf.mxu0
    %v1691 = vadd.f32 %v1672, %v1690
    %v1692 = vpop.f32.mrf.mxu0
    %v1693 = vadd.f32 %v1674, %v1692
    %1694 = vmatmul.bf16.gmra.mxu0 %v135
    %v1695 = vpop.f32.mrf.mxu0
    %v1696 = vadd.f32 %v1677, %v1695
    %v1697 = vpop.f32.mrf.mxu0
    %v1698 = vadd.f32 %v1679, %v1697
    %1699 = vdwg.mxu0
    %1700 = vmatpush.bf16.msra.mxu0 0
    %1701 = vmatpush.bf16.msra.mxu0 0
    %1702 = vmatpush.bf16.msra.mxu0 0
    %1703 = vmatpush.bf16.msra.mxu0 0
    %1704 = vmatpush.bf16.msra.mxu0 0
    %1705 = vmatpush.bf16.msra.mxu0 0
    %1706 = vmatpush.bf16.msra.mxu0 0
    %1707 = vmatpush.bf16.msra.mxu0 %v1115
    %1708 = vmatmul.bf16.gmra.mxu0 %v1315
    %v1709 = vpop.f32.mrf.mxu0
    %v1710 = vadd.f32 %v1691, %v1709
    %v1711 = vpop.f32.mrf.mxu0
    %v1712 = vadd.f32 %v1693, %v1711
    %1713 = vmatmul.bf16.gmra.mxu0 %v1318
    %v1714 = vpop.f32.mrf.mxu0
    %v1715 = vadd.f32 %v1696, %v1714
    %v1716 = vpop.f32.mrf.mxu0
    %v1717 = vadd.f32 %v1698, %v1716
    %1718 = vdwg.mxu0
    %1719 = vmatpush.bf16.msra.mxu0 %v952
    %1720 = vmatpush.bf16.msra.mxu0 %v948
    %1721 = vmatpush.bf16.msra.mxu0 %v944
    %1722 = vmatpush.bf16.msra.mxu0 %v940
    %1723 = vmatpush.bf16.msra.mxu0 %v936
    %1724 = vmatpush.bf16.msra.mxu0 %v932
    %1725 = vmatpush.bf16.msra.mxu0 %v928
    %1726 = vmatpush.bf16.msra.mxu0 %v924
    %1727 = vmatmul.bf16.gmra.mxu0 %v123
    %v1728 = vpop.f32.mrf.mxu0
    %v1729 = vadd.f32 0.0, %v1728
    %v1730 = vpop.f32.mrf.mxu0
    %v1731 = vadd.f32 0.0, %v1730
    %1732 = vmatmul.bf16.gmra.mxu0 %v130
    %v1733 = vpop.f32.mrf.mxu0
    %v1734 = vadd.f32 0.0, %v1733
    %v1735 = vpop.f32.mrf.mxu0
    %v1736 = vadd.f32 0.0, %v1735
    %1737 = vdwg.mxu0
    %1738 = vmatpush.bf16.msra.mxu0 %v984
    %1739 = vmatpush.bf16.msra.mxu0 %v980
    %1740 = vmatpush.bf16.msra.mxu0 %v976
    %1741 = vmatpush.bf16.msra.mxu0 %v972
    %1742 = vmatpush.bf16.msra.mxu0 %v968
    %1743 = vmatpush.bf16.msra.mxu0 %v964
    %1744 = vmatpush.bf16.msra.mxu0 %v960
    %1745 = vmatpush.bf16.msra.mxu0 %v956
    %1746 = vmatmul.bf16.gmra.mxu0 %v124
    %v1747 = vpop.f32.mrf.mxu0
    %v1748 = vadd.f32 %v1729, %v1747
    %v1749 = vpop.f32.mrf.mxu0
    %v1750 = vadd.f32 %v1731, %v1749
    %1751 = vmatmul.bf16.gmra.mxu0 %v131
    %v1752 = vpop.f32.mrf.mxu0
    %v1753 = vadd.f32 %v1734, %v1752
    %v1754 = vpop.f32.mrf.mxu0
    %v1755 = vadd.f32 %v1736, %v1754
    %1756 = vdwg.mxu0
    %1757 = vmatpush.bf16.msra.mxu0 %v1016
    %1758 = vmatpush.bf16.msra.mxu0 %v1012
    %1759 = vmatpush.bf16.msra.mxu0 %v1008
    %1760 = vmatpush.bf16.msra.mxu0 %v1004
    %1761 = vmatpush.bf16.msra.mxu0 %v1000
    %1762 = vmatpush.bf16.msra.mxu0 %v996
    %1763 = vmatpush.bf16.msra.mxu0 %v992
    %1764 = vmatpush.bf16.msra.mxu0 %v988
    %1765 = vmatmul.bf16.gmra.mxu0 %v125
    %v1766 = vpop.f32.mrf.mxu0
    %v1767 = vadd.f32 %v1748, %v1766
    %v1768 = vpop.f32.mrf.mxu0
    %v1769 = vadd.f32 %v1750, %v1768
    %1770 = vmatmul.bf16.gmra.mxu0 %v132
    %v1771 = vpop.f32.mrf.mxu0
    %v1772 = vadd.f32 %v1753, %v1771
    %v1773 = vpop.f32.mrf.mxu0
    %v1774 = vadd.f32 %v1755, %v1773
    %1775 = vdwg.mxu0
    %1776 = vmatpush.bf16.msra.mxu0 %v1048
    %1777 = vmatpush.bf16.msra.mxu0 %v1044
    %1778 = vmatpush.bf16.msra.mxu0 %v1040
    %1779 = vmatpush.bf16.msra.mxu0 %v1036
    %1780 = vmatpush.bf16.msra.mxu0 %v1032
    %1781 = vmatpush.bf16.msra.mxu0 %v1028
    %1782 = vmatpush.bf16.msra.mxu0 %v1024
    %1783 = vmatpush.bf16.msra.mxu0 %v1020
    %1784 = vmatmul.bf16.gmra.mxu0 %v126
    %v1785 = vpop.f32.mrf.mxu0
    %v1786 = vadd.f32 %v1767, %v1785
    %v1787 = vpop.f32.mrf.mxu0
    %v1788 = vadd.f32 %v1769, %v1787
    %1789 = vmatmul.bf16.gmra.mxu0 %v133
    %v1790 = vpop.f32.mrf.mxu0
    %v1791 = vadd.f32 %v1772, %v1790
    %v1792 = vpop.f32.mrf.mxu0
    %v1793 = vadd.f32 %v1774, %v1792
    %1794 = vdwg.mxu0
    %1795 = vmatpush.bf16.msra.mxu0 %v1080
    %1796 = vmatpush.bf16.msra.mxu0 %v1076
    %1797 = vmatpush.bf16.msra.mxu0 %v1072
    %1798 = vmatpush.bf16.msra.mxu0 %v1068
    %1799 = vmatpush.bf16.msra.mxu0 %v1064
    %1800 = vmatpush.bf16.msra.mxu0 %v1060
    %1801 = vmatpush.bf16.msra.mxu0 %v1056
    %1802 = vmatpush.bf16.msra.mxu0 %v1052
    %1803 = vmatmul.bf16.gmra.mxu0 %v127
    %v1804 = vpop.f32.mrf.mxu0
    %v1805 = vadd.f32 %v1786, %v1804
    %v1806 = vpop.f32.mrf.mxu0
    %v1807 = vadd.f32 %v1788, %v1806
    %1808 = vmatmul.bf16.gmra.mxu0 %v134
    %v1809 = vpop.f32.mrf.mxu0
    %v1810 = vadd.f32 %v1791, %v1809
    %v1811 = vpop.f32.mrf.mxu0
    %v1812 = vadd.f32 %v1793, %v1811
    %1813 = vdwg.mxu0
    %1814 = vmatpush.bf16.msra.mxu0 %v1112
    %1815 = vmatpush.bf16.msra.mxu0 %v1108
    %1816 = vmatpush.bf16.msra.mxu0 %v1104
    %1817 = vmatpush.bf16.msra.mxu0 %v1100
    %1818 = vmatpush.bf16.msra.mxu0 %v1096
    %1819 = vmatpush.bf16.msra.mxu0 %v1092
    %1820 = vmatpush.bf16.msra.mxu0 %v1088
    %1821 = vmatpush.bf16.msra.mxu0 %v1084
    %1822 = vmatmul.bf16.gmra.mxu0 %v128
    %v1823 = vpop.f32.mrf.mxu0
    %v1824 = vadd.f32 %v1805, %v1823
    %v1825 = vpop.f32.mrf.mxu0
    %v1826 = vadd.f32 %v1807, %v1825
    %1827 = vmatmul.bf16.gmra.mxu0 %v135
    %v1828 = vpop.f32.mrf.mxu0
    %v1829 = vadd.f32 %v1810, %v1828
    %v1830 = vpop.f32.mrf.mxu0
    %v1831 = vadd.f32 %v1812, %v1830
    %1832 = vdwg.mxu0
    %1833 = vmatpush.bf16.msra.mxu0 0
    %1834 = vmatpush.bf16.msra.mxu0 0
    %1835 = vmatpush.bf16.msra.mxu0 0
    %1836 = vmatpush.bf16.msra.mxu0 0
    %1837 = vmatpush.bf16.msra.mxu0 0
    %1838 = vmatpush.bf16.msra.mxu0 0
    %1839 = vmatpush.bf16.msra.mxu0 0
    %1840 = vmatpush.bf16.msra.mxu0 %v1116
    %1841 = vmatmul.bf16.gmra.mxu0 %v1315
    %v1842 = vpop.f32.mrf.mxu0
    %v1843 = vadd.f32 %v1824, %v1842
    %v1844 = vpop.f32.mrf.mxu0
    %v1845 = vadd.f32 %v1826, %v1844
    %1846 = vmatmul.bf16.gmra.mxu0 %v1318
    %v1847 = vpop.f32.mrf.mxu0
    %v1848 = vadd.f32 %v1829, %v1847
    %v1849 = vpop.f32.mrf.mxu0
    %v1850 = vadd.f32 %v1831, %v1849
    %1851 = vdwg.mxu0
    %v1852 = vadd.f32 %v1444, %v1446
    %v1853 = vadd.f32 %v1852, %v1449
    %v1854 = vadd.f32 %v1853, %v1451
    %v1855 = vrot.slane %v1854, 4
    %v1856 = vadd.f32 %v1854, %v1855
    %v1857 = vrot.slane %v1856, 2
    %v1858 = vadd.f32 %v1856, %v1857
    %v1859 = vrot.slane %v1858, 1
    %v1860 = vadd.f32 %v1858, %v1859
    %v1861 = vadd.f32 %v1577, %v1579
    %v1862 = vadd.f32 %v1861, %v1582
    %v1863 = vadd.f32 %v1862, %v1584
    %v1864 = vrot.slane %v1863, 4
    %v1865 = vadd.f32 %v1863, %v1864
    %v1866 = vrot.slane %v1865, 2
    %v1867 = vadd.f32 %v1865, %v1866
    %v1868 = vrot.slane %v1867, 1
    %v1869 = vadd.f32 %v1867, %v1868
    %v1870 = vadd.f32 %v1710, %v1712
    %v1871 = vadd.f32 %v1870, %v1715
    %v1872 = vadd.f32 %v1871, %v1717
    %v1873 = vrot.slane %v1872, 4
    %v1874 = vadd.f32 %v1872, %v1873
    %v1875 = vrot.slane %v1874, 2
    %v1876 = vadd.f32 %v1874, %v1875
    %v1877 = vrot.slane %v1876, 1
    %v1878 = vadd.f32 %v1876, %v1877
    %v1879 = vadd.f32 %v1843, %v1845
    %v1880 = vadd.f32 %v1879, %v1848
    %v1881 = vadd.f32 %v1880, %v1850
    %v1882 = vrot.slane %v1881, 4
    %v1883 = vadd.f32 %v1881, %v1882
    %v1884 = vrot.slane %v1883, 2
    %v1885 = vadd.f32 %v1883, %v1884
    %v1886 = vrot.slane %v1885, 1
    %v1887 = vadd.f32 %v1885, %v1886
    %v1888 = vmul.f32 %v1860, 0.03125
    %v1889 = vmul.f32 %v1869, 0.03125
    %v1890 = vmul.f32 %v1878, 0.03125
    %v1891 = vmul.f32 %v1887, 0.03125
    %v1892 = vmul.f32 %v1444, %v1444
    %v1893 = vmul.f32 %v1577, %v1577
    %v1894 = vmul.f32 %v1710, %v1710
    %v1895 = vmul.f32 %v1843, %v1843
    %v1896 = vmul.f32 %v1446, %v1446
    %v1897 = vmul.f32 %v1579, %v1579
    %v1898 = vmul.f32 %v1712, %v1712
    %v1899 = vmul.f32 %v1845, %v1845
    %v1900 = vmul.f32 %v1449, %v1449
    %v1901 = vmul.f32 %v1582, %v1582
    %v1902 = vmul.f32 %v1715, %v1715
    %v1903 = vmul.f32 %v1848, %v1848
    %v1904 = vmul.f32 %v1451, %v1451
    %v1905 = vmul.f32 %v1584, %v1584
    %v1906 = vmul.f32 %v1717, %v1717
    %v1907 = vmul.f32 %v1850, %v1850
    %v1908 = vadd.f32 %v1892, %v1896
    %v1909 = vadd.f32 %v1908, %v1900
    %v1910 = vadd.f32 %v1909, %v1904
    %v1911 = vrot.slane %v1910, 4
    %v1912 = vadd.f32 %v1910, %v1911
    %v1913 = vrot.slane %v1912, 2
    %v1914 = vadd.f32 %v1912, %v1913
    %v1915 = vrot.slane %v1914, 1
    %v1916 = vadd.f32 %v1914, %v1915
    %v1917 = vadd.f32 %v1893, %v1897
    %v1918 = vadd.f32 %v1917, %v1901
    %v1919 = vadd.f32 %v1918, %v1905
    %v1920 = vrot.slane %v1919, 4
    %v1921 = vadd.f32 %v1919, %v1920
    %v1922 = vrot.slane %v1921, 2
    %v1923 = vadd.f32 %v1921, %v1922
    %v1924 = vrot.slane %v1923, 1
    %v1925 = vadd.f32 %v1923, %v1924
    %v1926 = vadd.f32 %v1894, %v1898
    %v1927 = vadd.f32 %v1926, %v1902
    %v1928 = vadd.f32 %v1927, %v1906
    %v1929 = vrot.slane %v1928, 4
    %v1930 = vadd.f32 %v1928, %v1929
    %v1931 = vrot.slane %v1930, 2
    %v1932 = vadd.f32 %v1930, %v1931
    %v1933 = vrot.slane %v1932, 1
    %v1934 = vadd.f32 %v1932, %v1933
    %v1935 = vadd.f32 %v1895, %v1899
    %v1936 = vadd.f32 %v1935, %v1903
    %v1937 = vadd.f32 %v1936, %v1907
    %v1938 = vrot.slane %v1937, 4
    %v1939 = vadd.f32 %v1937, %v1938
    %v1940 = vrot.slane %v1939, 2
    %v1941 = vadd.f32 %v1939, %v1940
    %v1942 = vrot.slane %v1941, 1
    %v1943 = vadd.f32 %v1941, %v1942
    %v1944 = vmul.f32 %v1916, 0.03125
    %v1945 = vmul.f32 %v1925, 0.03125
    %v1946 = vmul.f32 %v1934, 0.03125
    %v1947 = vmul.f32 %v1943, 0.03125
    %v1948 = vmul.f32 %v1888, %v1888
    %v1949 = vmul.f32 %v1889, %v1889
    %v1950 = vmul.f32 %v1890, %v1890
    %v1951 = vmul.f32 %v1891, %v1891
    %v1952 = vsub.f32 %v1944, %v1948
    %v1953 = vsub.f32 %v1945, %v1949
    %v1954 = vsub.f32 %v1946, %v1950
    %v1955 = vsub.f32 %v1947, %v1951
    %v1956 = vmax.f32 %v1952, 0.0
    %v1957 = vmax.f32 %v1953, 0.0
    %v1958 = vmax.f32 %v1954, 0.0
    %v1959 = vmax.f32 %v1955, 0.0
    %v1960 = vadd.f32 %v1956, 1e-05
    %v1961 = vadd.f32 %v1957, 1e-05
    %v1962 = vadd.f32 %v1958, 1e-05
    %v1963 = vadd.f32 %v1959, 1e-05
    %v1964 = vrsqrt.pop %v1960
    %v1965 = vmul.f32 %v1964, %v1960
    %v1966 = vmul.f32 %v1965, %v1964
    %v1967 = vmul.f32 0.5, %v1966
    %v1968 = vsub.f32 1.5, %v1967
    %v1969 = vmul.f32 %v1964, %v1968
    %vm1970 = vweird.f32 %v1960
    %vm1971 = vweird.f32 %v1964
    %vm1972 = vmor %vm1970, %vm1971
    %v1973 = vsel %vm1972, %v1964, %v1969
    %v1974 = vrsqrt.pop %v1961
    %v1975 = vmul.f32 %v1974, %v1961
    %v1976 = vmul.f32 %v1975, %v1974
    %v1977 = vmul.f32 0.5, %v1976
    %v1978 = vsub.f32 1.5, %v1977
    %v1979 = vmul.f32 %v1974, %v1978
    %vm1980 = vweird.f32 %v1961
    %vm1981 = vweird.f32 %v1974
    %vm1982 = vmor %vm1980, %vm1981
    %v1983 = vsel %vm1982, %v1974, %v1979
    %v1984 = vrsqrt.pop %v1962
    %v1985 = vmul.f32 %v1984, %v1962
    %v1986 = vmul.f32 %v1985, %v1984
    %v1987 = vmul.f32 0.5, %v1986
    %v1988 = vsub.f32 1.5, %v1987
    %v1989 = vmul.f32 %v1984, %v1988
    %vm1990 = vweird.f32 %v1962
    %vm1991 = vweird.f32 %v1984
    %vm1992 = vmor %vm1990, %vm1991
    %v1993 = vsel %vm1992, %v1984, %v1989
    %v1994 = vrsqrt.pop %v1963
    %v1995 = vmul.f32 %v1994, %v1963
    %v1996 = vmul.f32 %v1995, %v1994
    %v1997 = vmul.f32 0.5, %v1996
    %v1998 = vsub.f32 1.5, %v1997
    %v1999 = vmul.f32 %v1994, %v1998
    %vm2000 = vweird.f32 %v1963
    %vm2001 = vweird.f32 %v1994
    %vm2002 = vmor %vm2000, %vm2001
    %v2003 = vsel %vm2002, %v1994, %v1999
    %v2008 = vrot.slane %v1983, 4
    %v2009 = vrot.slane %v2003, 4
    %vm2010 = vcmask 1043456
    %v2011 = vsel %vm2010, %v1973, %v2008
    %v2012 = vsel %vm2010, %v1993, %v2009
    %v2015 = vmul.f32 %v93, %v2011
    %v2016 = vmul.f32 %v94, %v2012
    %v2019 = vperm.slane %v2015, 0
    %v2020 = vperm.slane %v2015, 4
    %v2021 = vperm.slane %v2016, 0
    %v2022 = vperm.slane %v2016, 4
    %v2027 = vmul.f32 %v1888, %v2019
    %v2028 = vmul.f32 %v1889, %v2020
    %v2029 = vmul.f32 %v1890, %v2021
    %v2030 = vmul.f32 %v1891, %v2022
    %v2035 = vrot.slane %v2028, 4
    %v2036 = vrot.slane %v2030, 4
    %v2037 = vsel %vm2010, %v2027, %v2035
    %v2038 = vsel %vm2010, %v2029, %v2036
    %v2039 = vrot.slane %v2037, 7
    %v2040 = vrot.slane %v2038, 7
    %v2043 = vsub.f32 %v93, %v2039
    %v2044 = vsub.f32 %v94, %v2040
    %v2045 = vperm.slane %v2019, 0
    %v2046 = vperm.slane %v2020, 0
    %v2047 = vperm.slane %v2021, 0
    %v2048 = vperm.slane %v2022, 0
    %v2049 = vmul.f32 %v1444, %v2045
    %v2050 = vmul.f32 %v1577, %v2046
    %v2051 = vmul.f32 %v1710, %v2047
    %v2052 = vmul.f32 %v1843, %v2048
    %v2053 = vmul.f32 %v1446, %v2045
    %v2054 = vmul.f32 %v1579, %v2046
    %v2055 = vmul.f32 %v1712, %v2047
    %v2056 = vmul.f32 %v1845, %v2048
    %v2057 = vmul.f32 %v1449, %v2045
    %v2058 = vmul.f32 %v1582, %v2046
    %v2059 = vmul.f32 %v1715, %v2047
    %v2060 = vmul.f32 %v1848, %v2048
    %v2061 = vmul.f32 %v1451, %v2045
    %v2062 = vmul.f32 %v1584, %v2046
    %v2063 = vmul.f32 %v1717, %v2047
    %v2064 = vmul.f32 %v1850, %v2048
    %v2067 = vperm.slane %v2043, 1
    %v2068 = vperm.slane %v2043, 5
    %v2069 = vperm.slane %v2044, 1
    %v2070 = vperm.slane %v2044, 5
    %v2075 = vperm.slane %v2067, 1
    %v2076 = vperm.slane %v2068, 1
    %v2077 = vperm.slane %v2069, 1
    %v2078 = vperm.slane %v2070, 1
    %v2079 = vadd.f32 %v2049, %v2075
    %v2080 = vadd.f32 %v2050, %v2076
    %v2081 = vadd.f32 %v2051, %v2077
    %v2082 = vadd.f32 %v2052, %v2078
    %v2083 = vadd.f32 %v2053, %v2075
    %v2084 = vadd.f32 %v2054, %v2076
    %v2085 = vadd.f32 %v2055, %v2077
    %v2086 = vadd.f32 %v2056, %v2078
    %v2087 = vadd.f32 %v2057, %v2075
    %v2088 = vadd.f32 %v2058, %v2076
    %v2089 = vadd.f32 %v2059, %v2077
    %v2090 = vadd.f32 %v2060, %v2078
    %v2091 = vadd.f32 %v2061, %v2075
    %v2092 = vadd.f32 %v2062, %v2076
    %v2093 = vadd.f32 %v2063, %v2077
    %v2094 = vadd.f32 %v2064, %v2078
    %v2095 = vmax.f32 %v2079, 0.0
    %v2096 = vmax.f32 %v2080, 0.0
    %v2097 = vmax.f32 %v2081, 0.0
    %v2098 = vmax.f32 %v2082, 0.0
    %v2099 = vmax.f32 %v2083, 0.0
    %v2100 = vmax.f32 %v2084, 0.0
    %v2101 = vmax.f32 %v2085, 0.0
    %v2102 = vmax.f32 %v2086, 0.0
    %v2103 = vmax.f32 %v2087, 0.0
    %v2104 = vmax.f32 %v2088, 0.0
    %v2105 = vmax.f32 %v2089, 0.0
    %v2106 = vmax.f32 %v2090, 0.0
    %v2107 = vmax.f32 %v2091, 0.0
    %v2108 = vmax.f32 %v2092, 0.0
    %v2109 = vmax.f32 %v2093, 0.0
    %v2110 = vmax.f32 %v2094, 0.0
    %s2111 = smul.u32 4, 64
    %s2112 = smul.u32 %s2111, 4
    %s2113 = sshll.u32 %s2112, 4
    %2114 = dma.done [#allocation4], %s2113
    %v2115 = vpack.c.bf16 %v2099, %v2095
    %v2116 = vpack.c.bf16 %v2100, %v2096
    %v2117 = vpack.c.bf16 %v2101, %v2097
    %v2118 = vpack.c.bf16 %v2102, %v2098
    %v2119 = vpack.c.bf16 %v2107, %v2103
    %v2120 = vpack.c.bf16 %v2108, %v2104
    %v2121 = vpack.c.bf16 %v2109, %v2105
    %v2122 = vpack.c.bf16 %v2110, %v2106
    %v2123 = vld [vmem:[#allocation2] sm:$0xff]
    %v2124 = vld [vmem:[#allocation2 + $0x8] sm:$0xff]
    %v2125 = vld [vmem:[#allocation2 + $0x10] sm:$0xff]
    %v2126 = vld [vmem:[#allocation2 + $0x18] sm:$0xff]
    %v2127 = vld [vmem:[#allocation2 + $0x20] sm:$0xff]
    %v2128 = vld [vmem:[#allocation2 + $0x28] sm:$0xff]
    %v2129 = vld [vmem:[#allocation2 + $0x30] sm:$0xff]
    %v2130 = vld [vmem:[#allocation2 + $0x38] sm:$0xff]
    %v2131 = vld [vmem:[#allocation2 + $0x40] sm:$0xff]
    %v2132 = vld [vmem:[#allocation2 + $0x48] sm:$0xff]
    %v2133 = vld [vmem:[#allocation2 + $0x50] sm:$0xff]
    %v2134 = vld [vmem:[#allocation2 + $0x58] sm:$0xff]
    %v2135 = vld [vmem:[#allocation2 + $0x60] sm:$0xff]
    %v2136 = vld [vmem:[#allocation2 + $0x68] sm:$0xff]
    %v2137 = vld [vmem:[#allocation2 + $0x70] sm:$0xff]
    %v2138 = vld [vmem:[#allocation2 + $0x78] sm:$0xff]
    %v2139 = vld [vmem:[#allocation2 + $0x80] sm:$0xff]
    %v2140 = vld [vmem:[#allocation2 + $0x88] sm:$0xff]
    %v2141 = vld [vmem:[#allocation2 + $0x90] sm:$0xff]
    %v2142 = vld [vmem:[#allocation2 + $0x98] sm:$0xff]
    %v2143 = vld [vmem:[#allocation2 + $0xa0] sm:$0xff]
    %v2144 = vld [vmem:[#allocation2 + $0xa8] sm:$0xff]
    %v2145 = vld [vmem:[#allocation2 + $0xb0] sm:$0xff]
    %v2146 = vld [vmem:[#allocation2 + $0xb8] sm:$0xff]
    %v2147 = vld [vmem:[#allocation2 + $0xc0] sm:$0xff]
    %v2148 = vld [vmem:[#allocation2 + $0xc8] sm:$0xff]
    %v2149 = vld [vmem:[#allocation2 + $0xd0] sm:$0xff]
    %v2150 = vld [vmem:[#allocation2 + $0xd8] sm:$0xff]
    %v2151 = vld [vmem:[#allocation2 + $0xe0] sm:$0xff]
    %v2152 = vld [vmem:[#allocation2 + $0xe8] sm:$0xff]
    %v2153 = vld [vmem:[#allocation2 + $0xf0] sm:$0xff]
    %v2154 = vld [vmem:[#allocation2 + $0xf8] sm:$0xff]
    %v2155 = vld [vmem:[#allocation2 + $0x100] sm:$0xff]
    %v2156 = vld [vmem:[#allocation2 + $0x108] sm:$0xff]
    %v2157 = vld [vmem:[#allocation2 + $0x110] sm:$0xff]
    %v2158 = vld [vmem:[#allocation2 + $0x118] sm:$0xff]
    %v2159 = vld [vmem:[#allocation2 + $0x120] sm:$0xff]
    %v2160 = vld [vmem:[#allocation2 + $0x128] sm:$0xff]
    %v2161 = vld [vmem:[#allocation2 + $0x130] sm:$0xff]
    %v2162 = vld [vmem:[#allocation2 + $0x138] sm:$0xff]
    %v2163 = vld [vmem:[#allocation2 + $0x140] sm:$0xff]
    %v2164 = vld [vmem:[#allocation2 + $0x148] sm:$0xff]
    %v2165 = vld [vmem:[#allocation2 + $0x150] sm:$0xff]
    %v2166 = vld [vmem:[#allocation2 + $0x158] sm:$0xff]
    %v2167 = vld [vmem:[#allocation2 + $0x160] sm:$0xff]
    %v2168 = vld [vmem:[#allocation2 + $0x168] sm:$0xff]
    %v2169 = vld [vmem:[#allocation2 + $0x170] sm:$0xff]
    %v2170 = vld [vmem:[#allocation2 + $0x178] sm:$0xff]
    %v2171 = vld [vmem:[#allocation2 + $0x180] sm:$0xff]
    %v2172 = vld [vmem:[#allocation2 + $0x188] sm:$0xff]
    %v2173 = vld [vmem:[#allocation2 + $0x190] sm:$0xff]
    %v2174 = vld [vmem:[#allocation2 + $0x198] sm:$0xff]
    %v2175 = vld [vmem:[#allocation2 + $0x1a0] sm:$0xff]
    %v2176 = vld [vmem:[#allocation2 + $0x1a8] sm:$0xff]
    %v2177 = vld [vmem:[#allocation2 + $0x1b0] sm:$0xff]
    %v2178 = vld [vmem:[#allocation2 + $0x1b8] sm:$0xff]
    %v2179 = vld [vmem:[#allocation2 + $0x1c0] sm:$0xff]
    %v2180 = vld [vmem:[#allocation2 + $0x1c8] sm:$0xff]
    %v2181 = vld [vmem:[#allocation2 + $0x1d0] sm:$0xff]
    %v2182 = vld [vmem:[#allocation2 + $0x1d8] sm:$0xff]
    %v2183 = vld [vmem:[#allocation2 + $0x1e0] sm:$0xff]
    %v2184 = vld [vmem:[#allocation2 + $0x1e8] sm:$0xff]
    %v2185 = vld [vmem:[#allocation2 + $0x1f0] sm:$0xff]
    %v2186 = vld [vmem:[#allocation2 + $0x1f8] sm:$0xff]
    %v2187 = vld [vmem:[#allocation2 + $0x200] sm:$0xff]
    %v2188 = vld [vmem:[#allocation2 + $0x208] sm:$0xff]
    %v2189 = vld [vmem:[#allocation2 + $0x210] sm:$0xff]
    %v2190 = vld [vmem:[#allocation2 + $0x218] sm:$0xff]
    %v2191 = vld [vmem:[#allocation2 + $0x220] sm:$0xff]
    %v2192 = vld [vmem:[#allocation2 + $0x228] sm:$0xff]
    %v2193 = vld [vmem:[#allocation2 + $0x230] sm:$0xff]
    %v2194 = vld [vmem:[#allocation2 + $0x238] sm:$0xff]
    %v2195 = vld [vmem:[#allocation2 + $0x240] sm:$0xff]
    %v2196 = vld [vmem:[#allocation2 + $0x248] sm:$0xff]
    %v2197 = vld [vmem:[#allocation2 + $0x250] sm:$0xff]
    %v2198 = vld [vmem:[#allocation2 + $0x258] sm:$0xff]
    %v2199 = vld [vmem:[#allocation2 + $0x260] sm:$0xff]
    %v2200 = vld [vmem:[#allocation2 + $0x268] sm:$0xff]
    %v2201 = vld [vmem:[#allocation2 + $0x270] sm:$0xff]
    %v2202 = vld [vmem:[#allocation2 + $0x278] sm:$0xff]
    %v2203 = vld [vmem:[#allocation2 + $0x280] sm:$0xff]
    %v2204 = vld [vmem:[#allocation2 + $0x288] sm:$0xff]
    %v2205 = vld [vmem:[#allocation2 + $0x290] sm:$0xff]
    %v2206 = vld [vmem:[#allocation2 + $0x298] sm:$0xff]
    %v2207 = vld [vmem:[#allocation2 + $0x2a0] sm:$0xff]
    %v2208 = vld [vmem:[#allocation2 + $0x2a8] sm:$0xff]
    %v2209 = vld [vmem:[#allocation2 + $0x2b0] sm:$0xff]
    %v2210 = vld [vmem:[#allocation2 + $0x2b8] sm:$0xff]
    %v2211 = vld [vmem:[#allocation2 + $0x2c0] sm:$0xff]
    %v2212 = vld [vmem:[#allocation2 + $0x2c8] sm:$0xff]
    %v2213 = vld [vmem:[#allocation2 + $0x2d0] sm:$0xff]
    %v2214 = vld [vmem:[#allocation2 + $0x2d8] sm:$0xff]
    %v2215 = vld [vmem:[#allocation2 + $0x2e0] sm:$0xff]
    %v2216 = vld [vmem:[#allocation2 + $0x2e8] sm:$0xff]
    %v2217 = vld [vmem:[#allocation2 + $0x2f0] sm:$0xff]
    %v2218 = vld [vmem:[#allocation2 + $0x2f8] sm:$0xff]
    %v2219 = vld [vmem:[#allocation2 + $0x300] sm:$0xff]
    %v2220 = vld [vmem:[#allocation2 + $0x308] sm:$0xff]
    %v2221 = vld [vmem:[#allocation2 + $0x310] sm:$0xff]
    %v2222 = vld [vmem:[#allocation2 + $0x318] sm:$0xff]
    %v2223 = vld [vmem:[#allocation2 + $0x320] sm:$0xff]
    %v2224 = vld [vmem:[#allocation2 + $0x328] sm:$0xff]
    %v2225 = vld [vmem:[#allocation2 + $0x330] sm:$0xff]
    %v2226 = vld [vmem:[#allocation2 + $0x338] sm:$0xff]
    %v2227 = vld [vmem:[#allocation2 + $0x340] sm:$0xff]
    %v2228 = vld [vmem:[#allocation2 + $0x348] sm:$0xff]
    %v2229 = vld [vmem:[#allocation2 + $0x350] sm:$0xff]
    %v2230 = vld [vmem:[#allocation2 + $0x358] sm:$0xff]
    %v2231 = vld [vmem:[#allocation2 + $0x360] sm:$0xff]
    %v2232 = vld [vmem:[#allocation2 + $0x368] sm:$0xff]
    %v2233 = vld [vmem:[#allocation2 + $0x370] sm:$0xff]
    %v2234 = vld [vmem:[#allocation2 + $0x378] sm:$0xff]
    %v2235 = vld [vmem:[#allocation2 + $0x380] sm:$0xff]
    %v2236 = vld [vmem:[#allocation2 + $0x388] sm:$0xff]
    %v2237 = vld [vmem:[#allocation2 + $0x390] sm:$0xff]
    %v2238 = vld [vmem:[#allocation2 + $0x398] sm:$0xff]
    %v2239 = vld [vmem:[#allocation2 + $0x3a0] sm:$0xff]
    %v2240 = vld [vmem:[#allocation2 + $0x3a8] sm:$0xff]
    %v2241 = vld [vmem:[#allocation2 + $0x3b0] sm:$0xff]
    %v2242 = vld [vmem:[#allocation2 + $0x3b8] sm:$0xff]
    %v2243 = vld [vmem:[#allocation2 + $0x3c0] sm:$0xff]
    %v2244 = vld [vmem:[#allocation2 + $0x3c8] sm:$0xff]
    %v2245 = vld [vmem:[#allocation2 + $0x3d0] sm:$0xff]
    %v2246 = vld [vmem:[#allocation2 + $0x3d8] sm:$0xff]
    %v2247 = vld [vmem:[#allocation2 + $0x3e0] sm:$0xff]
    %v2248 = vld [vmem:[#allocation2 + $0x3e8] sm:$0xff]
    %v2249 = vld [vmem:[#allocation2 + $0x3f0] sm:$0xff]
    %v2250 = vld [vmem:[#allocation2 + $0x3f8] sm:$0xff]
    %v2379 = vunpack.c.l.b16 %v2123
    %v2380 = vunpack.c.h.b16 %v2123
    %v2381 = vunpack.c.l.b16 %v2124
    %v2382 = vunpack.c.h.b16 %v2124
    %v2383 = vunpack.c.l.b16 %v2125
    %v2384 = vunpack.c.h.b16 %v2125
    %v2385 = vunpack.c.l.b16 %v2126
    %v2386 = vunpack.c.h.b16 %v2126
    %v2387 = vunpack.c.l.b16 %v2127
    %v2388 = vunpack.c.h.b16 %v2127
    %v2389 = vunpack.c.l.b16 %v2128
    %v2390 = vunpack.c.h.b16 %v2128
    %v2391 = vunpack.c.l.b16 %v2129
    %v2392 = vunpack.c.h.b16 %v2129
    %v2393 = vunpack.c.l.b16 %v2130
    %v2394 = vunpack.c.h.b16 %v2130
    %v2395 = vunpack.c.l.b16 %v2131
    %v2396 = vunpack.c.h.b16 %v2131
    %v2397 = vunpack.c.l.b16 %v2132
    %v2398 = vunpack.c.h.b16 %v2132
    %v2399 = vunpack.c.l.b16 %v2133
    %v2400 = vunpack.c.h.b16 %v2133
    %v2401 = vunpack.c.l.b16 %v2134
    %v2402 = vunpack.c.h.b16 %v2134
    %v2403 = vunpack.c.l.b16 %v2135
    %v2404 = vunpack.c.h.b16 %v2135
    %v2405 = vunpack.c.l.b16 %v2136
    %v2406 = vunpack.c.h.b16 %v2136
    %v2407 = vunpack.c.l.b16 %v2137
    %v2408 = vunpack.c.h.b16 %v2137
    %v2409 = vunpack.c.l.b16 %v2138
    %v2410 = vunpack.c.h.b16 %v2138
    %v2411 = vunpack.c.l.b16 %v2139
    %v2412 = vunpack.c.h.b16 %v2139
    %v2413 = vunpack.c.l.b16 %v2140
    %v2414 = vunpack.c.h.b16 %v2140
    %v2415 = vunpack.c.l.b16 %v2141
    %v2416 = vunpack.c.h.b16 %v2141
    %v2417 = vunpack.c.l.b16 %v2142
    %v2418 = vunpack.c.h.b16 %v2142
    %v2419 = vunpack.c.l.b16 %v2143
    %v2420 = vunpack.c.h.b16 %v2143
    %v2421 = vunpack.c.l.b16 %v2144
    %v2422 = vunpack.c.h.b16 %v2144
    %v2423 = vunpack.c.l.b16 %v2145
    %v2424 = vunpack.c.h.b16 %v2145
    %v2425 = vunpack.c.l.b16 %v2146
    %v2426 = vunpack.c.h.b16 %v2146
    %v2427 = vunpack.c.l.b16 %v2147
    %v2428 = vunpack.c.h.b16 %v2147
    %v2429 = vunpack.c.l.b16 %v2148
    %v2430 = vunpack.c.h.b16 %v2148
    %v2431 = vunpack.c.l.b16 %v2149
    %v2432 = vunpack.c.h.b16 %v2149
    %v2433 = vunpack.c.l.b16 %v2150
    %v2434 = vunpack.c.h.b16 %v2150
    %v2435 = vunpack.c.l.b16 %v2151
    %v2436 = vunpack.c.h.b16 %v2151
    %v2437 = vunpack.c.l.b16 %v2152
    %v2438 = vunpack.c.h.b16 %v2152
    %v2439 = vunpack.c.l.b16 %v2153
    %v2440 = vunpack.c.h.b16 %v2153
    %v2441 = vunpack.c.l.b16 %v2154
    %v2442 = vunpack.c.h.b16 %v2154
    %v2443 = vunpack.c.l.b16 %v2155
    %v2444 = vunpack.c.h.b16 %v2155
    %v2445 = vunpack.c.l.b16 %v2156
    %v2446 = vunpack.c.h.b16 %v2156
    %v2447 = vunpack.c.l.b16 %v2157
    %v2448 = vunpack.c.h.b16 %v2157
    %v2449 = vunpack.c.l.b16 %v2158
    %v2450 = vunpack.c.h.b16 %v2158
    %v2451 = vunpack.c.l.b16 %v2159
    %v2452 = vunpack.c.h.b16 %v2159
    %v2453 = vunpack.c.l.b16 %v2160
    %v2454 = vunpack.c.h.b16 %v2160
    %v2455 = vunpack.c.l.b16 %v2161
    %v2456 = vunpack.c.h.b16 %v2161
    %v2457 = vunpack.c.l.b16 %v2162
    %v2458 = vunpack.c.h.b16 %v2162
    %v2459 = vunpack.c.l.b16 %v2163
    %v2460 = vunpack.c.h.b16 %v2163
    %v2461 = vunpack.c.l.b16 %v2164
    %v2462 = vunpack.c.h.b16 %v2164
    %v2463 = vunpack.c.l.b16 %v2165
    %v2464 = vunpack.c.h.b16 %v2165
    %v2465 = vunpack.c.l.b16 %v2166
    %v2466 = vunpack.c.h.b16 %v2166
    %v2467 = vunpack.c.l.b16 %v2167
    %v2468 = vunpack.c.h.b16 %v2167
    %v2469 = vunpack.c.l.b16 %v2168
    %v2470 = vunpack.c.h.b16 %v2168
    %v2471 = vunpack.c.l.b16 %v2169
    %v2472 = vunpack.c.h.b16 %v2169
    %v2473 = vunpack.c.l.b16 %v2170
    %v2474 = vunpack.c.h.b16 %v2170
    %v2475 = vunpack.c.l.b16 %v2171
    %v2476 = vunpack.c.h.b16 %v2171
    %v2477 = vunpack.c.l.b16 %v2172
    %v2478 = vunpack.c.h.b16 %v2172
    %v2479 = vunpack.c.l.b16 %v2173
    %v2480 = vunpack.c.h.b16 %v2173
    %v2481 = vunpack.c.l.b16 %v2174
    %v2482 = vunpack.c.h.b16 %v2174
    %v2483 = vunpack.c.l.b16 %v2175
    %v2484 = vunpack.c.h.b16 %v2175
    %v2485 = vunpack.c.l.b16 %v2176
    %v2486 = vunpack.c.h.b16 %v2176
    %v2487 = vunpack.c.l.b16 %v2177
    %v2488 = vunpack.c.h.b16 %v2177
    %v2489 = vunpack.c.l.b16 %v2178
    %v2490 = vunpack.c.h.b16 %v2178
    %v2491 = vunpack.c.l.b16 %v2179
    %v2492 = vunpack.c.h.b16 %v2179
    %v2493 = vunpack.c.l.b16 %v2180
    %v2494 = vunpack.c.h.b16 %v2180
    %v2495 = vunpack.c.l.b16 %v2181
    %v2496 = vunpack.c.h.b16 %v2181
    %v2497 = vunpack.c.l.b16 %v2182
    %v2498 = vunpack.c.h.b16 %v2182
    %v2499 = vunpack.c.l.b16 %v2183
    %v2500 = vunpack.c.h.b16 %v2183
    %v2501 = vunpack.c.l.b16 %v2184
    %v2502 = vunpack.c.h.b16 %v2184
    %v2503 = vunpack.c.l.b16 %v2185
    %v2504 = vunpack.c.h.b16 %v2185
    %v2505 = vunpack.c.l.b16 %v2186
    %v2506 = vunpack.c.h.b16 %v2186
    %v2507 = vunpack.c.l.b16 %v2187
    %v2508 = vunpack.c.h.b16 %v2187
    %v2509 = vunpack.c.l.b16 %v2188
    %v2510 = vunpack.c.h.b16 %v2188
    %v2511 = vunpack.c.l.b16 %v2189
    %v2512 = vunpack.c.h.b16 %v2189
    %v2513 = vunpack.c.l.b16 %v2190
    %v2514 = vunpack.c.h.b16 %v2190
    %v2515 = vunpack.c.l.b16 %v2191
    %v2516 = vunpack.c.h.b16 %v2191
    %v2517 = vunpack.c.l.b16 %v2192
    %v2518 = vunpack.c.h.b16 %v2192
    %v2519 = vunpack.c.l.b16 %v2193
    %v2520 = vunpack.c.h.b16 %v2193
    %v2521 = vunpack.c.l.b16 %v2194
    %v2522 = vunpack.c.h.b16 %v2194
    %v2523 = vunpack.c.l.b16 %v2195
    %v2524 = vunpack.c.h.b16 %v2195
    %v2525 = vunpack.c.l.b16 %v2196
    %v2526 = vunpack.c.h.b16 %v2196
    %v2527 = vunpack.c.l.b16 %v2197
    %v2528 = vunpack.c.h.b16 %v2197
    %v2529 = vunpack.c.l.b16 %v2198
    %v2530 = vunpack.c.h.b16 %v2198
    %v2531 = vunpack.c.l.b16 %v2199
    %v2532 = vunpack.c.h.b16 %v2199
    %v2533 = vunpack.c.l.b16 %v2200
    %v2534 = vunpack.c.h.b16 %v2200
    %v2535 = vunpack.c.l.b16 %v2201
    %v2536 = vunpack.c.h.b16 %v2201
    %v2537 = vunpack.c.l.b16 %v2202
    %v2538 = vunpack.c.h.b16 %v2202
    %v2539 = vunpack.c.l.b16 %v2203
    %v2540 = vunpack.c.h.b16 %v2203
    %v2541 = vunpack.c.l.b16 %v2204
    %v2542 = vunpack.c.h.b16 %v2204
    %v2543 = vunpack.c.l.b16 %v2205
    %v2544 = vunpack.c.h.b16 %v2205
    %v2545 = vunpack.c.l.b16 %v2206
    %v2546 = vunpack.c.h.b16 %v2206
    %v2547 = vunpack.c.l.b16 %v2207
    %v2548 = vunpack.c.h.b16 %v2207
    %v2549 = vunpack.c.l.b16 %v2208
    %v2550 = vunpack.c.h.b16 %v2208
    %v2551 = vunpack.c.l.b16 %v2209
    %v2552 = vunpack.c.h.b16 %v2209
    %v2553 = vunpack.c.l.b16 %v2210
    %v2554 = vunpack.c.h.b16 %v2210
    %v2555 = vunpack.c.l.b16 %v2211
    %v2556 = vunpack.c.h.b16 %v2211
    %v2557 = vunpack.c.l.b16 %v2212
    %v2558 = vunpack.c.h.b16 %v2212
    %v2559 = vunpack.c.l.b16 %v2213
    %v2560 = vunpack.c.h.b16 %v2213
    %v2561 = vunpack.c.l.b16 %v2214
    %v2562 = vunpack.c.h.b16 %v2214
    %v2563 = vunpack.c.l.b16 %v2215
    %v2564 = vunpack.c.h.b16 %v2215
    %v2565 = vunpack.c.l.b16 %v2216
    %v2566 = vunpack.c.h.b16 %v2216
    %v2567 = vunpack.c.l.b16 %v2217
    %v2568 = vunpack.c.h.b16 %v2217
    %v2569 = vunpack.c.l.b16 %v2218
    %v2570 = vunpack.c.h.b16 %v2218
    %v2571 = vunpack.c.l.b16 %v2219
    %v2572 = vunpack.c.h.b16 %v2219
    %v2573 = vunpack.c.l.b16 %v2220
    %v2574 = vunpack.c.h.b16 %v2220
    %v2575 = vunpack.c.l.b16 %v2221
    %v2576 = vunpack.c.h.b16 %v2221
    %v2577 = vunpack.c.l.b16 %v2222
    %v2578 = vunpack.c.h.b16 %v2222
    %v2579 = vunpack.c.l.b16 %v2223
    %v2580 = vunpack.c.h.b16 %v2223
    %v2581 = vunpack.c.l.b16 %v2224
    %v2582 = vunpack.c.h.b16 %v2224
    %v2583 = vunpack.c.l.b16 %v2225
    %v2584 = vunpack.c.h.b16 %v2225
    %v2585 = vunpack.c.l.b16 %v2226
    %v2586 = vunpack.c.h.b16 %v2226
    %v2587 = vunpack.c.l.b16 %v2227
    %v2588 = vunpack.c.h.b16 %v2227
    %v2589 = vunpack.c.l.b16 %v2228
    %v2590 = vunpack.c.h.b16 %v2228
    %v2591 = vunpack.c.l.b16 %v2229
    %v2592 = vunpack.c.h.b16 %v2229
    %v2593 = vunpack.c.l.b16 %v2230
    %v2594 = vunpack.c.h.b16 %v2230
    %v2595 = vunpack.c.l.b16 %v2231
    %v2596 = vunpack.c.h.b16 %v2231
    %v2597 = vunpack.c.l.b16 %v2232
    %v2598 = vunpack.c.h.b16 %v2232
    %v2599 = vunpack.c.l.b16 %v2233
    %v2600 = vunpack.c.h.b16 %v2233
    %v2601 = vunpack.c.l.b16 %v2234
    %v2602 = vunpack.c.h.b16 %v2234
    %v2603 = vunpack.c.l.b16 %v2235
    %v2604 = vunpack.c.h.b16 %v2235
    %v2605 = vunpack.c.l.b16 %v2236
    %v2606 = vunpack.c.h.b16 %v2236
    %v2607 = vunpack.c.l.b16 %v2237
    %v2608 = vunpack.c.h.b16 %v2237
    %v2609 = vunpack.c.l.b16 %v2238
    %v2610 = vunpack.c.h.b16 %v2238
    %v2611 = vunpack.c.l.b16 %v2239
    %v2612 = vunpack.c.h.b16 %v2239
    %v2613 = vunpack.c.l.b16 %v2240
    %v2614 = vunpack.c.h.b16 %v2240
    %v2615 = vunpack.c.l.b16 %v2241
    %v2616 = vunpack.c.h.b16 %v2241
    %v2617 = vunpack.c.l.b16 %v2242
    %v2618 = vunpack.c.h.b16 %v2242
    %v2619 = vunpack.c.l.b16 %v2243
    %v2620 = vunpack.c.h.b16 %v2243
    %v2621 = vunpack.c.l.b16 %v2244
    %v2622 = vunpack.c.h.b16 %v2244
    %v2623 = vunpack.c.l.b16 %v2245
    %v2624 = vunpack.c.h.b16 %v2245
    %v2625 = vunpack.c.l.b16 %v2246
    %v2626 = vunpack.c.h.b16 %v2246
    %v2627 = vunpack.c.l.b16 %v2247
    %v2628 = vunpack.c.h.b16 %v2247
    %v2629 = vunpack.c.l.b16 %v2248
    %v2630 = vunpack.c.h.b16 %v2248
    %v2631 = vunpack.c.l.b16 %v2249
    %v2632 = vunpack.c.h.b16 %v2249
    %v2633 = vunpack.c.l.b16 %v2250
    %v2634 = vunpack.c.h.b16 %v2250
    %v2635 = vpack.c.b16 %v2383, %v2379
    %v2636 = vpack.c.b16 %v2384, %v2380
    %v2637 = vpack.c.b16 %v2385, %v2381
    %v2638 = vpack.c.b16 %v2386, %v2382
    %v2639 = vpack.c.b16 %v2391, %v2387
    %v2640 = vpack.c.b16 %v2392, %v2388
    %v2641 = vpack.c.b16 %v2393, %v2389
    %v2642 = vpack.c.b16 %v2394, %v2390
    %v2643 = vpack.c.b16 %v2399, %v2395
    %v2644 = vpack.c.b16 %v2400, %v2396
    %v2645 = vpack.c.b16 %v2401, %v2397
    %v2646 = vpack.c.b16 %v2402, %v2398
    %v2647 = vpack.c.b16 %v2407, %v2403
    %v2648 = vpack.c.b16 %v2408, %v2404
    %v2649 = vpack.c.b16 %v2409, %v2405
    %v2650 = vpack.c.b16 %v2410, %v2406
    %v2651 = vpack.c.b16 %v2415, %v2411
    %v2652 = vpack.c.b16 %v2416, %v2412
    %v2653 = vpack.c.b16 %v2417, %v2413
    %v2654 = vpack.c.b16 %v2418, %v2414
    %v2655 = vpack.c.b16 %v2423, %v2419
    %v2656 = vpack.c.b16 %v2424, %v2420
    %v2657 = vpack.c.b16 %v2425, %v2421
    %v2658 = vpack.c.b16 %v2426, %v2422
    %v2659 = vpack.c.b16 %v2431, %v2427
    %v2660 = vpack.c.b16 %v2432, %v2428
    %v2661 = vpack.c.b16 %v2433, %v2429
    %v2662 = vpack.c.b16 %v2434, %v2430
    %v2663 = vpack.c.b16 %v2439, %v2435
    %v2664 = vpack.c.b16 %v2440, %v2436
    %v2665 = vpack.c.b16 %v2441, %v2437
    %v2666 = vpack.c.b16 %v2442, %v2438
    %v2667 = vpack.c.b16 %v2447, %v2443
    %v2668 = vpack.c.b16 %v2448, %v2444
    %v2669 = vpack.c.b16 %v2449, %v2445
    %v2670 = vpack.c.b16 %v2450, %v2446
    %v2671 = vpack.c.b16 %v2455, %v2451
    %v2672 = vpack.c.b16 %v2456, %v2452
    %v2673 = vpack.c.b16 %v2457, %v2453
    %v2674 = vpack.c.b16 %v2458, %v2454
    %v2675 = vpack.c.b16 %v2463, %v2459
    %v2676 = vpack.c.b16 %v2464, %v2460
    %v2677 = vpack.c.b16 %v2465, %v2461
    %v2678 = vpack.c.b16 %v2466, %v2462
    %v2679 = vpack.c.b16 %v2471, %v2467
    %v2680 = vpack.c.b16 %v2472, %v2468
    %v2681 = vpack.c.b16 %v2473, %v2469
    %v2682 = vpack.c.b16 %v2474, %v2470
    %v2683 = vpack.c.b16 %v2479, %v2475
    %v2684 = vpack.c.b16 %v2480, %v2476
    %v2685 = vpack.c.b16 %v2481, %v2477
    %v2686 = vpack.c.b16 %v2482, %v2478
    %v2687 = vpack.c.b16 %v2487, %v2483
    %v2688 = vpack.c.b16 %v2488, %v2484
    %v2689 = vpack.c.b16 %v2489, %v2485
    %v2690 = vpack.c.b16 %v2490, %v2486
    %v2691 = vpack.c.b16 %v2495, %v2491
    %v2692 = vpack.c.b16 %v2496, %v2492
    %v2693 = vpack.c.b16 %v2497, %v2493
    %v2694 = vpack.c.b16 %v2498, %v2494
    %v2695 = vpack.c.b16 %v2503, %v2499
    %v2696 = vpack.c.b16 %v2504, %v2500
    %v2697 = vpack.c.b16 %v2505, %v2501
    %v2698 = vpack.c.b16 %v2506, %v2502
    %v2699 = vpack.c.b16 %v2511, %v2507
    %v2700 = vpack.c.b16 %v2512, %v2508
    %v2701 = vpack.c.b16 %v2513, %v2509
    %v2702 = vpack.c.b16 %v2514, %v2510
    %v2703 = vpack.c.b16 %v2519, %v2515
    %v2704 = vpack.c.b16 %v2520, %v2516
    %v2705 = vpack.c.b16 %v2521, %v2517
    %v2706 = vpack.c.b16 %v2522, %v2518
    %v2707 = vpack.c.b16 %v2527, %v2523
    %v2708 = vpack.c.b16 %v2528, %v2524
    %v2709 = vpack.c.b16 %v2529, %v2525
    %v2710 = vpack.c.b16 %v2530, %v2526
    %v2711 = vpack.c.b16 %v2535, %v2531
    %v2712 = vpack.c.b16 %v2536, %v2532
    %v2713 = vpack.c.b16 %v2537, %v2533
    %v2714 = vpack.c.b16 %v2538, %v2534
    %v2715 = vpack.c.b16 %v2543, %v2539
    %v2716 = vpack.c.b16 %v2544, %v2540
    %v2717 = vpack.c.b16 %v2545, %v2541
    %v2718 = vpack.c.b16 %v2546, %v2542
    %v2719 = vpack.c.b16 %v2551, %v2547
    %v2720 = vpack.c.b16 %v2552, %v2548
    %v2721 = vpack.c.b16 %v2553, %v2549
    %v2722 = vpack.c.b16 %v2554, %v2550
    %v2723 = vpack.c.b16 %v2559, %v2555
    %v2724 = vpack.c.b16 %v2560, %v2556
    %v2725 = vpack.c.b16 %v2561, %v2557
    %v2726 = vpack.c.b16 %v2562, %v2558
    %v2727 = vpack.c.b16 %v2567, %v2563
    %v2728 = vpack.c.b16 %v2568, %v2564
    %v2729 = vpack.c.b16 %v2569, %v2565
    %v2730 = vpack.c.b16 %v2570, %v2566
    %v2731 = vpack.c.b16 %v2575, %v2571
    %v2732 = vpack.c.b16 %v2576, %v2572
    %v2733 = vpack.c.b16 %v2577, %v2573
    %v2734 = vpack.c.b16 %v2578, %v2574
    %v2735 = vpack.c.b16 %v2583, %v2579
    %v2736 = vpack.c.b16 %v2584, %v2580
    %v2737 = vpack.c.b16 %v2585, %v2581
    %v2738 = vpack.c.b16 %v2586, %v2582
    %v2739 = vpack.c.b16 %v2591, %v2587
    %v2740 = vpack.c.b16 %v2592, %v2588
    %v2741 = vpack.c.b16 %v2593, %v2589
    %v2742 = vpack.c.b16 %v2594, %v2590
    %v2743 = vpack.c.b16 %v2599, %v2595
    %v2744 = vpack.c.b16 %v2600, %v2596
    %v2745 = vpack.c.b16 %v2601, %v2597
    %v2746 = vpack.c.b16 %v2602, %v2598
    %v2747 = vpack.c.b16 %v2607, %v2603
    %v2748 = vpack.c.b16 %v2608, %v2604
    %v2749 = vpack.c.b16 %v2609, %v2605
    %v2750 = vpack.c.b16 %v2610, %v2606
    %v2751 = vpack.c.b16 %v2615, %v2611
    %v2752 = vpack.c.b16 %v2616, %v2612
    %v2753 = vpack.c.b16 %v2617, %v2613
    %v2754 = vpack.c.b16 %v2618, %v2614
    %v2755 = vpack.c.b16 %v2623, %v2619
    %v2756 = vpack.c.b16 %v2624, %v2620
    %v2757 = vpack.c.b16 %v2625, %v2621
    %v2758 = vpack.c.b16 %v2626, %v2622
    %v2759 = vpack.c.b16 %v2631, %v2627
    %v2760 = vpack.c.b16 %v2632, %v2628
    %v2761 = vpack.c.b16 %v2633, %v2629
    %v2762 = vpack.c.b16 %v2634, %v2630
    %2891 = vmatpush.bf16.msra.mxu0 %v2663
    %2892 = vmatpush.bf16.msra.mxu0 %v2659
    %2893 = vmatpush.bf16.msra.mxu0 %v2655
    %2894 = vmatpush.bf16.msra.mxu0 %v2651
    %2895 = vmatpush.bf16.msra.mxu0 %v2647
    %2896 = vmatpush.bf16.msra.mxu0 %v2643
    %2897 = vmatpush.bf16.msra.mxu0 %v2639
    %2898 = vmatpush.bf16.msra.mxu0 %v2635
    %2899 = vmatmul.bf16.gmra.mxu0 %v2115
    %v2900 = vpop.f32.mrf.mxu0
    %v2901 = vadd.f32 0.0, %v2900
    %v2902 = vpop.f32.mrf.mxu0
    %v2903 = vadd.f32 0.0, %v2902
    %2904 = vmatmul.bf16.gmra.mxu0 %v2119
    %v2905 = vpop.f32.mrf.mxu0
    %v2906 = vadd.f32 0.0, %v2905
    %v2907 = vpop.f32.mrf.mxu0
    %v2908 = vadd.f32 0.0, %v2907
    %2909 = vdwg.mxu0
    %2910 = vmatpush.bf16.msra.mxu0 %v2695
    %2911 = vmatpush.bf16.msra.mxu0 %v2691
    %2912 = vmatpush.bf16.msra.mxu0 %v2687
    %2913 = vmatpush.bf16.msra.mxu0 %v2683
    %2914 = vmatpush.bf16.msra.mxu0 %v2679
    %2915 = vmatpush.bf16.msra.mxu0 %v2675
    %2916 = vmatpush.bf16.msra.mxu0 %v2671
    %2917 = vmatpush.bf16.msra.mxu0 %v2667
    %2918 = vmatmul.bf16.gmra.mxu0 %v2116
    %v2919 = vpop.f32.mrf.mxu0
    %v2920 = vadd.f32 %v2901, %v2919
    %v2921 = vpop.f32.mrf.mxu0
    %v2922 = vadd.f32 %v2903, %v2921
    %2923 = vmatmul.bf16.gmra.mxu0 %v2120
    %v2924 = vpop.f32.mrf.mxu0
    %v2925 = vadd.f32 %v2906, %v2924
    %v2926 = vpop.f32.mrf.mxu0
    %v2927 = vadd.f32 %v2908, %v2926
    %2928 = vdwg.mxu0
    %2929 = vmatpush.bf16.msra.mxu0 %v2727
    %2930 = vmatpush.bf16.msra.mxu0 %v2723
    %2931 = vmatpush.bf16.msra.mxu0 %v2719
    %2932 = vmatpush.bf16.msra.mxu0 %v2715
    %2933 = vmatpush.bf16.msra.mxu0 %v2711
    %2934 = vmatpush.bf16.msra.mxu0 %v2707
    %2935 = vmatpush.bf16.msra.mxu0 %v2703
    %2936 = vmatpush.bf16.msra.mxu0 %v2699
    %2937 = vmatmul.bf16.gmra.mxu0 %v2117
    %v2938 = vpop.f32.mrf.mxu0
    %v2939 = vadd.f32 %v2920, %v2938
    %v2940 = vpop.f32.mrf.mxu0
    %v2941 = vadd.f32 %v2922, %v2940
    %2942 = vmatmul.bf16.gmra.mxu0 %v2121
    %v2943 = vpop.f32.mrf.mxu0
    %v2944 = vadd.f32 %v2925, %v2943
    %v2945 = vpop.f32.mrf.mxu0
    %v2946 = vadd.f32 %v2927, %v2945
    %2947 = vdwg.mxu0
    %2948 = vmatpush.bf16.msra.mxu0 %v2759
    %2949 = vmatpush.bf16.msra.mxu0 %v2755
    %2950 = vmatpush.bf16.msra.mxu0 %v2751
    %2951 = vmatpush.bf16.msra.mxu0 %v2747
    %2952 = vmatpush.bf16.msra.mxu0 %v2743
    %2953 = vmatpush.bf16.msra.mxu0 %v2739
    %2954 = vmatpush.bf16.msra.mxu0 %v2735
    %2955 = vmatpush.bf16.msra.mxu0 %v2731
    %2956 = vmatmul.bf16.gmra.mxu0 %v2118
    %v2957 = vpop.f32.mrf.mxu0
    %v2958 = vadd.f32 %v2939, %v2957
    %v2959 = vpop.f32.mrf.mxu0
    %v2960 = vadd.f32 %v2941, %v2959
    %2961 = vmatmul.bf16.gmra.mxu0 %v2122
    %v2962 = vpop.f32.mrf.mxu0
    %v2963 = vadd.f32 %v2944, %v2962
    %v2964 = vpop.f32.mrf.mxu0
    %v2965 = vadd.f32 %v2946, %v2964
    %2966 = vdwg.mxu0
    %2967 = vmatpush.bf16.msra.mxu0 %v2664
    %2968 = vmatpush.bf16.msra.mxu0 %v2660
    %2969 = vmatpush.bf16.msra.mxu0 %v2656
    %2970 = vmatpush.bf16.msra.mxu0 %v2652
    %2971 = vmatpush.bf16.msra.mxu0 %v2648
    %2972 = vmatpush.bf16.msra.mxu0 %v2644
    %2973 = vmatpush.bf16.msra.mxu0 %v2640
    %2974 = vmatpush.bf16.msra.mxu0 %v2636
    %2975 = vmatmul.bf16.gmra.mxu0 %v2115
    %v2976 = vpop.f32.mrf.mxu0
    %v2977 = vadd.f32 0.0, %v2976
    %v2978 = vpop.f32.mrf.mxu0
    %v2979 = vadd.f32 0.0, %v2978
    %2980 = vmatmul.bf16.gmra.mxu0 %v2119
    %v2981 = vpop.f32.mrf.mxu0
    %v2982 = vadd.f32 0.0, %v2981
    %v2983 = vpop.f32.mrf.mxu0
    %v2984 = vadd.f32 0.0, %v2983
    %2985 = vdwg.mxu0
    %2986 = vmatpush.bf16.msra.mxu0 %v2696
    %2987 = vmatpush.bf16.msra.mxu0 %v2692
    %2988 = vmatpush.bf16.msra.mxu0 %v2688
    %2989 = vmatpush.bf16.msra.mxu0 %v2684
    %2990 = vmatpush.bf16.msra.mxu0 %v2680
    %2991 = vmatpush.bf16.msra.mxu0 %v2676
    %2992 = vmatpush.bf16.msra.mxu0 %v2672
    %2993 = vmatpush.bf16.msra.mxu0 %v2668
    %2994 = vmatmul.bf16.gmra.mxu0 %v2116
    %v2995 = vpop.f32.mrf.mxu0
    %v2996 = vadd.f32 %v2977, %v2995
    %v2997 = vpop.f32.mrf.mxu0
    %v2998 = vadd.f32 %v2979, %v2997
    %2999 = vmatmul.bf16.gmra.mxu0 %v2120
    %v3000 = vpop.f32.mrf.mxu0
    %v3001 = vadd.f32 %v2982, %v3000
    %v3002 = vpop.f32.mrf.mxu0
    %v3003 = vadd.f32 %v2984, %v3002
    %3004 = vdwg.mxu0
    %3005 = vmatpush.bf16.msra.mxu0 %v2728
    %3006 = vmatpush.bf16.msra.mxu0 %v2724
    %3007 = vmatpush.bf16.msra.mxu0 %v2720
    %3008 = vmatpush.bf16.msra.mxu0 %v2716
    %3009 = vmatpush.bf16.msra.mxu0 %v2712
    %3010 = vmatpush.bf16.msra.mxu0 %v2708
    %3011 = vmatpush.bf16.msra.mxu0 %v2704
    %3012 = vmatpush.bf16.msra.mxu0 %v2700
    %3013 = vmatmul.bf16.gmra.mxu0 %v2117
    %v3014 = vpop.f32.mrf.mxu0
    %v3015 = vadd.f32 %v2996, %v3014
    %v3016 = vpop.f32.mrf.mxu0
    %v3017 = vadd.f32 %v2998, %v3016
    %3018 = vmatmul.bf16.gmra.mxu0 %v2121
    %v3019 = vpop.f32.mrf.mxu0
    %v3020 = vadd.f32 %v3001, %v3019
    %v3021 = vpop.f32.mrf.mxu0
    %v3022 = vadd.f32 %v3003, %v3021
    %3023 = vdwg.mxu0
    %3024 = vmatpush.bf16.msra.mxu0 %v2760
    %3025 = vmatpush.bf16.msra.mxu0 %v2756
    %3026 = vmatpush.bf16.msra.mxu0 %v2752
    %3027 = vmatpush.bf16.msra.mxu0 %v2748
    %3028 = vmatpush.bf16.msra.mxu0 %v2744
    %3029 = vmatpush.bf16.msra.mxu0 %v2740
    %3030 = vmatpush.bf16.msra.mxu0 %v2736
    %3031 = vmatpush.bf16.msra.mxu0 %v2732
    %3032 = vmatmul.bf16.gmra.mxu0 %v2118
    %v3033 = vpop.f32.mrf.mxu0
    %v3034 = vadd.f32 %v3015, %v3033
    %v3035 = vpop.f32.mrf.mxu0
    %v3036 = vadd.f32 %v3017, %v3035
    %3037 = vmatmul.bf16.gmra.mxu0 %v2122
    %v3038 = vpop.f32.mrf.mxu0
    %v3039 = vadd.f32 %v3020, %v3038
    %v3040 = vpop.f32.mrf.mxu0
    %v3041 = vadd.f32 %v3022, %v3040
    %3042 = vdwg.mxu0
    %3043 = vmatpush.bf16.msra.mxu0 %v2665
    %3044 = vmatpush.bf16.msra.mxu0 %v2661
    %3045 = vmatpush.bf16.msra.mxu0 %v2657
    %3046 = vmatpush.bf16.msra.mxu0 %v2653
    %3047 = vmatpush.bf16.msra.mxu0 %v2649
    %3048 = vmatpush.bf16.msra.mxu0 %v2645
    %3049 = vmatpush.bf16.msra.mxu0 %v2641
    %3050 = vmatpush.bf16.msra.mxu0 %v2637
    %3051 = vmatmul.bf16.gmra.mxu0 %v2115
    %v3052 = vpop.f32.mrf.mxu0
    %v3053 = vadd.f32 0.0, %v3052
    %v3054 = vpop.f32.mrf.mxu0
    %v3055 = vadd.f32 0.0, %v3054
    %3056 = vmatmul.bf16.gmra.mxu0 %v2119
    %v3057 = vpop.f32.mrf.mxu0
    %v3058 = vadd.f32 0.0, %v3057
    %v3059 = vpop.f32.mrf.mxu0
    %v3060 = vadd.f32 0.0, %v3059
    %3061 = vdwg.mxu0
    %3062 = vmatpush.bf16.msra.mxu0 %v2697
    %3063 = vmatpush.bf16.msra.mxu0 %v2693
    %3064 = vmatpush.bf16.msra.mxu0 %v2689
    %3065 = vmatpush.bf16.msra.mxu0 %v2685
    %3066 = vmatpush.bf16.msra.mxu0 %v2681
    %3067 = vmatpush.bf16.msra.mxu0 %v2677
    %3068 = vmatpush.bf16.msra.mxu0 %v2673
    %3069 = vmatpush.bf16.msra.mxu0 %v2669
    %3070 = vmatmul.bf16.gmra.mxu0 %v2116
    %v3071 = vpop.f32.mrf.mxu0
    %v3072 = vadd.f32 %v3053, %v3071
    %v3073 = vpop.f32.mrf.mxu0
    %v3074 = vadd.f32 %v3055, %v3073
    %3075 = vmatmul.bf16.gmra.mxu0 %v2120
    %v3076 = vpop.f32.mrf.mxu0
    %v3077 = vadd.f32 %v3058, %v3076
    %v3078 = vpop.f32.mrf.mxu0
    %v3079 = vadd.f32 %v3060, %v3078
    %3080 = vdwg.mxu0
    %3081 = vmatpush.bf16.msra.mxu0 %v2729
    %3082 = vmatpush.bf16.msra.mxu0 %v2725
    %3083 = vmatpush.bf16.msra.mxu0 %v2721
    %3084 = vmatpush.bf16.msra.mxu0 %v2717
    %3085 = vmatpush.bf16.msra.mxu0 %v2713
    %3086 = vmatpush.bf16.msra.mxu0 %v2709
    %3087 = vmatpush.bf16.msra.mxu0 %v2705
    %3088 = vmatpush.bf16.msra.mxu0 %v2701
    %3089 = vmatmul.bf16.gmra.mxu0 %v2117
    %v3090 = vpop.f32.mrf.mxu0
    %v3091 = vadd.f32 %v3072, %v3090
    %v3092 = vpop.f32.mrf.mxu0
    %v3093 = vadd.f32 %v3074, %v3092
    %3094 = vmatmul.bf16.gmra.mxu0 %v2121
    %v3095 = vpop.f32.mrf.mxu0
    %v3096 = vadd.f32 %v3077, %v3095
    %v3097 = vpop.f32.mrf.mxu0
    %v3098 = vadd.f32 %v3079, %v3097
    %3099 = vdwg.mxu0
    %3100 = vmatpush.bf16.msra.mxu0 %v2761
    %3101 = vmatpush.bf16.msra.mxu0 %v2757
    %3102 = vmatpush.bf16.msra.mxu0 %v2753
    %3103 = vmatpush.bf16.msra.mxu0 %v2749
    %3104 = vmatpush.bf16.msra.mxu0 %v2745
    %3105 = vmatpush.bf16.msra.mxu0 %v2741
    %3106 = vmatpush.bf16.msra.mxu0 %v2737
    %3107 = vmatpush.bf16.msra.mxu0 %v2733
    %3108 = vmatmul.bf16.gmra.mxu0 %v2118
    %v3109 = vpop.f32.mrf.mxu0
    %v3110 = vadd.f32 %v3091, %v3109
    %v3111 = vpop.f32.mrf.mxu0
    %v3112 = vadd.f32 %v3093, %v3111
    %3113 = vmatmul.bf16.gmra.mxu0 %v2122
    %v3114 = vpop.f32.mrf.mxu0
    %v3115 = vadd.f32 %v3096, %v3114
    %v3116 = vpop.f32.mrf.mxu0
    %v3117 = vadd.f32 %v3098, %v3116
    %3118 = vdwg.mxu0
    %3119 = vmatpush.bf16.msra.mxu0 %v2666
    %3120 = vmatpush.bf16.msra.mxu0 %v2662
    %3121 = vmatpush.bf16.msra.mxu0 %v2658
    %3122 = vmatpush.bf16.msra.mxu0 %v2654
    %3123 = vmatpush.bf16.msra.mxu0 %v2650
    %3124 = vmatpush.bf16.msra.mxu0 %v2646
    %3125 = vmatpush.bf16.msra.mxu0 %v2642
    %3126 = vmatpush.bf16.msra.mxu0 %v2638
    %3127 = vmatmul.bf16.gmra.mxu0 %v2115
    %v3128 = vpop.f32.mrf.mxu0
    %v3129 = vadd.f32 0.0, %v3128
    %v3130 = vpop.f32.mrf.mxu0
    %v3131 = vadd.f32 0.0, %v3130
    %3132 = vmatmul.bf16.gmra.mxu0 %v2119
    %v3133 = vpop.f32.mrf.mxu0
    %v3134 = vadd.f32 0.0, %v3133
    %v3135 = vpop.f32.mrf.mxu0
    %v3136 = vadd.f32 0.0, %v3135
    %3137 = vdwg.mxu0
    %3138 = vmatpush.bf16.msra.mxu0 %v2698
    %3139 = vmatpush.bf16.msra.mxu0 %v2694
    %3140 = vmatpush.bf16.msra.mxu0 %v2690
    %3141 = vmatpush.bf16.msra.mxu0 %v2686
    %3142 = vmatpush.bf16.msra.mxu0 %v2682
    %3143 = vmatpush.bf16.msra.mxu0 %v2678
    %3144 = vmatpush.bf16.msra.mxu0 %v2674
    %3145 = vmatpush.bf16.msra.mxu0 %v2670
    %3146 = vmatmul.bf16.gmra.mxu0 %v2116
    %v3147 = vpop.f32.mrf.mxu0
    %v3148 = vadd.f32 %v3129, %v3147
    %v3149 = vpop.f32.mrf.mxu0
    %v3150 = vadd.f32 %v3131, %v3149
    %3151 = vmatmul.bf16.gmra.mxu0 %v2120
    %v3152 = vpop.f32.mrf.mxu0
    %v3153 = vadd.f32 %v3134, %v3152
    %v3154 = vpop.f32.mrf.mxu0
    %v3155 = vadd.f32 %v3136, %v3154
    %3156 = vdwg.mxu0
    %3157 = vmatpush.bf16.msra.mxu0 %v2730
    %3158 = vmatpush.bf16.msra.mxu0 %v2726
    %3159 = vmatpush.bf16.msra.mxu0 %v2722
    %3160 = vmatpush.bf16.msra.mxu0 %v2718
    %3161 = vmatpush.bf16.msra.mxu0 %v2714
    %3162 = vmatpush.bf16.msra.mxu0 %v2710
    %3163 = vmatpush.bf16.msra.mxu0 %v2706
    %3164 = vmatpush.bf16.msra.mxu0 %v2702
    %3165 = vmatmul.bf16.gmra.mxu0 %v2117
    %v3166 = vpop.f32.mrf.mxu0
    %v3167 = vadd.f32 %v3148, %v3166
    %v3168 = vpop.f32.mrf.mxu0
    %v3169 = vadd.f32 %v3150, %v3168
    %3170 = vmatmul.bf16.gmra.mxu0 %v2121
    %v3171 = vpop.f32.mrf.mxu0
    %v3172 = vadd.f32 %v3153, %v3171
    %v3173 = vpop.f32.mrf.mxu0
    %v3174 = vadd.f32 %v3155, %v3173
    %3175 = vdwg.mxu0
    %3176 = vmatpush.bf16.msra.mxu0 %v2762
    %3177 = vmatpush.bf16.msra.mxu0 %v2758
    %3178 = vmatpush.bf16.msra.mxu0 %v2754
    %3179 = vmatpush.bf16.msra.mxu0 %v2750
    %3180 = vmatpush.bf16.msra.mxu0 %v2746
    %3181 = vmatpush.bf16.msra.mxu0 %v2742
    %3182 = vmatpush.bf16.msra.mxu0 %v2738
    %3183 = vmatpush.bf16.msra.mxu0 %v2734
    %3184 = vmatmul.bf16.gmra.mxu0 %v2118
    %v3185 = vpop.f32.mrf.mxu0
    %v3186 = vadd.f32 %v3167, %v3185
    %v3187 = vpop.f32.mrf.mxu0
    %v3188 = vadd.f32 %v3169, %v3187
    %3189 = vmatmul.bf16.gmra.mxu0 %v2122
    %v3190 = vpop.f32.mrf.mxu0
    %v3191 = vadd.f32 %v3172, %v3190
    %v3192 = vpop.f32.mrf.mxu0
    %v3193 = vadd.f32 %v3174, %v3192
    %3194 = vdwg.mxu0
    %v3195 = vadd.f32 %v2958, %v2960
    %v3196 = vadd.f32 %v3195, %v2963
    %v3197 = vadd.f32 %v3196, %v2965
    %v3198 = vrot.slane %v3197, 4
    %v3199 = vadd.f32 %v3197, %v3198
    %v3200 = vrot.slane %v3199, 2
    %v3201 = vadd.f32 %v3199, %v3200
    %v3202 = vrot.slane %v3201, 1
    %v3203 = vadd.f32 %v3201, %v3202
    %v3204 = vadd.f32 %v3034, %v3036
    %v3205 = vadd.f32 %v3204, %v3039
    %v3206 = vadd.f32 %v3205, %v3041
    %v3207 = vrot.slane %v3206, 4
    %v3208 = vadd.f32 %v3206, %v3207
    %v3209 = vrot.slane %v3208, 2
    %v3210 = vadd.f32 %v3208, %v3209
    %v3211 = vrot.slane %v3210, 1
    %v3212 = vadd.f32 %v3210, %v3211
    %v3213 = vadd.f32 %v3110, %v3112
    %v3214 = vadd.f32 %v3213, %v3115
    %v3215 = vadd.f32 %v3214, %v3117
    %v3216 = vrot.slane %v3215, 4
    %v3217 = vadd.f32 %v3215, %v3216
    %v3218 = vrot.slane %v3217, 2
    %v3219 = vadd.f32 %v3217, %v3218
    %v3220 = vrot.slane %v3219, 1
    %v3221 = vadd.f32 %v3219, %v3220
    %v3222 = vadd.f32 %v3186, %v3188
    %v3223 = vadd.f32 %v3222, %v3191
    %v3224 = vadd.f32 %v3223, %v3193
    %v3225 = vrot.slane %v3224, 4
    %v3226 = vadd.f32 %v3224, %v3225
    %v3227 = vrot.slane %v3226, 2
    %v3228 = vadd.f32 %v3226, %v3227
    %v3229 = vrot.slane %v3228, 1
    %v3230 = vadd.f32 %v3228, %v3229
    %v3231 = vmul.f32 %v3203, 0.03125
    %v3232 = vmul.f32 %v3212, 0.03125
    %v3233 = vmul.f32 %v3221, 0.03125
    %v3234 = vmul.f32 %v3230, 0.03125
    %v3235 = vmul.f32 %v2958, %v2958
    %v3236 = vmul.f32 %v3034, %v3034
    %v3237 = vmul.f32 %v3110, %v3110
    %v3238 = vmul.f32 %v3186, %v3186
    %v3239 = vmul.f32 %v2960, %v2960
    %v3240 = vmul.f32 %v3036, %v3036
    %v3241 = vmul.f32 %v3112, %v3112
    %v3242 = vmul.f32 %v3188, %v3188
    %v3243 = vmul.f32 %v2963, %v2963
    %v3244 = vmul.f32 %v3039, %v3039
    %v3245 = vmul.f32 %v3115, %v3115
    %v3246 = vmul.f32 %v3191, %v3191
    %v3247 = vmul.f32 %v2965, %v2965
    %v3248 = vmul.f32 %v3041, %v3041
    %v3249 = vmul.f32 %v3117, %v3117
    %v3250 = vmul.f32 %v3193, %v3193
    %v3251 = vadd.f32 %v3235, %v3239
    %v3252 = vadd.f32 %v3251, %v3243
    %v3253 = vadd.f32 %v3252, %v3247
    %v3254 = vrot.slane %v3253, 4
    %v3255 = vadd.f32 %v3253, %v3254
    %v3256 = vrot.slane %v3255, 2
    %v3257 = vadd.f32 %v3255, %v3256
    %v3258 = vrot.slane %v3257, 1
    %v3259 = vadd.f32 %v3257, %v3258
    %v3260 = vadd.f32 %v3236, %v3240
    %v3261 = vadd.f32 %v3260, %v3244
    %v3262 = vadd.f32 %v3261, %v3248
    %v3263 = vrot.slane %v3262, 4
    %v3264 = vadd.f32 %v3262, %v3263
    %v3265 = vrot.slane %v3264, 2
    %v3266 = vadd.f32 %v3264, %v3265
    %v3267 = vrot.slane %v3266, 1
    %v3268 = vadd.f32 %v3266, %v3267
    %v3269 = vadd.f32 %v3237, %v3241
    %v3270 = vadd.f32 %v3269, %v3245
    %v3271 = vadd.f32 %v3270, %v3249
    %v3272 = vrot.slane %v3271, 4
    %v3273 = vadd.f32 %v3271, %v3272
    %v3274 = vrot.slane %v3273, 2
    %v3275 = vadd.f32 %v3273, %v3274
    %v3276 = vrot.slane %v3275, 1
    %v3277 = vadd.f32 %v3275, %v3276
    %v3278 = vadd.f32 %v3238, %v3242
    %v3279 = vadd.f32 %v3278, %v3246
    %v3280 = vadd.f32 %v3279, %v3250
    %v3281 = vrot.slane %v3280, 4
    %v3282 = vadd.f32 %v3280, %v3281
    %v3283 = vrot.slane %v3282, 2
    %v3284 = vadd.f32 %v3282, %v3283
    %v3285 = vrot.slane %v3284, 1
    %v3286 = vadd.f32 %v3284, %v3285
    %v3287 = vmul.f32 %v3259, 0.03125
    %v3288 = vmul.f32 %v3268, 0.03125
    %v3289 = vmul.f32 %v3277, 0.03125
    %v3290 = vmul.f32 %v3286, 0.03125
    %v3291 = vmul.f32 %v3231, %v3231
    %v3292 = vmul.f32 %v3232, %v3232
    %v3293 = vmul.f32 %v3233, %v3233
    %v3294 = vmul.f32 %v3234, %v3234
    %v3295 = vsub.f32 %v3287, %v3291
    %v3296 = vsub.f32 %v3288, %v3292
    %v3297 = vsub.f32 %v3289, %v3293
    %v3298 = vsub.f32 %v3290, %v3294
    %v3299 = vmax.f32 %v3295, 0.0
    %v3300 = vmax.f32 %v3296, 0.0
    %v3301 = vmax.f32 %v3297, 0.0
    %v3302 = vmax.f32 %v3298, 0.0
    %v3303 = vadd.f32 %v3299, 1e-05
    %v3304 = vadd.f32 %v3300, 1e-05
    %v3305 = vadd.f32 %v3301, 1e-05
    %v3306 = vadd.f32 %v3302, 1e-05
    %v3307 = vrsqrt.pop %v3303
    %v3308 = vmul.f32 %v3307, %v3303
    %v3309 = vmul.f32 %v3308, %v3307
    %v3310 = vmul.f32 0.5, %v3309
    %v3311 = vsub.f32 1.5, %v3310
    %v3312 = vmul.f32 %v3307, %v3311
    %vm3313 = vweird.f32 %v3303
    %vm3314 = vweird.f32 %v3307
    %vm3315 = vmor %vm3313, %vm3314
    %v3316 = vsel %vm3315, %v3307, %v3312
    %v3317 = vrsqrt.pop %v3304
    %v3318 = vmul.f32 %v3317, %v3304
    %v3319 = vmul.f32 %v3318, %v3317
    %v3320 = vmul.f32 0.5, %v3319
    %v3321 = vsub.f32 1.5, %v3320
    %v3322 = vmul.f32 %v3317, %v3321
    %vm3323 = vweird.f32 %v3304
    %vm3324 = vweird.f32 %v3317
    %vm3325 = vmor %vm3323, %vm3324
    %v3326 = vsel %vm3325, %v3317, %v3322
    %v3327 = vrsqrt.pop %v3305
    %v3328 = vmul.f32 %v3327, %v3305
    %v3329 = vmul.f32 %v3328, %v3327
    %v3330 = vmul.f32 0.5, %v3329
    %v3331 = vsub.f32 1.5, %v3330
    %v3332 = vmul.f32 %v3327, %v3331
    %vm3333 = vweird.f32 %v3305
    %vm3334 = vweird.f32 %v3327
    %vm3335 = vmor %vm3333, %vm3334
    %v3336 = vsel %vm3335, %v3327, %v3332
    %v3337 = vrsqrt.pop %v3306
    %v3338 = vmul.f32 %v3337, %v3306
    %v3339 = vmul.f32 %v3338, %v3337
    %v3340 = vmul.f32 0.5, %v3339
    %v3341 = vsub.f32 1.5, %v3340
    %v3342 = vmul.f32 %v3337, %v3341
    %vm3343 = vweird.f32 %v3306
    %vm3344 = vweird.f32 %v3337
    %vm3345 = vmor %vm3343, %vm3344
    %v3346 = vsel %vm3345, %v3337, %v3342
    %v3351 = vrot.slane %v3326, 4
    %v3352 = vrot.slane %v3346, 4
    %v3353 = vsel %vm2010, %v3316, %v3351
    %v3354 = vsel %vm2010, %v3336, %v3352
    %v3355 = vrot.slane %v3353, 6
    %v3356 = vrot.slane %v3354, 6
    %v3359 = vmul.f32 %v93, %v3355
    %v3360 = vmul.f32 %v94, %v3356
    %v3363 = vperm.slane %v3359, 2
    %v3364 = vperm.slane %v3359, 6
    %v3365 = vperm.slane %v3360, 2
    %v3366 = vperm.slane %v3360, 6
    %v3371 = vmul.f32 %v3231, %v3363
    %v3372 = vmul.f32 %v3232, %v3364
    %v3373 = vmul.f32 %v3233, %v3365
    %v3374 = vmul.f32 %v3234, %v3366
    %v3379 = vrot.slane %v3372, 4
    %v3380 = vrot.slane %v3374, 4
    %v3381 = vsel %vm2010, %v3371, %v3379
    %v3382 = vsel %vm2010, %v3373, %v3380
    %v3383 = vrot.slane %v3381, 5
    %v3384 = vrot.slane %v3382, 5
    %v3387 = vsub.f32 %v93, %v3383
    %v3388 = vsub.f32 %v94, %v3384
    %v3389 = vperm.slane %v3363, 2
    %v3390 = vperm.slane %v3364, 2
    %v3391 = vperm.slane %v3365, 2
    %v3392 = vperm.slane %v3366, 2
    %v3393 = vmul.f32 %v2958, %v3389
    %v3394 = vmul.f32 %v3034, %v3390
    %v3395 = vmul.f32 %v3110, %v3391
    %v3396 = vmul.f32 %v3186, %v3392
    %v3397 = vmul.f32 %v2960, %v3389
    %v3398 = vmul.f32 %v3036, %v3390
    %v3399 = vmul.f32 %v3112, %v3391
    %v3400 = vmul.f32 %v3188, %v3392
    %v3401 = vmul.f32 %v2963, %v3389
    %v3402 = vmul.f32 %v3039, %v3390
    %v3403 = vmul.f32 %v3115, %v3391
    %v3404 = vmul.f32 %v3191, %v3392
    %v3405 = vmul.f32 %v2965, %v3389
    %v3406 = vmul.f32 %v3041, %v3390
    %v3407 = vmul.f32 %v3117, %v3391
    %v3408 = vmul.f32 %v3193, %v3392
    %v3411 = vperm.slane %v3387, 3
    %v3412 = vperm.slane %v3387, 7
    %v3413 = vperm.slane %v3388, 3
    %v3414 = vperm.slane %v3388, 7
    %v3419 = vperm.slane %v3411, 3
    %v3420 = vperm.slane %v3412, 3
    %v3421 = vperm.slane %v3413, 3
    %v3422 = vperm.slane %v3414, 3
    %v3423 = vadd.f32 %v3393, %v3419
    %v3424 = vadd.f32 %v3394, %v3420
    %v3425 = vadd.f32 %v3395, %v3421
    %v3426 = vadd.f32 %v3396, %v3422
    %v3427 = vadd.f32 %v3397, %v3419
    %v3428 = vadd.f32 %v3398, %v3420
    %v3429 = vadd.f32 %v3399, %v3421
    %v3430 = vadd.f32 %v3400, %v3422
    %v3431 = vadd.f32 %v3401, %v3419
    %v3432 = vadd.f32 %v3402, %v3420
    %v3433 = vadd.f32 %v3403, %v3421
    %v3434 = vadd.f32 %v3404, %v3422
    %v3435 = vadd.f32 %v3405, %v3419
    %v3436 = vadd.f32 %v3406, %v3420
    %v3437 = vadd.f32 %v3407, %v3421
    %v3438 = vadd.f32 %v3408, %v3422
    %v3439 = vmax.f32 %v3423, 0.0
    %v3440 = vmax.f32 %v3424, 0.0
    %v3441 = vmax.f32 %v3425, 0.0
    %v3442 = vmax.f32 %v3426, 0.0
    %v3443 = vmax.f32 %v3427, 0.0
    %v3444 = vmax.f32 %v3428, 0.0
    %v3445 = vmax.f32 %v3429, 0.0
    %v3446 = vmax.f32 %v3430, 0.0
    %v3447 = vmax.f32 %v3431, 0.0
    %v3448 = vmax.f32 %v3432, 0.0
    %v3449 = vmax.f32 %v3433, 0.0
    %v3450 = vmax.f32 %v3434, 0.0
    %v3451 = vmax.f32 %v3435, 0.0
    %v3452 = vmax.f32 %v3436, 0.0
    %v3453 = vmax.f32 %v3437, 0.0
    %v3454 = vmax.f32 %v3438, 0.0
    %s3455 = smul.u32 %s2111, 1
    %s3456 = sshll.u32 %s3455, 4
    %3457 = dma.done %s79, %s3456
    %v3458 = vpack.c.bf16 %v3443, %v3439
    %v3459 = vpack.c.bf16 %v3444, %v3440
    %v3460 = vpack.c.bf16 %v3445, %v3441
    %v3461 = vpack.c.bf16 %v3446, %v3442
    %v3462 = vpack.c.bf16 %v3451, %v3447
    %v3463 = vpack.c.bf16 %v3452, %v3448
    %v3464 = vpack.c.bf16 %v3453, %v3449
    %v3465 = vpack.c.bf16 %v3454, %v3450
    %v3466 = vld [vmem:[#allocation3] sm:$0xf]
    %v3467 = vld [vmem:[#allocation3 + $0x4] sm:$0xf]
    %v3468 = vld [vmem:[#allocation3 + $0x8] sm:$0xf]
    %v3469 = vld [vmem:[#allocation3 + $0xc] sm:$0xf]
    %v3470 = vld [vmem:[#allocation3 + $0x10] sm:$0xf]
    %v3471 = vld [vmem:[#allocation3 + $0x14] sm:$0xf]
    %v3472 = vld [vmem:[#allocation3 + $0x18] sm:$0xf]
    %v3473 = vld [vmem:[#allocation3 + $0x1c] sm:$0xf]
    %v3474 = vld [vmem:[#allocation3 + $0x20] sm:$0xf]
    %v3475 = vld [vmem:[#allocation3 + $0x24] sm:$0xf]
    %v3476 = vld [vmem:[#allocation3 + $0x28] sm:$0xf]
    %v3477 = vld [vmem:[#allocation3 + $0x2c] sm:$0xf]
    %v3478 = vld [vmem:[#allocation3 + $0x30] sm:$0xf]
    %v3479 = vld [vmem:[#allocation3 + $0x34] sm:$0xf]
    %v3480 = vld [vmem:[#allocation3 + $0x38] sm:$0xf]
    %v3481 = vld [vmem:[#allocation3 + $0x3c] sm:$0xf]
    %v3482 = vld [vmem:[#allocation3 + $0x40] sm:$0xf]
    %v3483 = vld [vmem:[#allocation3 + $0x44] sm:$0xf]
    %v3484 = vld [vmem:[#allocation3 + $0x48] sm:$0xf]
    %v3485 = vld [vmem:[#allocation3 + $0x4c] sm:$0xf]
    %v3486 = vld [vmem:[#allocation3 + $0x50] sm:$0xf]
    %v3487 = vld [vmem:[#allocation3 + $0x54] sm:$0xf]
    %v3488 = vld [vmem:[#allocation3 + $0x58] sm:$0xf]
    %v3489 = vld [vmem:[#allocation3 + $0x5c] sm:$0xf]
    %v3490 = vld [vmem:[#allocation3 + $0x60] sm:$0xf]
    %v3491 = vld [vmem:[#allocation3 + $0x64] sm:$0xf]
    %v3492 = vld [vmem:[#allocation3 + $0x68] sm:$0xf]
    %v3493 = vld [vmem:[#allocation3 + $0x6c] sm:$0xf]
    %v3494 = vld [vmem:[#allocation3 + $0x70] sm:$0xf]
    %v3495 = vld [vmem:[#allocation3 + $0x74] sm:$0xf]
    %v3496 = vld [vmem:[#allocation3 + $0x78] sm:$0xf]
    %v3497 = vld [vmem:[#allocation3 + $0x7c] sm:$0xf]
    %v3498 = vld [vmem:[#allocation3 + $0x80] sm:$0xf]
    %v3499 = vld [vmem:[#allocation3 + $0x84] sm:$0xf]
    %v3500 = vld [vmem:[#allocation3 + $0x88] sm:$0xf]
    %v3501 = vld [vmem:[#allocation3 + $0x8c] sm:$0xf]
    %v3502 = vld [vmem:[#allocation3 + $0x90] sm:$0xf]
    %v3503 = vld [vmem:[#allocation3 + $0x94] sm:$0xf]
    %v3504 = vld [vmem:[#allocation3 + $0x98] sm:$0xf]
    %v3505 = vld [vmem:[#allocation3 + $0x9c] sm:$0xf]
    %v3506 = vld [vmem:[#allocation3 + $0xa0] sm:$0xf]
    %v3507 = vld [vmem:[#allocation3 + $0xa4] sm:$0xf]
    %v3508 = vld [vmem:[#allocation3 + $0xa8] sm:$0xf]
    %v3509 = vld [vmem:[#allocation3 + $0xac] sm:$0xf]
    %v3510 = vld [vmem:[#allocation3 + $0xb0] sm:$0xf]
    %v3511 = vld [vmem:[#allocation3 + $0xb4] sm:$0xf]
    %v3512 = vld [vmem:[#allocation3 + $0xb8] sm:$0xf]
    %v3513 = vld [vmem:[#allocation3 + $0xbc] sm:$0xf]
    %v3514 = vld [vmem:[#allocation3 + $0xc0] sm:$0xf]
    %v3515 = vld [vmem:[#allocation3 + $0xc4] sm:$0xf]
    %v3516 = vld [vmem:[#allocation3 + $0xc8] sm:$0xf]
    %v3517 = vld [vmem:[#allocation3 + $0xcc] sm:$0xf]
    %v3518 = vld [vmem:[#allocation3 + $0xd0] sm:$0xf]
    %v3519 = vld [vmem:[#allocation3 + $0xd4] sm:$0xf]
    %v3520 = vld [vmem:[#allocation3 + $0xd8] sm:$0xf]
    %v3521 = vld [vmem:[#allocation3 + $0xdc] sm:$0xf]
    %v3522 = vld [vmem:[#allocation3 + $0xe0] sm:$0xf]
    %v3523 = vld [vmem:[#allocation3 + $0xe4] sm:$0xf]
    %v3524 = vld [vmem:[#allocation3 + $0xe8] sm:$0xf]
    %v3525 = vld [vmem:[#allocation3 + $0xec] sm:$0xf]
    %v3526 = vld [vmem:[#allocation3 + $0xf0] sm:$0xf]
    %v3527 = vld [vmem:[#allocation3 + $0xf4] sm:$0xf]
    %v3528 = vld [vmem:[#allocation3 + $0xf8] sm:$0xf]
    %v3529 = vld [vmem:[#allocation3 + $0xfc] sm:$0xf]
    %v3530 = vld [vmem:[%s3] sm:$0x1]
    %v3532 = vperm.slane %v3530, 0
    %v3598 = vunpack.c.l.b16 %v3466
    %v3599 = vunpack.c.l.b16 %v3467
    %v3600 = vunpack.c.l.b16 %v3468
    %v3601 = vunpack.c.l.b16 %v3469
    %v3602 = vunpack.c.l.b16 %v3470
    %v3603 = vunpack.c.l.b16 %v3471
    %v3604 = vunpack.c.l.b16 %v3472
    %v3605 = vunpack.c.l.b16 %v3473
    %v3606 = vunpack.c.l.b16 %v3474
    %v3607 = vunpack.c.l.b16 %v3475
    %v3608 = vunpack.c.l.b16 %v3476
    %v3609 = vunpack.c.l.b16 %v3477
    %v3610 = vunpack.c.l.b16 %v3478
    %v3611 = vunpack.c.l.b16 %v3479
    %v3612 = vunpack.c.l.b16 %v3480
    %v3613 = vunpack.c.l.b16 %v3481
    %v3614 = vunpack.c.l.b16 %v3482
    %v3615 = vunpack.c.l.b16 %v3483
    %v3616 = vunpack.c.l.b16 %v3484
    %v3617 = vunpack.c.l.b16 %v3485
    %v3618 = vunpack.c.l.b16 %v3486
    %v3619 = vunpack.c.l.b16 %v3487
    %v3620 = vunpack.c.l.b16 %v3488
    %v3621 = vunpack.c.l.b16 %v3489
    %v3622 = vunpack.c.l.b16 %v3490
    %v3623 = vunpack.c.l.b16 %v3491
    %v3624 = vunpack.c.l.b16 %v3492
    %v3625 = vunpack.c.l.b16 %v3493
    %v3626 = vunpack.c.l.b16 %v3494
    %v3627 = vunpack.c.l.b16 %v3495
    %v3628 = vunpack.c.l.b16 %v3496
    %v3629 = vunpack.c.l.b16 %v3497
    %v3630 = vunpack.c.l.b16 %v3498
    %v3631 = vunpack.c.l.b16 %v3499
    %v3632 = vunpack.c.l.b16 %v3500
    %v3633 = vunpack.c.l.b16 %v3501
    %v3634 = vunpack.c.l.b16 %v3502
    %v3635 = vunpack.c.l.b16 %v3503
    %v3636 = vunpack.c.l.b16 %v3504
    %v3637 = vunpack.c.l.b16 %v3505
    %v3638 = vunpack.c.l.b16 %v3506
    %v3639 = vunpack.c.l.b16 %v3507
    %v3640 = vunpack.c.l.b16 %v3508
    %v3641 = vunpack.c.l.b16 %v3509
    %v3642 = vunpack.c.l.b16 %v3510
    %v3643 = vunpack.c.l.b16 %v3511
    %v3644 = vunpack.c.l.b16 %v3512
    %v3645 = vunpack.c.l.b16 %v3513
    %v3646 = vunpack.c.l.b16 %v3514
    %v3647 = vunpack.c.l.b16 %v3515
    %v3648 = vunpack.c.l.b16 %v3516
    %v3649 = vunpack.c.l.b16 %v3517
    %v3650 = vunpack.c.l.b16 %v3518
    %v3651 = vunpack.c.l.b16 %v3519
    %v3652 = vunpack.c.l.b16 %v3520
    %v3653 = vunpack.c.l.b16 %v3521
    %v3654 = vunpack.c.l.b16 %v3522
    %v3655 = vunpack.c.l.b16 %v3523
    %v3656 = vunpack.c.l.b16 %v3524
    %v3657 = vunpack.c.l.b16 %v3525
    %v3658 = vunpack.c.l.b16 %v3526
    %v3659 = vunpack.c.l.b16 %v3527
    %v3660 = vunpack.c.l.b16 %v3528
    %v3661 = vunpack.c.l.b16 %v3529
    %v3662 = vpack.c.b16 %v3599, %v3598
    %v3663 = vpack.c.b16 %v3601, %v3600
    %v3664 = vpack.c.b16 %v3603, %v3602
    %v3665 = vpack.c.b16 %v3605, %v3604
    %v3666 = vpack.c.b16 %v3607, %v3606
    %v3667 = vpack.c.b16 %v3609, %v3608
    %v3668 = vpack.c.b16 %v3611, %v3610
    %v3669 = vpack.c.b16 %v3613, %v3612
    %v3670 = vpack.c.b16 %v3615, %v3614
    %v3671 = vpack.c.b16 %v3617, %v3616
    %v3672 = vpack.c.b16 %v3619, %v3618
    %v3673 = vpack.c.b16 %v3621, %v3620
    %v3674 = vpack.c.b16 %v3623, %v3622
    %v3675 = vpack.c.b16 %v3625, %v3624
    %v3676 = vpack.c.b16 %v3627, %v3626
    %v3677 = vpack.c.b16 %v3629, %v3628
    %v3678 = vpack.c.b16 %v3631, %v3630
    %v3679 = vpack.c.b16 %v3633, %v3632
    %v3680 = vpack.c.b16 %v3635, %v3634
    %v3681 = vpack.c.b16 %v3637, %v3636
    %v3682 = vpack.c.b16 %v3639, %v3638
    %v3683 = vpack.c.b16 %v3641, %v3640
    %v3684 = vpack.c.b16 %v3643, %v3642
    %v3685 = vpack.c.b16 %v3645, %v3644
    %v3686 = vpack.c.b16 %v3647, %v3646
    %v3687 = vpack.c.b16 %v3649, %v3648
    %v3688 = vpack.c.b16 %v3651, %v3650
    %v3689 = vpack.c.b16 %v3653, %v3652
    %v3690 = vpack.c.b16 %v3655, %v3654
    %v3691 = vpack.c.b16 %v3657, %v3656
    %v3692 = vpack.c.b16 %v3659, %v3658
    %v3693 = vpack.c.b16 %v3661, %v3660
    %3726 = vmatpush.bf16.msra.mxu0 %v3669
    %3727 = vmatpush.bf16.msra.mxu0 %v3668
    %3728 = vmatpush.bf16.msra.mxu0 %v3667
    %3729 = vmatpush.bf16.msra.mxu0 %v3666
    %3730 = vmatpush.bf16.msra.mxu0 %v3665
    %3731 = vmatpush.bf16.msra.mxu0 %v3664
    %3732 = vmatpush.bf16.msra.mxu0 %v3663
    %3733 = vmatpush.bf16.msra.mxu0 %v3662
    %3734 = vmatmul.bf16.gmra.mxu0 %v3458
    %v3735 = vpop.f32.mrf.mxu0
    %v3736 = vadd.f32 %v3532, %v3735
    %v3737 = vpop.f32.mrf.mxu0
    %v3738 = vadd.f32 %v3532, %v3737
    %3739 = vmatmul.bf16.gmra.mxu0 %v3462
    %v3740 = vpop.f32.mrf.mxu0
    %v3741 = vadd.f32 %v3532, %v3740
    %v3742 = vpop.f32.mrf.mxu0
    %v3743 = vadd.f32 %v3532, %v3742
    %3744 = vdwg.mxu0
    %3745 = vmatpush.bf16.msra.mxu0 %v3677
    %3746 = vmatpush.bf16.msra.mxu0 %v3676
    %3747 = vmatpush.bf16.msra.mxu0 %v3675
    %3748 = vmatpush.bf16.msra.mxu0 %v3674
    %3749 = vmatpush.bf16.msra.mxu0 %v3673
    %3750 = vmatpush.bf16.msra.mxu0 %v3672
    %3751 = vmatpush.bf16.msra.mxu0 %v3671
    %3752 = vmatpush.bf16.msra.mxu0 %v3670
    %3753 = vmatmul.bf16.gmra.mxu0 %v3459
    %v3754 = vpop.f32.mrf.mxu0
    %v3755 = vadd.f32 %v3736, %v3754
    %v3756 = vpop.f32.mrf.mxu0
    %v3757 = vadd.f32 %v3738, %v3756
    %3758 = vmatmul.bf16.gmra.mxu0 %v3463
    %v3759 = vpop.f32.mrf.mxu0
    %v3760 = vadd.f32 %v3741, %v3759
    %v3761 = vpop.f32.mrf.mxu0
    %v3762 = vadd.f32 %v3743, %v3761
    %3763 = vdwg.mxu0
    %3764 = vmatpush.bf16.msra.mxu0 %v3685
    %3765 = vmatpush.bf16.msra.mxu0 %v3684
    %3766 = vmatpush.bf16.msra.mxu0 %v3683
    %3767 = vmatpush.bf16.msra.mxu0 %v3682
    %3768 = vmatpush.bf16.msra.mxu0 %v3681
    %3769 = vmatpush.bf16.msra.mxu0 %v3680
    %3770 = vmatpush.bf16.msra.mxu0 %v3679
    %3771 = vmatpush.bf16.msra.mxu0 %v3678
    %3772 = vmatmul.bf16.gmra.mxu0 %v3460
    %v3773 = vpop.f32.mrf.mxu0
    %v3774 = vadd.f32 %v3755, %v3773
    %v3775 = vpop.f32.mrf.mxu0
    %v3776 = vadd.f32 %v3757, %v3775
    %3777 = vmatmul.bf16.gmra.mxu0 %v3464
    %v3778 = vpop.f32.mrf.mxu0
    %v3779 = vadd.f32 %v3760, %v3778
    %v3780 = vpop.f32.mrf.mxu0
    %v3781 = vadd.f32 %v3762, %v3780
    %3782 = vdwg.mxu0
    %3783 = vmatpush.bf16.msra.mxu0 %v3693
    %3784 = vmatpush.bf16.msra.mxu0 %v3692
    %3785 = vmatpush.bf16.msra.mxu0 %v3691
    %3786 = vmatpush.bf16.msra.mxu0 %v3690
    %3787 = vmatpush.bf16.msra.mxu0 %v3689
    %3788 = vmatpush.bf16.msra.mxu0 %v3688
    %3789 = vmatpush.bf16.msra.mxu0 %v3687
    %3790 = vmatpush.bf16.msra.mxu0 %v3686
    %3791 = vmatmul.bf16.gmra.mxu0 %v3461
    %v3792 = vpop.f32.mrf.mxu0
    %v3793 = vadd.f32 %v3774, %v3792
    %v3794 = vpop.f32.mrf.mxu0
    %v3795 = vadd.f32 %v3776, %v3794
    %3796 = vmatmul.bf16.gmra.mxu0 %v3465
    %v3797 = vpop.f32.mrf.mxu0
    %v3798 = vadd.f32 %v3779, %v3797
    %v3799 = vpop.f32.mrf.mxu0
    %v3800 = vadd.f32 %v3781, %v3799
    %3801 = vdwg.mxu0
    %3802 = vst [vmem:[#allocation11] sm:$0xff] %v3793
    %3803 = vst [vmem:[#allocation11 + $0x8] sm:$0xff] %v3795
    %3804 = vst [vmem:[#allocation11 + $0x10] sm:$0xff] %v3798
    %3805 = vst [vmem:[#allocation11 + $0x18] sm:$0xff] %v3800
    // Predicated region
    $region38: #{tpu_custom_call.1} parent=1 // pred_check
      _
    $region39: #{tpu_custom_call.1} parent=1 // pred_check_branch
      %3807 = sbr.rel (0) target = $region41
    $region40: #{tpu_custom_call.1} parent=1 // pred_region
      %3809 = vsyncadd [#allocation7], 0
      %s3810 = sshll.u32 [#allocation11], 4
      %s3811 = int_to_ptr.vmem [resolvable:$true] %s3810
      %s3812 = sshll.u32 %s6, 4
      %s3813 = int_to_ptr.hbm [resolvable:$true] %s3812
      %3818 = dma.vmem_to_hbm [thread:$0]  %s3811, 512, %s3813, [#allocation7], 128, 128, 8
    $region41: #{tpu_custom_call.1} parent=1 // pred_fallthru
      _
    // Predicated region
    $region42: #{tpu_custom_call.1} parent=1 // pred_check
      _
    $region43: #{tpu_custom_call.1} parent=1 // pred_check_branch
      %3820 = sbr.rel (0) target = $region45
    $region44: #{tpu_custom_call.1} parent=1 // pred_region
      %3822 = dma.done [#allocation7], 512
    $region45: #{tpu_custom_call.1} parent=1 // pred_fallthru
      _
    %3823 = vsyncpa [#allocation6], 1
    %3824 = vsyncpa [#allocation9], 1
    %3825 = vsyncpa [#allocation7], 1
  %3826 = vsyncmov [#allocation4]
  %s3827 = vpop.sfrf %3826
  %p3828 = scmp.eq.s32.totalorder %s3827, 0
  %p3829 = pneg %p3828
  %3831 = shalt.err (%p3829)
  %s3832 = scalar_lea.sflag [#allocation4], 1
  %3833 = vsyncmov %s3832
  %s3834 = vpop.sfrf %3833
  %p3835 = scmp.eq.s32.totalorder %s3834, 0
  %p3836 = pneg %p3835
  %3838 = shalt.err (%p3836)

</llo_original>
